<compile_context>
chip_gen: v5e
topology: v5e:2x2
jax: 0.10.0
libtpu: 0.0.40
codegen_flags: <defaults>
</compile_context>

<pallas_src>
import jax
import jax.numpy as jnp
import numpy as np
from jax import lax
from jax.experimental import pallas as pl
from jax.experimental.pallas import tpu as pltpu


# -----------------------------------------------------------------------------
# Fused Pallas kernel: conv1 -> bn -> relu -> maxpool -> resblock -> avgpool -> fc
# -----------------------------------------------------------------------------
def fused_forward_kernel(patches_ref, w1_ref, w2_ref, s_ref, b_ref,
                         wfc_ref, bfc_ref, out_ref,
                         zpad_ref, ypad_ref, opad_ref, rpad_ref, pbuf_ref):
    """patches_ref : (N*H1*H1, 256)  conv1 im2col patches (K zero-padded)
       w1_ref      : (256, C)        conv1 weight rows, zero-padded
       w2_ref      : (9*C, C)        conv2 weight, (kh,kw,cin)-major rows
       s_ref/b_ref : (1, C)          folded BatchNorm scale / bias (shared bn1)
       wfc_ref     : (4, C, 128)     fc weight per avgpool position, out-padded
       bfc_ref     : (1, 128)        fc bias, zero-padded
       out_ref     : (N, 128)        logits (first num_classes columns valid)
       *_pad refs  : zero-halo activation buffers; pbuf_ref: conv3x3 im2col buf
    """
    f32 = jnp.float32
    N = out_ref.shape[0]
    C = s_ref.shape[1]
    H1 = zpad_ref.shape[1] - 2          # conv1 output spatial (8)
    H2 = ypad_ref.shape[1] - 2          # maxpool / resblock spatial (4)
    H3 = (H2 + 2 - 3) // 2 + 1          # avgpool output spatial (2)
    M2 = N * H2 * H2

    scale = s_ref[...]                  # (1, C)
    bias = b_ref[...]                   # (1, C)

    # ---- conv1 (7x7 s2 p3, bias=False) as one K-aligned matmul + BN + ReLU --
    z1 = jnp.dot(patches_ref[...], w1_ref[...], preferred_element_type=f32)
    z1 = jnp.maximum(z1 * scale + bias, 0.0)                      # (N*H1*H1, C)

    # Zero-filled halo buffer doubles as the pooling padding (single call, so
    # the one-time full zero of these tiny buffers is negligible).
    zpad_ref[...] = jnp.zeros(zpad_ref.shape, zpad_ref.dtype)
    zpad_ref[:, 1:H1 + 1, 1:H1 + 1, :] = z1.reshape(N, H1, H1, C)

    # ---- maxpool 3x3 s2 p1 (0-padding == -inf padding since input >= 0) -----
    ypad_ref[...] = jnp.zeros(ypad_ref.shape, ypad_ref.dtype)
    z = zpad_ref[...]
    for oh in range(H2):
        r0 = z[:, 2 * oh:2 * oh + 1]
        r1 = z[:, 2 * oh + 1:2 * oh + 2]
        r2 = z[:, 2 * oh + 2:2 * oh + 3]
        rowmax = jnp.maximum(jnp.maximum(r0, r1), r2)             # (N,1,H1+2,C)
        for ow in range(H2):
            c0 = rowmax[:, :, 2 * ow:2 * ow + 1, :]
            c1 = rowmax[:, :, 2 * ow + 1:2 * ow + 2, :]
            c2 = rowmax[:, :, 2 * ow + 2:2 * ow + 3, :]
            ypad_ref[:, oh + 1:oh + 2, ow + 1:ow + 2, :] = (
                jnp.maximum(jnp.maximum(c0, c1), c2))

    # ---- residual block: relu(bn(conv3x3(y))) -> bn(conv3x3(.)) + y -> relu --
    w2 = w2_ref[...]                    # (9C, C)

    def conv3x3(src_ref):
        # im2col into a (N,H2,H2,9C) scratch, then ONE big-K matmul.
        src = src_ref[...]
        for kh in range(3):
            for kw in range(3):
                k = kh * 3 + kw
                pbuf_ref[:, :, :, k * C:(k + 1) * C] = (
                    src[:, kh:kh + H2, kw:kw + H2, :])
        return jnp.dot(pbuf_ref[...].reshape(M2, 9 * C), w2,
                       preferred_element_type=f32)                # (M2, C)

    out1 = jnp.maximum(conv3x3(ypad_ref) * scale + bias, 0.0)
    opad_ref[...] = jnp.zeros(opad_ref.shape, opad_ref.dtype)
    opad_ref[:, 1:H2 + 1, 1:H2 + 1, :] = out1.reshape(N, H2, H2, C)

    out2 = conv3x3(opad_ref) * scale + bias
    identity = ypad_ref[:, 1:H2 + 1, 1:H2 + 1, :].reshape(M2, C)
    res = jnp.maximum(out2 + identity, 0.0)

    # ---- avgpool 3x3 s2 p1 (count_include_pad) fused straight into the fc ---
    rpad_ref[...] = jnp.zeros(rpad_ref.shape, rpad_ref.dtype)
    rpad_ref[:, 1:H2 + 1, 1:H2 + 1, :] = res.reshape(N, H2, H2, C)
    r = rpad_ref[...]

    acc = jnp.zeros((N, out_ref.shape[1]), f32)
    for oh in range(H3):
        rowsum = (r[:, 2 * oh:2 * oh + 1] + r[:, 2 * oh + 1:2 * oh + 2]
                  + r[:, 2 * oh + 2:2 * oh + 3])                  # (N,1,H2+2,C)
        for ow in range(H3):
            s9 = (rowsum[:, :, 2 * ow:2 * ow + 1, :]
                  + rowsum[:, :, 2 * ow + 1:2 * ow + 2, :]
                  + rowsum[:, :, 2 * ow + 2:2 * ow + 3, :])       # (N,1,1,C)
            pooled = (s9 * (1.0 / 9.0)).reshape(N, C)
            acc = acc + jnp.dot(pooled, wfc_ref[oh * H3 + ow],
                                preferred_element_type=f32)

    out_ref[...] = acc + bfc_ref[...]                             # lane-dense


# -----------------------------------------------------------------------------
# Wrapper
# -----------------------------------------------------------------------------
def _spec(shape):
    nd = len(shape)
    return pl.BlockSpec(shape, lambda i, _nd=nd: (0,) * _nd)


def model_forward(x_nchw, params):
    w1, w2, bn_scale, bn_bias, fc_w, fc_b = params
    N, Cin, H, W = x_nchw.shape
    KH, KW, _, C = w1.shape
    num_classes = fc_w.shape[1]

    # ---- static geometry -----------------------------------------------------
    S1, P1 = 2, 3
    H1 = (H + 2 * P1 - KH) // S1 + 1          # 8  (conv1 out)
    H2 = (H1 + 2 - 3) // 2 + 1                # 4  (maxpool out)
    H3 = (H2 + 2 - 3) // 2 + 1                # 2  (avgpool out)
    K1 = KH * KW * Cin                        # 147
    K1P = 256                                 # zero-padded, MXU/lane aligned
    NCP = 128                                 # fc out padded to one full vreg

    # ---- parameter prep (layout folding; one-time, cacheable) ----------------
    w1f = jnp.zeros((K1P, C), jnp.float32).at[:K1, :].set(
        w1.reshape(K1, C).astype(jnp.float32))
    w2f = w2.reshape(9 * C, C).astype(jnp.float32)
    s2 = bn_scale.reshape(1, C).astype(jnp.float32)
    c2 = bn_bias.reshape(1, C).astype(jnp.float32)
    # Fold the NHWC->NCHW flatten permutation into the fc weight; pad classes
    # to 128 so the kernel's single HBM store is an unmasked full-lane store.
    wfc = fc_w.reshape(C, H3, H3, num_classes).transpose(1, 2, 0, 3)
    wfc = wfc.reshape(H3 * H3, C, num_classes).astype(jnp.float32)
    wfc = jnp.zeros((H3 * H3, C, NCP), jnp.float32).at[:, :, :num_classes].set(wfc)
    bfc = jnp.zeros((1, NCP), jnp.float32).at[0, :num_classes].set(
        fc_b.astype(jnp.float32))

    # ---- conv1 im2col (stride-2 7x7) on the tiny raw input -------------------
    x = jnp.transpose(x_nchw, (0, 2, 3, 1)).astype(jnp.float32)   # NCHW -> NHWC
    xp = jnp.pad(x, ((0, 0), (P1, P1), (P1, P1), (0, 0)))
    cols = []
    for kh in range(KH):
        for kw in range(KW):
            cols.append(xp[:, kh:kh + S1 * H1:S1, kw:kw + S1 * H1:S1, :])
    patches = jnp.concatenate(cols, axis=-1).reshape(N * H1 * H1, K1)
    patches = jnp.pad(patches, ((0, 0), (0, K1P - K1)))           # (128, 256)

    out = pl.pallas_call(
        fused_forward_kernel,
        grid=(1,),
        in_specs=[_spec(patches.shape), _spec(w1f.shape), _spec(w2f.shape),
                  _spec(s2.shape), _spec(c2.shape), _spec(wfc.shape),
                  _spec(bfc.shape)],
        out_specs=_spec((N, NCP)),
        out_shape=jax.ShapeDtypeStruct((N, NCP), jnp.float32),
        scratch_shapes=[
            pltpu.VMEM((N, H1 + 2, H1 + 2, C), jnp.float32),   # conv1 out (padded)
            pltpu.VMEM((N, H2 + 2, H2 + 2, C), jnp.float32),   # maxpool out (padded)
            pltpu.VMEM((N, H2 + 2, H2 + 2, C), jnp.float32),   # resblock mid (padded)
            pltpu.VMEM((N, H2 + 2, H2 + 2, C), jnp.float32),   # resblock out (padded)
            pltpu.VMEM((N, H2, H2, 9 * C), jnp.float32),       # conv3x3 im2col buf
        ],
        # TODO(synk): for larger batches add a leading "parallel" grid axis over
        # N (v7x has 2 TensorCores) and bf16-cast the matmul operands.
        compiler_params=pltpu.CompilerParams(
            dimension_semantics=("arbitrary",)),
    )(patches, w1f, w2f, s2, c2, wfc, bfc)
    return out[:, :num_classes]


# -----------------------------------------------------------------------------
# Pure-JAX reference (independent path: lax.conv / lax.reduce_window)
# -----------------------------------------------------------------------------
def reference_forward(x_nchw, params):
    w1, w2, bn_scale, bn_bias, fc_w, fc_b = params
    x = jnp.transpose(x_nchw, (0, 2, 3, 1))
    dn1 = lax.conv_dimension_numbers(x.shape, w1.shape, ("NHWC", "HWIO", "NHWC"))
    y = lax.conv_general_dilated(x, w1, (2, 2), [(3, 3), (3, 3)],
                                 dimension_numbers=dn1)
    y = jnp.maximum(y * bn_scale + bn_bias, 0.0)
    y = lax.reduce_window(y, -jnp.inf, lax.max, (1, 3, 3, 1), (1, 2, 2, 1),
                          [(0, 0), (1, 1), (1, 1), (0, 0)])
    identity = y

    def conv2(z):
        dn2 = lax.conv_dimension_numbers(z.shape, w2.shape, ("NHWC", "HWIO", "NHWC"))
        return lax.conv_general_dilated(z, w2, (1, 1), [(1, 1), (1, 1)],
                                        dimension_numbers=dn2)

    out = jnp.maximum(conv2(y) * bn_scale + bn_bias, 0.0)
    out = conv2(out) * bn_scale + bn_bias
    out = jnp.maximum(out + identity, 0.0)
    out = lax.reduce_window(out, 0.0, lax.add, (1, 3, 3, 1), (1, 2, 2, 1),
                            [(0, 0), (1, 1), (1, 1), (0, 0)]) / 9.0
    out = jnp.transpose(out, (0, 3, 1, 2)).reshape(out.shape[0], -1)
    return out @ fc_w + fc_b


# -----------------------------------------------------------------------------
if __name__ == "__main__":
    N, Cin, H, W = 2, 3, 16, 16
    num_classes = 10
    in_dim = 64 * 2 * 2  # C * H_out * W_out after conv1/maxpool/resblock/avgpool

    key = jax.random.PRNGKey(0)
    ks = jax.random.split(key, 9)
    x = jax.random.normal(ks[0], (N, Cin, H, W), jnp.float32)

    # Deterministic synthetic parameters (HWIO weight layout).
    w1 = 0.05 * jax.random.normal(ks[1], (7, 7, 3, 64), jnp.float32)
    w2 = 0.05 * jax.random.normal(ks[2], (3, 3, 64, 64), jnp.float32)
    gamma = 1.0 + 0.1 * jax.random.normal(ks[3], (64,), jnp.float32)
    beta = 0.1 * jax.random.normal(ks[4], (64,), jnp.float32)
    r_mean = 0.1 * jax.random.normal(ks[5], (64,), jnp.float32)
    r_var = 0.5 + jnp.abs(jax.random.normal(ks[6], (64,), jnp.float32))
    eps = 1e-5
    # TODO(synk): BatchNorm is implemented in eval/inference mode (folded
    # running-stats affine), not training-mode batch statistics.
    bn_scale = gamma / jnp.sqrt(r_var + eps)
    bn_bias = beta - r_mean * bn_scale
    fc_w = 0.05 * jax.random.normal(ks[7], (in_dim, num_classes), jnp.float32)
    fc_b = 0.05 * jax.random.normal(ks[8], (num_classes,), jnp.float32)

    params = (w1, w2, bn_scale, bn_bias, fc_w, fc_b)

    out = model_forward(x, params)
    out = jax.block_until_ready(out)
    assert out.shape == (N, num_classes)

    ref = reference_forward(x, params)
    np.testing.assert_allclose(np.asarray(out), np.asarray(ref),
                               rtol=5e-4, atol=5e-4)
    print("KERNEL_OK")
</pallas_src>

<mosaic_0001>
module attributes {stable_mosaic.version = 11 : i64} {
  func.func @fused_forward_kernel(%arg0: i32, %arg1: memref<128x256xf32, #tpu.memory_space<vmem>>, %arg2: memref<256x64xf32, #tpu.memory_space<vmem>>, %arg3: memref<576x64xf32, #tpu.memory_space<vmem>>, %arg4: memref<1x64xf32, #tpu.memory_space<vmem>>, %arg5: memref<1x64xf32, #tpu.memory_space<vmem>>, %arg6: memref<4x64x128xf32, #tpu.memory_space<vmem>>, %arg7: memref<1x128xf32, #tpu.memory_space<vmem>>, %arg8: memref<2x128xf32, #tpu.memory_space<vmem>>, %arg9: memref<2x10x10x64xf32, #tpu.memory_space<vmem>>, %arg10: memref<2x6x6x64xf32, #tpu.memory_space<vmem>>, %arg11: memref<2x6x6x64xf32, #tpu.memory_space<vmem>>, %arg12: memref<2x6x6x64xf32, #tpu.memory_space<vmem>>, %arg13: memref<2x4x4x576xf32, #tpu.memory_space<vmem>>) attributes {dimension_semantics = [#tpu.dimension_semantics<arbitrary>], iteration_bounds = array<i64: 1>, scalar_prefetch = 0 : i64, scratch_operands = 5 : i64, tpu.core_type = #tpu.core_type<tc>, window_params = [{pipeline_mode = #tpu.pipeline_mode<synchronous>, transform_indices = @transform_0, window_bounds = array<i64: 128, 256>}, {pipeline_mode = #tpu.pipeline_mode<synchronous>, transform_indices = @transform_1, window_bounds = array<i64: 256, 64>}, {pipeline_mode = #tpu.pipeline_mode<synchronous>, transform_indices = @transform_2, window_bounds = array<i64: 576, 64>}, {pipeline_mode = #tpu.pipeline_mode<synchronous>, transform_indices = @transform_3, window_bounds = array<i64: 1, 64>}, {pipeline_mode = #tpu.pipeline_mode<synchronous>, transform_indices = @transform_4, window_bounds = array<i64: 1, 64>}, {pipeline_mode = #tpu.pipeline_mode<synchronous>, transform_indices = @transform_5, window_bounds = array<i64: 4, 64, 128>}, {pipeline_mode = #tpu.pipeline_mode<synchronous>, transform_indices = @transform_6, window_bounds = array<i64: 1, 128>}, {pipeline_mode = #tpu.pipeline_mode<synchronous>, transform_indices = @transform_7, window_bounds = array<i64: 2, 128>}]} {
    %c0 = arith.constant 0 : index
    %c0_0 = arith.constant 0 : index
    %0 = vector.load %arg4[%c0, %c0_0] : memref<1x64xf32, #tpu.memory_space<vmem>>, vector<1x64xf32>
    %c0_1 = arith.constant 0 : index
    %c0_2 = arith.constant 0 : index
    %1 = vector.load %arg5[%c0_1, %c0_2] : memref<1x64xf32, #tpu.memory_space<vmem>>, vector<1x64xf32>
    %c0_3 = arith.constant 0 : index
    %c0_4 = arith.constant 0 : index
    %2 = vector.load %arg1[%c0_3, %c0_4] : memref<128x256xf32, #tpu.memory_space<vmem>>, vector<128x256xf32>
    %c0_5 = arith.constant 0 : index
    %c0_6 = arith.constant 0 : index
    %3 = vector.load %arg2[%c0_5, %c0_6] : memref<256x64xf32, #tpu.memory_space<vmem>>, vector<256x64xf32>
    %cst = arith.constant dense<0.000000e+00> : vector<128x64xf32>
    %4 = tpu.matmul %2, %3, %cst {dimension_numbers = #tpu.dot_dimension_numbers<[1], [0], [0], [1], [0, 0, 1, 1], [], []>} : vector<128x256xf32>, vector<256x64xf32>, vector<128x64xf32> -> vector<128x64xf32>
    %5 = vector.broadcast %0 : vector<1x64xf32> to vector<128x64xf32>
    %6 = arith.mulf %4, %5 : vector<128x64xf32>
    %7 = vector.broadcast %1 : vector<1x64xf32> to vector<128x64xf32>
    %8 = arith.addf %6, %7 : vector<128x64xf32>
    %cst_7 = arith.constant 0.000000e+00 : f32
    %9 = vector.broadcast %cst_7 : f32 to vector<128x64xf32>
    %10 = arith.maximumf %8, %9 : vector<128x64xf32>
    %cst_8 = arith.constant 0.000000e+00 : f32
    %11 = vector.broadcast %cst_8 : f32 to vector<2x10x10x64xf32>
    %c0_9 = arith.constant 0 : index
    %c0_10 = arith.constant 0 : index
    %c0_11 = arith.constant 0 : index
    %c0_12 = arith.constant 0 : index
    %12 = vector.load %arg9[%c0_9, %c0_10, %c0_11, %c0_12] : memref<2x10x10x64xf32, #tpu.memory_space<vmem>>, vector<2x10x10x64xf32>
    tpu.vector_store %arg9[%c0_9, %c0_10, %c0_11, %c0_12], %11 {strides = array<i32>} : memref<2x10x10x64xf32, #tpu.memory_space<vmem>>, vector<2x10x10x64xf32>,
    %13 = vector.shape_cast %10 : vector<128x64xf32> to vector<2x8x8x64xf32>
    %c0_13 = arith.constant 0 : index
    %c1 = arith.constant 1 : index
    %c1_14 = arith.constant 1 : index
    %c0_15 = arith.constant 0 : index
    %14 = vector.load %arg9[%c0_13, %c1, %c1_14, %c0_15] : memref<2x10x10x64xf32, #tpu.memory_space<vmem>>, vector<2x8x8x64xf32>
    tpu.vector_store %arg9[%c0_13, %c1, %c1_14, %c0_15], %13 {strides = array<i32>} : memref<2x10x10x64xf32, #tpu.memory_space<vmem>>, vector<2x8x8x64xf32>,
    %cst_16 = arith.constant 0.000000e+00 : f32
    %15 = vector.broadcast %cst_16 : f32 to vector<2x6x6x64xf32>
    %c0_17 = arith.constant 0 : index
    %c0_18 = arith.constant 0 : index
    %c0_19 = arith.constant 0 : index
    %c0_20 = arith.constant 0 : index
    %16 = vector.load %arg10[%c0_17, %c0_18, %c0_19, %c0_20] : memref<2x6x6x64xf32, #tpu.memory_space<vmem>>, vector<2x6x6x64xf32>
    tpu.vector_store %arg10[%c0_17, %c0_18, %c0_19, %c0_20], %15 {strides = array<i32>} : memref<2x6x6x64xf32, #tpu.memory_space<vmem>>, vector<2x6x6x64xf32>,
    %c0_21 = arith.constant 0 : index
    %c0_22 = arith.constant 0 : index
    %c0_23 = arith.constant 0 : index
    %c0_24 = arith.constant 0 : index
    %17 = vector.load %arg9[%c0_21, %c0_22, %c0_23, %c0_24] : memref<2x10x10x64xf32, #tpu.memory_space<vmem>>, vector<2x10x10x64xf32>
    %18 = vector.extract_strided_slice %17 {offsets = [0, 0, 0, 0], sizes = [2, 1, 10, 64], strides = [1, 1, 1, 1]} : vector<2x10x10x64xf32> to vector<2x1x10x64xf32>
    %19 = vector.extract_strided_slice %17 {offsets = [0, 1, 0, 0], sizes = [2, 1, 10, 64], strides = [1, 1, 1, 1]} : vector<2x10x10x64xf32> to vector<2x1x10x64xf32>
    %20 = vector.extract_strided_slice %17 {offsets = [0, 2, 0, 0], sizes = [2, 1, 10, 64], strides = [1, 1, 1, 1]} : vector<2x10x10x64xf32> to vector<2x1x10x64xf32>
    %21 = arith.maximumf %18, %19 : vector<2x1x10x64xf32>
    %22 = arith.maximumf %21, %20 : vector<2x1x10x64xf32>
    %23 = vector.extract_strided_slice %22 {offsets = [0, 0, 0, 0], sizes = [2, 1, 1, 64], strides = [1, 1, 1, 1]} : vector<2x1x10x64xf32> to vector<2x1x1x64xf32>
    %24 = vector.extract_strided_slice %22 {offsets = [0, 0, 1, 0], sizes = [2, 1, 1, 64], strides = [1, 1, 1, 1]} : vector<2x1x10x64xf32> to vector<2x1x1x64xf32>
    %25 = vector.extract_strided_slice %22 {offsets = [0, 0, 2, 0], sizes = [2, 1, 1, 64], strides = [1, 1, 1, 1]} : vector<2x1x10x64xf32> to vector<2x1x1x64xf32>
    %26 = arith.maximumf %23, %24 : vector<2x1x1x64xf32>
    %27 = arith.maximumf %26, %25 : vector<2x1x1x64xf32>
    %c0_25 = arith.constant 0 : index
    %c1_26 = arith.constant 1 : index
    %c1_27 = arith.constant 1 : index
    %c0_28 = arith.constant 0 : index
    %28 = vector.load %arg10[%c0_25, %c1_26, %c1_27, %c0_28] : memref<2x6x6x64xf32, #tpu.memory_space<vmem>>, vector<2x1x1x64xf32>
    tpu.vector_store %arg10[%c0_25, %c1_26, %c1_27, %c0_28], %27 {strides = array<i32>} : memref<2x6x6x64xf32, #tpu.memory_space<vmem>>, vector<2x1x1x64xf32>,
    %29 = vector.extract_strided_slice %22 {offsets = [0, 0, 2, 0], sizes = [2, 1, 1, 64], strides = [1, 1, 1, 1]} : vector<2x1x10x64xf32> to vector<2x1x1x64xf32>
    %30 = vector.extract_strided_slice %22 {offsets = [0, 0, 3, 0], sizes = [2, 1, 1, 64], strides = [1, 1, 1, 1]} : vector<2x1x10x64xf32> to vector<2x1x1x64xf32>
    %31 = vector.extract_strided_slice %22 {offsets = [0, 0, 4, 0], sizes = [2, 1, 1, 64], strides = [1, 1, 1, 1]} : vector<2x1x10x64xf32> to vector<2x1x1x64xf32>
    %32 = arith.maximumf %29, %30 : vector<2x1x1x64xf32>
    %33 = arith.maximumf %32, %31 : vector<2x1x1x64xf32>
    %c0_29 = arith.constant 0 : index
    %c1_30 = arith.constant 1 : index
    %c2 = arith.constant 2 : index
    %c0_31 = arith.constant 0 : index
    %34 = vector.load %arg10[%c0_29, %c1_30, %c2, %c0_31] : memref<2x6x6x64xf32, #tpu.memory_space<vmem>>, vector<2x1x1x64xf32>
    tpu.vector_store %arg10[%c0_29, %c1_30, %c2, %c0_31], %33 {strides = array<i32>} : memref<2x6x6x64xf32, #tpu.memory_space<vmem>>, vector<2x1x1x64xf32>,
    %35 = vector.extract_strided_slice %22 {offsets = [0, 0, 4, 0], sizes = [2, 1, 1, 64], strides = [1, 1, 1, 1]} : vector<2x1x10x64xf32> to vector<2x1x1x64xf32>
    %36 = vector.extract_strided_slice %22 {offsets = [0, 0, 5, 0], sizes = [2, 1, 1, 64], strides = [1, 1, 1, 1]} : vector<2x1x10x64xf32> to vector<2x1x1x64xf32>
    %37 = vector.extract_strided_slice %22 {offsets = [0, 0, 6, 0], sizes = [2, 1, 1, 64], strides = [1, 1, 1, 1]} : vector<2x1x10x64xf32> to vector<2x1x1x64xf32>
    %38 = arith.maximumf %35, %36 : vector<2x1x1x64xf32>
    %39 = arith.maximumf %38, %37 : vector<2x1x1x64xf32>
    %c0_32 = arith.constant 0 : index
    %c1_33 = arith.constant 1 : index
    %c3 = arith.constant 3 : index
    %c0_34 = arith.constant 0 : index
    %40 = vector.load %arg10[%c0_32, %c1_33, %c3, %c0_34] : memref<2x6x6x64xf32, #tpu.memory_space<vmem>>, vector<2x1x1x64xf32>
    tpu.vector_store %arg10[%c0_32, %c1_33, %c3, %c0_34], %39 {strides = array<i32>} : memref<2x6x6x64xf32, #tpu.memory_space<vmem>>, vector<2x1x1x64xf32>,
    %41 = vector.extract_strided_slice %22 {offsets = [0, 0, 6, 0], sizes = [2, 1, 1, 64], strides = [1, 1, 1, 1]} : vector<2x1x10x64xf32> to vector<2x1x1x64xf32>
    %42 = vector.extract_strided_slice %22 {offsets = [0, 0, 7, 0], sizes = [2, 1, 1, 64], strides = [1, 1, 1, 1]} : vector<2x1x10x64xf32> to vector<2x1x1x64xf32>
    %43 = vector.extract_strided_slice %22 {offsets = [0, 0, 8, 0], sizes = [2, 1, 1, 64], strides = [1, 1, 1, 1]} : vector<2x1x10x64xf32> to vector<2x1x1x64xf32>
    %44 = arith.maximumf %41, %42 : vector<2x1x1x64xf32>
    %45 = arith.maximumf %44, %43 : vector<2x1x1x64xf32>
    %c0_35 = arith.constant 0 : index
    %c1_36 = arith.constant 1 : index
    %c4 = arith.constant 4 : index
    %c0_37 = arith.constant 0 : index
    %46 = vector.load %arg10[%c0_35, %c1_36, %c4, %c0_37] : memref<2x6x6x64xf32, #tpu.memory_space<vmem>>, vector<2x1x1x64xf32>
    tpu.vector_store %arg10[%c0_35, %c1_36, %c4, %c0_37], %45 {strides = array<i32>} : memref<2x6x6x64xf32, #tpu.memory_space<vmem>>, vector<2x1x1x64xf32>,
    %47 = vector.extract_strided_slice %17 {offsets = [0, 2, 0, 0], sizes = [2, 1, 10, 64], strides = [1, 1, 1, 1]} : vector<2x10x10x64xf32> to vector<2x1x10x64xf32>
    %48 = vector.extract_strided_slice %17 {offsets = [0, 3, 0, 0], sizes = [2, 1, 10, 64], strides = [1, 1, 1, 1]} : vector<2x10x10x64xf32> to vector<2x1x10x64xf32>
    %49 = vector.extract_strided_slice %17 {offsets = [0, 4, 0, 0], sizes = [2, 1, 10, 64], strides = [1, 1, 1, 1]} : vector<2x10x10x64xf32> to vector<2x1x10x64xf32>
    %50 = arith.maximumf %47, %48 : vector<2x1x10x64xf32>
    %51 = arith.maximumf %50, %49 : vector<2x1x10x64xf32>
    %52 = vector.extract_strided_slice %51 {offsets = [0, 0, 0, 0], sizes = [2, 1, 1, 64], strides = [1, 1, 1, 1]} : vector<2x1x10x64xf32> to vector<2x1x1x64xf32>
    %53 = vector.extract_strided_slice %51 {offsets = [0, 0, 1, 0], sizes = [2, 1, 1, 64], strides = [1, 1, 1, 1]} : vector<2x1x10x64xf32> to vector<2x1x1x64xf32>
    %54 = vector.extract_strided_slice %51 {offsets = [0, 0, 2, 0], sizes = [2, 1, 1, 64], strides = [1, 1, 1, 1]} : vector<2x1x10x64xf32> to vector<2x1x1x64xf32>
    %55 = arith.maximumf %52, %53 : vector<2x1x1x64xf32>
    %56 = arith.maximumf %55, %54 : vector<2x1x1x64xf32>
    %c0_38 = arith.constant 0 : index
    %c2_39 = arith.constant 2 : index
    %c1_40 = arith.constant 1 : index
    %c0_41 = arith.constant 0 : index
    %57 = vector.load %arg10[%c0_38, %c2_39, %c1_40, %c0_41] : memref<2x6x6x64xf32, #tpu.memory_space<vmem>>, vector<2x1x1x64xf32>
    tpu.vector_store %arg10[%c0_38, %c2_39, %c1_40, %c0_41], %56 {strides = array<i32>} : memref<2x6x6x64xf32, #tpu.memory_space<vmem>>, vector<2x1x1x64xf32>,
    %58 = vector.extract_strided_slice %51 {offsets = [0, 0, 2, 0], sizes = [2, 1, 1, 64], strides = [1, 1, 1, 1]} : vector<2x1x10x64xf32> to vector<2x1x1x64xf32>
    %59 = vector.extract_strided_slice %51 {offsets = [0, 0, 3, 0], sizes = [2, 1, 1, 64], strides = [1, 1, 1, 1]} : vector<2x1x10x64xf32> to vector<2x1x1x64xf32>
    %60 = vector.extract_strided_slice %51 {offsets = [0, 0, 4, 0], sizes = [2, 1, 1, 64], strides = [1, 1, 1, 1]} : vector<2x1x10x64xf32> to vector<2x1x1x64xf32>
    %61 = arith.maximumf %58, %59 : vector<2x1x1x64xf32>
    %62 = arith.maximumf %61, %60 : vector<2x1x1x64xf32>
    %c0_42 = arith.constant 0 : index
    %c2_43 = arith.constant 2 : index
    %c2_44 = arith.constant 2 : index
    %c0_45 = arith.constant 0 : index
    %63 = vector.load %arg10[%c0_42, %c2_43, %c2_44, %c0_45] : memref<2x6x6x64xf32, #tpu.memory_space<vmem>>, vector<2x1x1x64xf32>
    tpu.vector_store %arg10[%c0_42, %c2_43, %c2_44, %c0_45], %62 {strides = array<i32>} : memref<2x6x6x64xf32, #tpu.memory_space<vmem>>, vector<2x1x1x64xf32>,
    %64 = vector.extract_strided_slice %51 {offsets = [0, 0, 4, 0], sizes = [2, 1, 1, 64], strides = [1, 1, 1, 1]} : vector<2x1x10x64xf32> to vector<2x1x1x64xf32>
    %65 = vector.extract_strided_slice %51 {offsets = [0, 0, 5, 0], sizes = [2, 1, 1, 64], strides = [1, 1, 1, 1]} : vector<2x1x10x64xf32> to vector<2x1x1x64xf32>
    %66 = vector.extract_strided_slice %51 {offsets = [0, 0, 6, 0], sizes = [2, 1, 1, 64], strides = [1, 1, 1, 1]} : vector<2x1x10x64xf32> to vector<2x1x1x64xf32>
    %67 = arith.maximumf %64, %65 : vector<2x1x1x64xf32>
    %68 = arith.maximumf %67, %66 : vector<2x1x1x64xf32>
    %c0_46 = arith.constant 0 : index
    %c2_47 = arith.constant 2 : index
    %c3_48 = arith.constant 3 : index
    %c0_49 = arith.constant 0 : index
    %69 = vector.load %arg10[%c0_46, %c2_47, %c3_48, %c0_49] : memref<2x6x6x64xf32, #tpu.memory_space<vmem>>, vector<2x1x1x64xf32>
    tpu.vector_store %arg10[%c0_46, %c2_47, %c3_48, %c0_49], %68 {strides = array<i32>} : memref<2x6x6x64xf32, #tpu.memory_space<vmem>>, vector<2x1x1x64xf32>,
    %70 = vector.extract_strided_slice %51 {offsets = [0, 0, 6, 0], sizes = [2, 1, 1, 64], strides = [1, 1, 1, 1]} : vector<2x1x10x64xf32> to vector<2x1x1x64xf32>
    %71 = vector.extract_strided_slice %51 {offsets = [0, 0, 7, 0], sizes = [2, 1, 1, 64], strides = [1, 1, 1, 1]} : vector<2x1x10x64xf32> to vector<2x1x1x64xf32>
    %72 = vector.extract_strided_slice %51 {offsets = [0, 0, 8, 0], sizes = [2, 1, 1, 64], strides = [1, 1, 1, 1]} : vector<2x1x10x64xf32> to vector<2x1x1x64xf32>
    %73 = arith.maximumf %70, %71 : vector<2x1x1x64xf32>
    %74 = arith.maximumf %73, %72 : vector<2x1x1x64xf32>
    %c0_50 = arith.constant 0 : index
    %c2_51 = arith.constant 2 : index
    %c4_52 = arith.constant 4 : index
    %c0_53 = arith.constant 0 : index
    %75 = vector.load %arg10[%c0_50, %c2_51, %c4_52, %c0_53] : memref<2x6x6x64xf32, #tpu.memory_space<vmem>>, vector<2x1x1x64xf32>
    tpu.vector_store %arg10[%c0_50, %c2_51, %c4_52, %c0_53], %74 {strides = array<i32>} : memref<2x6x6x64xf32, #tpu.memory_space<vmem>>, vector<2x1x1x64xf32>,
    %76 = vector.extract_strided_slice %17 {offsets = [0, 4, 0, 0], sizes = [2, 1, 10, 64], strides = [1, 1, 1, 1]} : vector<2x10x10x64xf32> to vector<2x1x10x64xf32>
    %77 = vector.extract_strided_slice %17 {offsets = [0, 5, 0, 0], sizes = [2, 1, 10, 64], strides = [1, 1, 1, 1]} : vector<2x10x10x64xf32> to vector<2x1x10x64xf32>
    %78 = vector.extract_strided_slice %17 {offsets = [0, 6, 0, 0], sizes = [2, 1, 10, 64], strides = [1, 1, 1, 1]} : vector<2x10x10x64xf32> to vector<2x1x10x64xf32>
    %79 = arith.maximumf %76, %77 : vector<2x1x10x64xf32>
    %80 = arith.maximumf %79, %78 : vector<2x1x10x64xf32>
    %81 = vector.extract_strided_slice %80 {offsets = [0, 0, 0, 0], sizes = [2, 1, 1, 64], strides = [1, 1, 1, 1]} : vector<2x1x10x64xf32> to vector<2x1x1x64xf32>
    %82 = vector.extract_strided_slice %80 {offsets = [0, 0, 1, 0], sizes = [2, 1, 1, 64], strides = [1, 1, 1, 1]} : vector<2x1x10x64xf32> to vector<2x1x1x64xf32>
    %83 = vector.extract_strided_slice %80 {offsets = [0, 0, 2, 0], sizes = [2, 1, 1, 64], strides = [1, 1, 1, 1]} : vector<2x1x10x64xf32> to vector<2x1x1x64xf32>
    %84 = arith.maximumf %81, %82 : vector<2x1x1x64xf32>
    %85 = arith.maximumf %84, %83 : vector<2x1x1x64xf32>
    %c0_54 = arith.constant 0 : index
    %c3_55 = arith.constant 3 : index
    %c1_56 = arith.constant 1 : index
    %c0_57 = arith.constant 0 : index
    %86 = vector.load %arg10[%c0_54, %c3_55, %c1_56, %c0_57] : memref<2x6x6x64xf32, #tpu.memory_space<vmem>>, vector<2x1x1x64xf32>
    tpu.vector_store %arg10[%c0_54, %c3_55, %c1_56, %c0_57], %85 {strides = array<i32>} : memref<2x6x6x64xf32, #tpu.memory_space<vmem>>, vector<2x1x1x64xf32>,
    %87 = vector.extract_strided_slice %80 {offsets = [0, 0, 2, 0], sizes = [2, 1, 1, 64], strides = [1, 1, 1, 1]} : vector<2x1x10x64xf32> to vector<2x1x1x64xf32>
    %88 = vector.extract_strided_slice %80 {offsets = [0, 0, 3, 0], sizes = [2, 1, 1, 64], strides = [1, 1, 1, 1]} : vector<2x1x10x64xf32> to vector<2x1x1x64xf32>
    %89 = vector.extract_strided_slice %80 {offsets = [0, 0, 4, 0], sizes = [2, 1, 1, 64], strides = [1, 1, 1, 1]} : vector<2x1x10x64xf32> to vector<2x1x1x64xf32>
    %90 = arith.maximumf %87, %88 : vector<2x1x1x64xf32>
    %91 = arith.maximumf %90, %89 : vector<2x1x1x64xf32>
    %c0_58 = arith.constant 0 : index
    %c3_59 = arith.constant 3 : index
    %c2_60 = arith.constant 2 : index
    %c0_61 = arith.constant 0 : index
    %92 = vector.load %arg10[%c0_58, %c3_59, %c2_60, %c0_61] : memref<2x6x6x64xf32, #tpu.memory_space<vmem>>, vector<2x1x1x64xf32>
    tpu.vector_store %arg10[%c0_58, %c3_59, %c2_60, %c0_61], %91 {strides = array<i32>} : memref<2x6x6x64xf32, #tpu.memory_space<vmem>>, vector<2x1x1x64xf32>,
    %93 = vector.extract_strided_slice %80 {offsets = [0, 0, 4, 0], sizes = [2, 1, 1, 64], strides = [1, 1, 1, 1]} : vector<2x1x10x64xf32> to vector<2x1x1x64xf32>
    %94 = vector.extract_strided_slice %80 {offsets = [0, 0, 5, 0], sizes = [2, 1, 1, 64], strides = [1, 1, 1, 1]} : vector<2x1x10x64xf32> to vector<2x1x1x64xf32>
    %95 = vector.extract_strided_slice %80 {offsets = [0, 0, 6, 0], sizes = [2, 1, 1, 64], strides = [1, 1, 1, 1]} : vector<2x1x10x64xf32> to vector<2x1x1x64xf32>
    %96 = arith.maximumf %93, %94 : vector<2x1x1x64xf32>
    %97 = arith.maximumf %96, %95 : vector<2x1x1x64xf32>
    %c0_62 = arith.constant 0 : index
    %c3_63 = arith.constant 3 : index
    %c3_64 = arith.constant 3 : index
    %c0_65 = arith.constant 0 : index
    %98 = vector.load %arg10[%c0_62, %c3_63, %c3_64, %c0_65] : memref<2x6x6x64xf32, #tpu.memory_space<vmem>>, vector<2x1x1x64xf32>
    tpu.vector_store %arg10[%c0_62, %c3_63, %c3_64, %c0_65], %97 {strides = array<i32>} : memref<2x6x6x64xf32, #tpu.memory_space<vmem>>, vector<2x1x1x64xf32>,
    %99 = vector.extract_strided_slice %80 {offsets = [0, 0, 6, 0], sizes = [2, 1, 1, 64], strides = [1, 1, 1, 1]} : vector<2x1x10x64xf32> to vector<2x1x1x64xf32>
    %100 = vector.extract_strided_slice %80 {offsets = [0, 0, 7, 0], sizes = [2, 1, 1, 64], strides = [1, 1, 1, 1]} : vector<2x1x10x64xf32> to vector<2x1x1x64xf32>
    %101 = vector.extract_strided_slice %80 {offsets = [0, 0, 8, 0], sizes = [2, 1, 1, 64], strides = [1, 1, 1, 1]} : vector<2x1x10x64xf32> to vector<2x1x1x64xf32>
    %102 = arith.maximumf %99, %100 : vector<2x1x1x64xf32>
    %103 = arith.maximumf %102, %101 : vector<2x1x1x64xf32>
    %c0_66 = arith.constant 0 : index
    %c3_67 = arith.constant 3 : index
    %c4_68 = arith.constant 4 : index
    %c0_69 = arith.constant 0 : index
    %104 = vector.load %arg10[%c0_66, %c3_67, %c4_68, %c0_69] : memref<2x6x6x64xf32, #tpu.memory_space<vmem>>, vector<2x1x1x64xf32>
    tpu.vector_store %arg10[%c0_66, %c3_67, %c4_68, %c0_69], %103 {strides = array<i32>} : memref<2x6x6x64xf32, #tpu.memory_space<vmem>>, vector<2x1x1x64xf32>,
    %105 = vector.extract_strided_slice %17 {offsets = [0, 6, 0, 0], sizes = [2, 1, 10, 64], strides = [1, 1, 1, 1]} : vector<2x10x10x64xf32> to vector<2x1x10x64xf32>
    %106 = vector.extract_strided_slice %17 {offsets = [0, 7, 0, 0], sizes = [2, 1, 10, 64], strides = [1, 1, 1, 1]} : vector<2x10x10x64xf32> to vector<2x1x10x64xf32>
    %107 = vector.extract_strided_slice %17 {offsets = [0, 8, 0, 0], sizes = [2, 1, 10, 64], strides = [1, 1, 1, 1]} : vector<2x10x10x64xf32> to vector<2x1x10x64xf32>
    %108 = arith.maximumf %105, %106 : vector<2x1x10x64xf32>
    %109 = arith.maximumf %108, %107 : vector<2x1x10x64xf32>
    %110 = vector.extract_strided_slice %109 {offsets = [0, 0, 0, 0], sizes = [2, 1, 1, 64], strides = [1, 1, 1, 1]} : vector<2x1x10x64xf32> to vector<2x1x1x64xf32>
    %111 = vector.extract_strided_slice %109 {offsets = [0, 0, 1, 0], sizes = [2, 1, 1, 64], strides = [1, 1, 1, 1]} : vector<2x1x10x64xf32> to vector<2x1x1x64xf32>
    %112 = vector.extract_strided_slice %109 {offsets = [0, 0, 2, 0], sizes = [2, 1, 1, 64], strides = [1, 1, 1, 1]} : vector<2x1x10x64xf32> to vector<2x1x1x64xf32>
    %113 = arith.maximumf %110, %111 : vector<2x1x1x64xf32>
    %114 = arith.maximumf %113, %112 : vector<2x1x1x64xf32>
    %c0_70 = arith.constant 0 : index
    %c4_71 = arith.constant 4 : index
    %c1_72 = arith.constant 1 : index
    %c0_73 = arith.constant 0 : index
    %115 = vector.load %arg10[%c0_70, %c4_71, %c1_72, %c0_73] : memref<2x6x6x64xf32, #tpu.memory_space<vmem>>, vector<2x1x1x64xf32>
    tpu.vector_store %arg10[%c0_70, %c4_71, %c1_72, %c0_73], %114 {strides = array<i32>} : memref<2x6x6x64xf32, #tpu.memory_space<vmem>>, vector<2x1x1x64xf32>,
    %116 = vector.extract_strided_slice %109 {offsets = [0, 0, 2, 0], sizes = [2, 1, 1, 64], strides = [1, 1, 1, 1]} : vector<2x1x10x64xf32> to vector<2x1x1x64xf32>
    %117 = vector.extract_strided_slice %109 {offsets = [0, 0, 3, 0], sizes = [2, 1, 1, 64], strides = [1, 1, 1, 1]} : vector<2x1x10x64xf32> to vector<2x1x1x64xf32>
    %118 = vector.extract_strided_slice %109 {offsets = [0, 0, 4, 0], sizes = [2, 1, 1, 64], strides = [1, 1, 1, 1]} : vector<2x1x10x64xf32> to vector<2x1x1x64xf32>
    %119 = arith.maximumf %116, %117 : vector<2x1x1x64xf32>
    %120 = arith.maximumf %119, %118 : vector<2x1x1x64xf32>
    %c0_74 = arith.constant 0 : index
    %c4_75 = arith.constant 4 : index
    %c2_76 = arith.constant 2 : index
    %c0_77 = arith.constant 0 : index
    %121 = vector.load %arg10[%c0_74, %c4_75, %c2_76, %c0_77] : memref<2x6x6x64xf32, #tpu.memory_space<vmem>>, vector<2x1x1x64xf32>
    tpu.vector_store %arg10[%c0_74, %c4_75, %c2_76, %c0_77], %120 {strides = array<i32>} : memref<2x6x6x64xf32, #tpu.memory_space<vmem>>, vector<2x1x1x64xf32>,
    %122 = vector.extract_strided_slice %109 {offsets = [0, 0, 4, 0], sizes = [2, 1, 1, 64], strides = [1, 1, 1, 1]} : vector<2x1x10x64xf32> to vector<2x1x1x64xf32>
    %123 = vector.extract_strided_slice %109 {offsets = [0, 0, 5, 0], sizes = [2, 1, 1, 64], strides = [1, 1, 1, 1]} : vector<2x1x10x64xf32> to vector<2x1x1x64xf32>
    %124 = vector.extract_strided_slice %109 {offsets = [0, 0, 6, 0], sizes = [2, 1, 1, 64], strides = [1, 1, 1, 1]} : vector<2x1x10x64xf32> to vector<2x1x1x64xf32>
    %125 = arith.maximumf %122, %123 : vector<2x1x1x64xf32>
    %126 = arith.maximumf %125, %124 : vector<2x1x1x64xf32>
    %c0_78 = arith.constant 0 : index
    %c4_79 = arith.constant 4 : index
    %c3_80 = arith.constant 3 : index
    %c0_81 = arith.constant 0 : index
    %127 = vector.load %arg10[%c0_78, %c4_79, %c3_80, %c0_81] : memref<2x6x6x64xf32, #tpu.memory_space<vmem>>, vector<2x1x1x64xf32>
    tpu.vector_store %arg10[%c0_78, %c4_79, %c3_80, %c0_81], %126 {strides = array<i32>} : memref<2x6x6x64xf32, #tpu.memory_space<vmem>>, vector<2x1x1x64xf32>,
    %128 = vector.extract_strided_slice %109 {offsets = [0, 0, 6, 0], sizes = [2, 1, 1, 64], strides = [1, 1, 1, 1]} : vector<2x1x10x64xf32> to vector<2x1x1x64xf32>
    %129 = vector.extract_strided_slice %109 {offsets = [0, 0, 7, 0], sizes = [2, 1, 1, 64], strides = [1, 1, 1, 1]} : vector<2x1x10x64xf32> to vector<2x1x1x64xf32>
    %130 = vector.extract_strided_slice %109 {offsets = [0, 0, 8, 0], sizes = [2, 1, 1, 64], strides = [1, 1, 1, 1]} : vector<2x1x10x64xf32> to vector<2x1x1x64xf32>
    %131 = arith.maximumf %128, %129 : vector<2x1x1x64xf32>
    %132 = arith.maximumf %131, %130 : vector<2x1x1x64xf32>
    %c0_82 = arith.constant 0 : index
    %c4_83 = arith.constant 4 : index
    %c4_84 = arith.constant 4 : index
    %c0_85 = arith.constant 0 : index
    %133 = vector.load %arg10[%c0_82, %c4_83, %c4_84, %c0_85] : memref<2x6x6x64xf32, #tpu.memory_space<vmem>>, vector<2x1x1x64xf32>
    tpu.vector_store %arg10[%c0_82, %c4_83, %c4_84, %c0_85], %132 {strides = array<i32>} : memref<2x6x6x64xf32, #tpu.memory_space<vmem>>, vector<2x1x1x64xf32>,
    %c0_86 = arith.constant 0 : index
    %c0_87 = arith.constant 0 : index
    %134 = vector.load %arg3[%c0_86, %c0_87] : memref<576x64xf32, #tpu.memory_space<vmem>>, vector<576x64xf32>
    %c0_88 = arith.constant 0 : index
    %c0_89 = arith.constant 0 : index
    %c0_90 = arith.constant 0 : index
    %c0_91 = arith.constant 0 : index
    %135 = vector.load %arg10[%c0_88, %c0_89, %c0_90, %c0_91] : memref<2x6x6x64xf32, #tpu.memory_space<vmem>>, vector<2x6x6x64xf32>
    %136 = vector.extract_strided_slice %135 {offsets = [0, 0, 0, 0], sizes = [2, 4, 4, 64], strides = [1, 1, 1, 1]} : vector<2x6x6x64xf32> to vector<2x4x4x64xf32>
    %c0_92 = arith.constant 0 : index
    %c0_93 = arith.constant 0 : index
    %c0_94 = arith.constant 0 : index
    %c0_95 = arith.constant 0 : index
    %137 = vector.load %arg13[%c0_92, %c0_93, %c0_94, %c0_95] : memref<2x4x4x576xf32, #tpu.memory_space<vmem>>, vector<2x4x4x64xf32>
    tpu.vector_store %arg13[%c0_92, %c0_93, %c0_94, %c0_95], %136 {strides = array<i32>} : memref<2x4x4x576xf32, #tpu.memory_space<vmem>>, vector<2x4x4x64xf32>,
    %138 = vector.extract_strided_slice %135 {offsets = [0, 0, 1, 0], sizes = [2, 4, 4, 64], strides = [1, 1, 1, 1]} : vector<2x6x6x64xf32> to vector<2x4x4x64xf32>
    %c0_96 = arith.constant 0 : index
    %c0_97 = arith.constant 0 : index
    %c0_98 = arith.constant 0 : index
    %c64 = arith.constant 64 : index
    %139 = vector.load %arg13[%c0_96, %c0_97, %c0_98, %c64] : memref<2x4x4x576xf32, #tpu.memory_space<vmem>>, vector<2x4x4x64xf32>
    tpu.vector_store %arg13[%c0_96, %c0_97, %c0_98, %c64], %138 {strides = array<i32>} : memref<2x4x4x576xf32, #tpu.memory_space<vmem>>, vector<2x4x4x64xf32>,
    %140 = vector.extract_strided_slice %135 {offsets = [0, 0, 2, 0], sizes = [2, 4, 4, 64], strides = [1, 1, 1, 1]} : vector<2x6x6x64xf32> to vector<2x4x4x64xf32>
    %c0_99 = arith.constant 0 : index
    %c0_100 = arith.constant 0 : index
    %c0_101 = arith.constant 0 : index
    %c128 = arith.constant 128 : index
    %141 = vector.load %arg13[%c0_99, %c0_100, %c0_101, %c128] : memref<2x4x4x576xf32, #tpu.memory_space<vmem>>, vector<2x4x4x64xf32>
    tpu.vector_store %arg13[%c0_99, %c0_100, %c0_101, %c128], %140 {strides = array<i32>} : memref<2x4x4x576xf32, #tpu.memory_space<vmem>>, vector<2x4x4x64xf32>,
    %142 = vector.extract_strided_slice %135 {offsets = [0, 1, 0, 0], sizes = [2, 4, 4, 64], strides = [1, 1, 1, 1]} : vector<2x6x6x64xf32> to vector<2x4x4x64xf32>
    %c0_102 = arith.constant 0 : index
    %c0_103 = arith.constant 0 : index
    %c0_104 = arith.constant 0 : index
    %c192 = arith.constant 192 : index
    %143 = vector.load %arg13[%c0_102, %c0_103, %c0_104, %c192] : memref<2x4x4x576xf32, #tpu.memory_space<vmem>>, vector<2x4x4x64xf32>
    tpu.vector_store %arg13[%c0_102, %c0_103, %c0_104, %c192], %142 {strides = array<i32>} : memref<2x4x4x576xf32, #tpu.memory_space<vmem>>, vector<2x4x4x64xf32>,
    %144 = vector.extract_strided_slice %135 {offsets = [0, 1, 1, 0], sizes = [2, 4, 4, 64], strides = [1, 1, 1, 1]} : vector<2x6x6x64xf32> to vector<2x4x4x64xf32>
    %c0_105 = arith.constant 0 : index
    %c0_106 = arith.constant 0 : index
    %c0_107 = arith.constant 0 : index
    %c256 = arith.constant 256 : index
    %145 = vector.load %arg13[%c0_105, %c0_106, %c0_107, %c256] : memref<2x4x4x576xf32, #tpu.memory_space<vmem>>, vector<2x4x4x64xf32>
    tpu.vector_store %arg13[%c0_105, %c0_106, %c0_107, %c256], %144 {strides = array<i32>} : memref<2x4x4x576xf32, #tpu.memory_space<vmem>>, vector<2x4x4x64xf32>,
    %146 = vector.extract_strided_slice %135 {offsets = [0, 1, 2, 0], sizes = [2, 4, 4, 64], strides = [1, 1, 1, 1]} : vector<2x6x6x64xf32> to vector<2x4x4x64xf32>
    %c0_108 = arith.constant 0 : index
    %c0_109 = arith.constant 0 : index
    %c0_110 = arith.constant 0 : index
    %c320 = arith.constant 320 : index
    %147 = vector.load %arg13[%c0_108, %c0_109, %c0_110, %c320] : memref<2x4x4x576xf32, #tpu.memory_space<vmem>>, vector<2x4x4x64xf32>
    tpu.vector_store %arg13[%c0_108, %c0_109, %c0_110, %c320], %146 {strides = array<i32>} : memref<2x4x4x576xf32, #tpu.memory_space<vmem>>, vector<2x4x4x64xf32>,
    %148 = vector.extract_strided_slice %135 {offsets = [0, 2, 0, 0], sizes = [2, 4, 4, 64], strides = [1, 1, 1, 1]} : vector<2x6x6x64xf32> to vector<2x4x4x64xf32>
    %c0_111 = arith.constant 0 : index
    %c0_112 = arith.constant 0 : index
    %c0_113 = arith.constant 0 : index
    %c384 = arith.constant 384 : index
    %149 = vector.load %arg13[%c0_111, %c0_112, %c0_113, %c384] : memref<2x4x4x576xf32, #tpu.memory_space<vmem>>, vector<2x4x4x64xf32>
    tpu.vector_store %arg13[%c0_111, %c0_112, %c0_113, %c384], %148 {strides = array<i32>} : memref<2x4x4x576xf32, #tpu.memory_space<vmem>>, vector<2x4x4x64xf32>,
    %150 = vector.extract_strided_slice %135 {offsets = [0, 2, 1, 0], sizes = [2, 4, 4, 64], strides = [1, 1, 1, 1]} : vector<2x6x6x64xf32> to vector<2x4x4x64xf32>
    %c0_114 = arith.constant 0 : index
    %c0_115 = arith.constant 0 : index
    %c0_116 = arith.constant 0 : index
    %c448 = arith.constant 448 : index
    %151 = vector.load %arg13[%c0_114, %c0_115, %c0_116, %c448] : memref<2x4x4x576xf32, #tpu.memory_space<vmem>>, vector<2x4x4x64xf32>
    tpu.vector_store %arg13[%c0_114, %c0_115, %c0_116, %c448], %150 {strides = array<i32>} : memref<2x4x4x576xf32, #tpu.memory_space<vmem>>, vector<2x4x4x64xf32>,
    %152 = vector.extract_strided_slice %135 {offsets = [0, 2, 2, 0], sizes = [2, 4, 4, 64], strides = [1, 1, 1, 1]} : vector<2x6x6x64xf32> to vector<2x4x4x64xf32>
    %c0_117 = arith.constant 0 : index
    %c0_118 = arith.constant 0 : index
    %c0_119 = arith.constant 0 : index
    %c512 = arith.constant 512 : index
    %153 = vector.load %arg13[%c0_117, %c0_118, %c0_119, %c512] : memref<2x4x4x576xf32, #tpu.memory_space<vmem>>, vector<2x4x4x64xf32>
    tpu.vector_store %arg13[%c0_117, %c0_118, %c0_119, %c512], %152 {strides = array<i32>} : memref<2x4x4x576xf32, #tpu.memory_space<vmem>>, vector<2x4x4x64xf32>,
    %c0_120 = arith.constant 0 : index
    %c0_121 = arith.constant 0 : index
    %c0_122 = arith.constant 0 : index
    %c0_123 = arith.constant 0 : index
    %154 = vector.load %arg13[%c0_120, %c0_121, %c0_122, %c0_123] : memref<2x4x4x576xf32, #tpu.memory_space<vmem>>, vector<2x4x4x576xf32>
    %155 = vector.shape_cast %154 : vector<2x4x4x576xf32> to vector<32x576xf32>
    %cst_124 = arith.constant dense<0.000000e+00> : vector<32x64xf32>
    %156 = tpu.matmul %155, %134, %cst_124 {dimension_numbers = #tpu.dot_dimension_numbers<[1], [0], [0], [1], [0, 0, 1, 1], [], []>} : vector<32x576xf32>, vector<576x64xf32>, vector<32x64xf32> -> vector<32x64xf32>
    %157 = vector.broadcast %0 : vector<1x64xf32> to vector<32x64xf32>
    %158 = arith.mulf %156, %157 : vector<32x64xf32>
    %159 = vector.broadcast %1 : vector<1x64xf32> to vector<32x64xf32>
    %160 = arith.addf %158, %159 : vector<32x64xf32>
    %cst_125 = arith.constant 0.000000e+00 : f32
    %161 = vector.broadcast %cst_125 : f32 to vector<32x64xf32>
    %162 = arith.maximumf %160, %161 : vector<32x64xf32>
    %cst_126 = arith.constant 0.000000e+00 : f32
    %163 = vector.broadcast %cst_126 : f32 to vector<2x6x6x64xf32>
    %c0_127 = arith.constant 0 : index
    %c0_128 = arith.constant 0 : index
    %c0_129 = arith.constant 0 : index
    %c0_130 = arith.constant 0 : index
    %164 = vector.load %arg11[%c0_127, %c0_128, %c0_129, %c0_130] : memref<2x6x6x64xf32, #tpu.memory_space<vmem>>, vector<2x6x6x64xf32>
    tpu.vector_store %arg11[%c0_127, %c0_128, %c0_129, %c0_130], %163 {strides = array<i32>} : memref<2x6x6x64xf32, #tpu.memory_space<vmem>>, vector<2x6x6x64xf32>,
    %165 = vector.shape_cast %162 : vector<32x64xf32> to vector<2x4x4x64xf32>
    %c0_131 = arith.constant 0 : index
    %c1_132 = arith.constant 1 : index
    %c1_133 = arith.constant 1 : index
    %c0_134 = arith.constant 0 : index
    %166 = vector.load %arg11[%c0_131, %c1_132, %c1_133, %c0_134] : memref<2x6x6x64xf32, #tpu.memory_space<vmem>>, vector<2x4x4x64xf32>
    tpu.vector_store %arg11[%c0_131, %c1_132, %c1_133, %c0_134], %165 {strides = array<i32>} : memref<2x6x6x64xf32, #tpu.memory_space<vmem>>, vector<2x4x4x64xf32>,
    %c0_135 = arith.constant 0 : index
    %c0_136 = arith.constant 0 : index
    %c0_137 = arith.constant 0 : index
    %c0_138 = arith.constant 0 : index
    %167 = vector.load %arg11[%c0_135, %c0_136, %c0_137, %c0_138] : memref<2x6x6x64xf32, #tpu.memory_space<vmem>>, vector<2x6x6x64xf32>
    %168 = vector.extract_strided_slice %167 {offsets = [0, 0, 0, 0], sizes = [2, 4, 4, 64], strides = [1, 1, 1, 1]} : vector<2x6x6x64xf32> to vector<2x4x4x64xf32>
    %c0_139 = arith.constant 0 : index
    %c0_140 = arith.constant 0 : index
    %c0_141 = arith.constant 0 : index
    %c0_142 = arith.constant 0 : index
    %169 = vector.load %arg13[%c0_139, %c0_140, %c0_141, %c0_142] : memref<2x4x4x576xf32, #tpu.memory_space<vmem>>, vector<2x4x4x64xf32>
    tpu.vector_store %arg13[%c0_139, %c0_140, %c0_141, %c0_142], %168 {strides = array<i32>} : memref<2x4x4x576xf32, #tpu.memory_space<vmem>>, vector<2x4x4x64xf32>,
    %170 = vector.extract_strided_slice %167 {offsets = [0, 0, 1, 0], sizes = [2, 4, 4, 64], strides = [1, 1, 1, 1]} : vector<2x6x6x64xf32> to vector<2x4x4x64xf32>
    %c0_143 = arith.constant 0 : index
    %c0_144 = arith.constant 0 : index
    %c0_145 = arith.constant 0 : index
    %c64_146 = arith.constant 64 : index
    %171 = vector.load %arg13[%c0_143, %c0_144, %c0_145, %c64_146] : memref<2x4x4x576xf32, #tpu.memory_space<vmem>>, vector<2x4x4x64xf32>
    tpu.vector_store %arg13[%c0_143, %c0_144, %c0_145, %c64_146], %170 {strides = array<i32>} : memref<2x4x4x576xf32, #tpu.memory_space<vmem>>, vector<2x4x4x64xf32>,
    %172 = vector.extract_strided_slice %167 {offsets = [0, 0, 2, 0], sizes = [2, 4, 4, 64], strides = [1, 1, 1, 1]} : vector<2x6x6x64xf32> to vector<2x4x4x64xf32>
    %c0_147 = arith.constant 0 : index
    %c0_148 = arith.constant 0 : index
    %c0_149 = arith.constant 0 : index
    %c128_150 = arith.constant 128 : index
    %173 = vector.load %arg13[%c0_147, %c0_148, %c0_149, %c128_150] : memref<2x4x4x576xf32, #tpu.memory_space<vmem>>, vector<2x4x4x64xf32>
    tpu.vector_store %arg13[%c0_147, %c0_148, %c0_149, %c128_150], %172 {strides = array<i32>} : memref<2x4x4x576xf32, #tpu.memory_space<vmem>>, vector<2x4x4x64xf32>,
    %174 = vector.extract_strided_slice %167 {offsets = [0, 1, 0, 0], sizes = [2, 4, 4, 64], strides = [1, 1, 1, 1]} : vector<2x6x6x64xf32> to vector<2x4x4x64xf32>
    %c0_151 = arith.constant 0 : index
    %c0_152 = arith.constant 0 : index
    %c0_153 = arith.constant 0 : index
    %c192_154 = arith.constant 192 : index
    %175 = vector.load %arg13[%c0_151, %c0_152, %c0_153, %c192_154] : memref<2x4x4x576xf32, #tpu.memory_space<vmem>>, vector<2x4x4x64xf32>
    tpu.vector_store %arg13[%c0_151, %c0_152, %c0_153, %c192_154], %174 {strides = array<i32>} : memref<2x4x4x576xf32, #tpu.memory_space<vmem>>, vector<2x4x4x64xf32>,
    %176 = vector.extract_strided_slice %167 {offsets = [0, 1, 1, 0], sizes = [2, 4, 4, 64], strides = [1, 1, 1, 1]} : vector<2x6x6x64xf32> to vector<2x4x4x64xf32>
    %c0_155 = arith.constant 0 : index
    %c0_156 = arith.constant 0 : index
    %c0_157 = arith.constant 0 : index
    %c256_158 = arith.constant 256 : index
    %177 = vector.load %arg13[%c0_155, %c0_156, %c0_157, %c256_158] : memref<2x4x4x576xf32, #tpu.memory_space<vmem>>, vector<2x4x4x64xf32>
    tpu.vector_store %arg13[%c0_155, %c0_156, %c0_157, %c256_158], %176 {strides = array<i32>} : memref<2x4x4x576xf32, #tpu.memory_space<vmem>>, vector<2x4x4x64xf32>,
    %178 = vector.extract_strided_slice %167 {offsets = [0, 1, 2, 0], sizes = [2, 4, 4, 64], strides = [1, 1, 1, 1]} : vector<2x6x6x64xf32> to vector<2x4x4x64xf32>
    %c0_159 = arith.constant 0 : index
    %c0_160 = arith.constant 0 : index
    %c0_161 = arith.constant 0 : index
    %c320_162 = arith.constant 320 : index
    %179 = vector.load %arg13[%c0_159, %c0_160, %c0_161, %c320_162] : memref<2x4x4x576xf32, #tpu.memory_space<vmem>>, vector<2x4x4x64xf32>
    tpu.vector_store %arg13[%c0_159, %c0_160, %c0_161, %c320_162], %178 {strides = array<i32>} : memref<2x4x4x576xf32, #tpu.memory_space<vmem>>, vector<2x4x4x64xf32>,
    %180 = vector.extract_strided_slice %167 {offsets = [0, 2, 0, 0], sizes = [2, 4, 4, 64], strides = [1, 1, 1, 1]} : vector<2x6x6x64xf32> to vector<2x4x4x64xf32>
    %c0_163 = arith.constant 0 : index
    %c0_164 = arith.constant 0 : index
    %c0_165 = arith.constant 0 : index
    %c384_166 = arith.constant 384 : index
    %181 = vector.load %arg13[%c0_163, %c0_164, %c0_165, %c384_166] : memref<2x4x4x576xf32, #tpu.memory_space<vmem>>, vector<2x4x4x64xf32>
    tpu.vector_store %arg13[%c0_163, %c0_164, %c0_165, %c384_166], %180 {strides = array<i32>} : memref<2x4x4x576xf32, #tpu.memory_space<vmem>>, vector<2x4x4x64xf32>,
    %182 = vector.extract_strided_slice %167 {offsets = [0, 2, 1, 0], sizes = [2, 4, 4, 64], strides = [1, 1, 1, 1]} : vector<2x6x6x64xf32> to vector<2x4x4x64xf32>
    %c0_167 = arith.constant 0 : index
    %c0_168 = arith.constant 0 : index
    %c0_169 = arith.constant 0 : index
    %c448_170 = arith.constant 448 : index
    %183 = vector.load %arg13[%c0_167, %c0_168, %c0_169, %c448_170] : memref<2x4x4x576xf32, #tpu.memory_space<vmem>>, vector<2x4x4x64xf32>
    tpu.vector_store %arg13[%c0_167, %c0_168, %c0_169, %c448_170], %182 {strides = array<i32>} : memref<2x4x4x576xf32, #tpu.memory_space<vmem>>, vector<2x4x4x64xf32>,
    %184 = vector.extract_strided_slice %167 {offsets = [0, 2, 2, 0], sizes = [2, 4, 4, 64], strides = [1, 1, 1, 1]} : vector<2x6x6x64xf32> to vector<2x4x4x64xf32>
    %c0_171 = arith.constant 0 : index
    %c0_172 = arith.constant 0 : index
    %c0_173 = arith.constant 0 : index
    %c512_174 = arith.constant 512 : index
    %185 = vector.load %arg13[%c0_171, %c0_172, %c0_173, %c512_174] : memref<2x4x4x576xf32, #tpu.memory_space<vmem>>, vector<2x4x4x64xf32>
    tpu.vector_store %arg13[%c0_171, %c0_172, %c0_173, %c512_174], %184 {strides = array<i32>} : memref<2x4x4x576xf32, #tpu.memory_space<vmem>>, vector<2x4x4x64xf32>,
    %c0_175 = arith.constant 0 : index
    %c0_176 = arith.constant 0 : index
    %c0_177 = arith.constant 0 : index
    %c0_178 = arith.constant 0 : index
    %186 = vector.load %arg13[%c0_175, %c0_176, %c0_177, %c0_178] : memref<2x4x4x576xf32, #tpu.memory_space<vmem>>, vector<2x4x4x576xf32>
    %187 = vector.shape_cast %186 : vector<2x4x4x576xf32> to vector<32x576xf32>
    %cst_179 = arith.constant dense<0.000000e+00> : vector<32x64xf32>
    %188 = tpu.matmul %187, %134, %cst_179 {dimension_numbers = #tpu.dot_dimension_numbers<[1], [0], [0], [1], [0, 0, 1, 1], [], []>} : vector<32x576xf32>, vector<576x64xf32>, vector<32x64xf32> -> vector<32x64xf32>
    %189 = vector.broadcast %0 : vector<1x64xf32> to vector<32x64xf32>
    %190 = arith.mulf %188, %189 : vector<32x64xf32>
    %191 = vector.broadcast %1 : vector<1x64xf32> to vector<32x64xf32>
    %192 = arith.addf %190, %191 : vector<32x64xf32>
    %c0_180 = arith.constant 0 : index
    %c1_181 = arith.constant 1 : index
    %c1_182 = arith.constant 1 : index
    %c0_183 = arith.constant 0 : index
    %193 = vector.load %arg10[%c0_180, %c1_181, %c1_182, %c0_183] : memref<2x6x6x64xf32, #tpu.memory_space<vmem>>, vector<2x4x4x64xf32>
    %194 = vector.shape_cast %193 : vector<2x4x4x64xf32> to vector<32x64xf32>
    %195 = arith.addf %192, %194 : vector<32x64xf32>
    %cst_184 = arith.constant 0.000000e+00 : f32
    %196 = vector.broadcast %cst_184 : f32 to vector<32x64xf32>
    %197 = arith.maximumf %195, %196 : vector<32x64xf32>
    %cst_185 = arith.constant 0.000000e+00 : f32
    %198 = vector.broadcast %cst_185 : f32 to vector<2x6x6x64xf32>
    %c0_186 = arith.constant 0 : index
    %c0_187 = arith.constant 0 : index
    %c0_188 = arith.constant 0 : index
    %c0_189 = arith.constant 0 : index
    %199 = vector.load %arg12[%c0_186, %c0_187, %c0_188, %c0_189] : memref<2x6x6x64xf32, #tpu.memory_space<vmem>>, vector<2x6x6x64xf32>
    tpu.vector_store %arg12[%c0_186, %c0_187, %c0_188, %c0_189], %198 {strides = array<i32>} : memref<2x6x6x64xf32, #tpu.memory_space<vmem>>, vector<2x6x6x64xf32>,
    %200 = vector.shape_cast %197 : vector<32x64xf32> to vector<2x4x4x64xf32>
    %c0_190 = arith.constant 0 : index
    %c1_191 = arith.constant 1 : index
    %c1_192 = arith.constant 1 : index
    %c0_193 = arith.constant 0 : index
    %201 = vector.load %arg12[%c0_190, %c1_191, %c1_192, %c0_193] : memref<2x6x6x64xf32, #tpu.memory_space<vmem>>, vector<2x4x4x64xf32>
    tpu.vector_store %arg12[%c0_190, %c1_191, %c1_192, %c0_193], %200 {strides = array<i32>} : memref<2x6x6x64xf32, #tpu.memory_space<vmem>>, vector<2x4x4x64xf32>,
    %c0_194 = arith.constant 0 : index
    %c0_195 = arith.constant 0 : index
    %c0_196 = arith.constant 0 : index
    %c0_197 = arith.constant 0 : index
    %202 = vector.load %arg12[%c0_194, %c0_195, %c0_196, %c0_197] : memref<2x6x6x64xf32, #tpu.memory_space<vmem>>, vector<2x6x6x64xf32>
    %cst_198 = arith.constant 0.000000e+00 : f32
    %203 = vector.broadcast %cst_198 : f32 to vector<2x128xf32>
    %204 = vector.extract_strided_slice %202 {offsets = [0, 0, 0, 0], sizes = [2, 1, 6, 64], strides = [1, 1, 1, 1]} : vector<2x6x6x64xf32> to vector<2x1x6x64xf32>
    %205 = vector.extract_strided_slice %202 {offsets = [0, 1, 0, 0], sizes = [2, 1, 6, 64], strides = [1, 1, 1, 1]} : vector<2x6x6x64xf32> to vector<2x1x6x64xf32>
    %206 = arith.addf %204, %205 : vector<2x1x6x64xf32>
    %207 = vector.extract_strided_slice %202 {offsets = [0, 2, 0, 0], sizes = [2, 1, 6, 64], strides = [1, 1, 1, 1]} : vector<2x6x6x64xf32> to vector<2x1x6x64xf32>
    %208 = arith.addf %206, %207 : vector<2x1x6x64xf32>
    %209 = vector.extract_strided_slice %208 {offsets = [0, 0, 0, 0], sizes = [2, 1, 1, 64], strides = [1, 1, 1, 1]} : vector<2x1x6x64xf32> to vector<2x1x1x64xf32>
    %210 = vector.extract_strided_slice %208 {offsets = [0, 0, 1, 0], sizes = [2, 1, 1, 64], strides = [1, 1, 1, 1]} : vector<2x1x6x64xf32> to vector<2x1x1x64xf32>
    %211 = arith.addf %209, %210 : vector<2x1x1x64xf32>
    %212 = vector.extract_strided_slice %208 {offsets = [0, 0, 2, 0], sizes = [2, 1, 1, 64], strides = [1, 1, 1, 1]} : vector<2x1x6x64xf32> to vector<2x1x1x64xf32>
    %213 = arith.addf %211, %212 : vector<2x1x1x64xf32>
    %cst_199 = arith.constant 0.111111112 : f32
    %214 = vector.broadcast %cst_199 : f32 to vector<2x1x1x64xf32>
    %215 = arith.mulf %213, %214 : vector<2x1x1x64xf32>
    %216 = vector.shape_cast %215 : vector<2x1x1x64xf32> to vector<2x64xf32>
    %c0_200 = arith.constant 0 : index
    %c0_201 = arith.constant 0 : index
    %c0_202 = arith.constant 0 : index
    %217 = vector.load %arg6[%c0_200, %c0_201, %c0_202] : memref<4x64x128xf32, #tpu.memory_space<vmem>>, vector<1x64x128xf32>
    %218 = vector.shape_cast %217 : vector<1x64x128xf32> to vector<64x128xf32>
    %cst_203 = arith.constant dense<0.000000e+00> : vector<2x128xf32>
    %219 = tpu.matmul %216, %218, %cst_203 {dimension_numbers = #tpu.dot_dimension_numbers<[1], [0], [0], [1], [0, 0, 1, 1], [], []>} : vector<2x64xf32>, vector<64x128xf32>, vector<2x128xf32> -> vector<2x128xf32>
    %220 = arith.addf %203, %219 : vector<2x128xf32>
    %221 = vector.extract_strided_slice %208 {offsets = [0, 0, 2, 0], sizes = [2, 1, 1, 64], strides = [1, 1, 1, 1]} : vector<2x1x6x64xf32> to vector<2x1x1x64xf32>
    %222 = vector.extract_strided_slice %208 {offsets = [0, 0, 3, 0], sizes = [2, 1, 1, 64], strides = [1, 1, 1, 1]} : vector<2x1x6x64xf32> to vector<2x1x1x64xf32>
    %223 = arith.addf %221, %222 : vector<2x1x1x64xf32>
    %224 = vector.extract_strided_slice %208 {offsets = [0, 0, 4, 0], sizes = [2, 1, 1, 64], strides = [1, 1, 1, 1]} : vector<2x1x6x64xf32> to vector<2x1x1x64xf32>
    %225 = arith.addf %223, %224 : vector<2x1x1x64xf32>
    %cst_204 = arith.constant 0.111111112 : f32
    %226 = vector.broadcast %cst_204 : f32 to vector<2x1x1x64xf32>
    %227 = arith.mulf %225, %226 : vector<2x1x1x64xf32>
    %228 = vector.shape_cast %227 : vector<2x1x1x64xf32> to vector<2x64xf32>
    %c1_205 = arith.constant 1 : index
    %c0_206 = arith.constant 0 : index
    %c0_207 = arith.constant 0 : index
    %229 = vector.load %arg6[%c1_205, %c0_206, %c0_207] : memref<4x64x128xf32, #tpu.memory_space<vmem>>, vector<1x64x128xf32>
    %230 = vector.shape_cast %229 : vector<1x64x128xf32> to vector<64x128xf32>
    %cst_208 = arith.constant dense<0.000000e+00> : vector<2x128xf32>
    %231 = tpu.matmul %228, %230, %cst_208 {dimension_numbers = #tpu.dot_dimension_numbers<[1], [0], [0], [1], [0, 0, 1, 1], [], []>} : vector<2x64xf32>, vector<64x128xf32>, vector<2x128xf32> -> vector<2x128xf32>
    %232 = arith.addf %220, %231 : vector<2x128xf32>
    %233 = vector.extract_strided_slice %202 {offsets = [0, 2, 0, 0], sizes = [2, 1, 6, 64], strides = [1, 1, 1, 1]} : vector<2x6x6x64xf32> to vector<2x1x6x64xf32>
    %234 = vector.extract_strided_slice %202 {offsets = [0, 3, 0, 0], sizes = [2, 1, 6, 64], strides = [1, 1, 1, 1]} : vector<2x6x6x64xf32> to vector<2x1x6x64xf32>
    %235 = arith.addf %233, %234 : vector<2x1x6x64xf32>
    %236 = vector.extract_strided_slice %202 {offsets = [0, 4, 0, 0], sizes = [2, 1, 6, 64], strides = [1, 1, 1, 1]} : vector<2x6x6x64xf32> to vector<2x1x6x64xf32>
    %237 = arith.addf %235, %236 : vector<2x1x6x64xf32>
    %238 = vector.extract_strided_slice %237 {offsets = [0, 0, 0, 0], sizes = [2, 1, 1, 64], strides = [1, 1, 1, 1]} : vector<2x1x6x64xf32> to vector<2x1x1x64xf32>
    %239 = vector.extract_strided_slice %237 {offsets = [0, 0, 1, 0], sizes = [2, 1, 1, 64], strides = [1, 1, 1, 1]} : vector<2x1x6x64xf32> to vector<2x1x1x64xf32>
    %240 = arith.addf %238, %239 : vector<2x1x1x64xf32>
    %241 = vector.extract_strided_slice %237 {offsets = [0, 0, 2, 0], sizes = [2, 1, 1, 64], strides = [1, 1, 1, 1]} : vector<2x1x6x64xf32> to vector<2x1x1x64xf32>
    %242 = arith.addf %240, %241 : vector<2x1x1x64xf32>
    %cst_209 = arith.constant 0.111111112 : f32
    %243 = vector.broadcast %cst_209 : f32 to vector<2x1x1x64xf32>
    %244 = arith.mulf %242, %243 : vector<2x1x1x64xf32>
    %245 = vector.shape_cast %244 : vector<2x1x1x64xf32> to vector<2x64xf32>
    %c2_210 = arith.constant 2 : index
    %c0_211 = arith.constant 0 : index
    %c0_212 = arith.constant 0 : index
    %246 = vector.load %arg6[%c2_210, %c0_211, %c0_212] : memref<4x64x128xf32, #tpu.memory_space<vmem>>, vector<1x64x128xf32>
    %247 = vector.shape_cast %246 : vector<1x64x128xf32> to vector<64x128xf32>
    %cst_213 = arith.constant dense<0.000000e+00> : vector<2x128xf32>
    %248 = tpu.matmul %245, %247, %cst_213 {dimension_numbers = #tpu.dot_dimension_numbers<[1], [0], [0], [1], [0, 0, 1, 1], [], []>} : vector<2x64xf32>, vector<64x128xf32>, vector<2x128xf32> -> vector<2x128xf32>
    %249 = arith.addf %232, %248 : vector<2x128xf32>
    %250 = vector.extract_strided_slice %237 {offsets = [0, 0, 2, 0], sizes = [2, 1, 1, 64], strides = [1, 1, 1, 1]} : vector<2x1x6x64xf32> to vector<2x1x1x64xf32>
    %251 = vector.extract_strided_slice %237 {offsets = [0, 0, 3, 0], sizes = [2, 1, 1, 64], strides = [1, 1, 1, 1]} : vector<2x1x6x64xf32> to vector<2x1x1x64xf32>
    %252 = arith.addf %250, %251 : vector<2x1x1x64xf32>
    %253 = vector.extract_strided_slice %237 {offsets = [0, 0, 4, 0], sizes = [2, 1, 1, 64], strides = [1, 1, 1, 1]} : vector<2x1x6x64xf32> to vector<2x1x1x64xf32>
    %254 = arith.addf %252, %253 : vector<2x1x1x64xf32>
    %cst_214 = arith.constant 0.111111112 : f32
    %255 = vector.broadcast %cst_214 : f32 to vector<2x1x1x64xf32>
    %256 = arith.mulf %254, %255 : vector<2x1x1x64xf32>
    %257 = vector.shape_cast %256 : vector<2x1x1x64xf32> to vector<2x64xf32>
    %c3_215 = arith.constant 3 : index
    %c0_216 = arith.constant 0 : index
    %c0_217 = arith.constant 0 : index
    %258 = vector.load %arg6[%c3_215, %c0_216, %c0_217] : memref<4x64x128xf32, #tpu.memory_space<vmem>>, vector<1x64x128xf32>
    %259 = vector.shape_cast %258 : vector<1x64x128xf32> to vector<64x128xf32>
    %cst_218 = arith.constant dense<0.000000e+00> : vector<2x128xf32>
    %260 = tpu.matmul %257, %259, %cst_218 {dimension_numbers = #tpu.dot_dimension_numbers<[1], [0], [0], [1], [0, 0, 1, 1], [], []>} : vector<2x64xf32>, vector<64x128xf32>, vector<2x128xf32> -> vector<2x128xf32>
    %261 = arith.addf %249, %260 : vector<2x128xf32>
    %c0_219 = arith.constant 0 : index
    %c0_220 = arith.constant 0 : index
    %262 = vector.load %arg7[%c0_219, %c0_220] : memref<1x128xf32, #tpu.memory_space<vmem>>, vector<1x128xf32>
    %263 = vector.broadcast %262 : vector<1x128xf32> to vector<2x128xf32>
    %264 = arith.addf %261, %263 : vector<2x128xf32>
    %c0_221 = arith.constant 0 : index
    %c0_222 = arith.constant 0 : index
    %265 = vector.load %arg8[%c0_221, %c0_222] : memref<2x128xf32, #tpu.memory_space<vmem>>, vector<2x128xf32>
    tpu.vector_store %arg8[%c0_221, %c0_222], %264 {strides = array<i32>} : memref<2x128xf32, #tpu.memory_space<vmem>>, vector<2x128xf32>,
    return
  }
  func.func @transform_0(%arg0: i32) -> (i32, i32) {
    %c0_i32 = arith.constant 0 : i32
    %c0_i32_0 = arith.constant 0 : i32
    %c0_i32_1 = arith.constant 0 : i32
    return %c0_i32, %c0_i32_0 : i32, i32
  }
  func.func @transform_1(%arg0: i32) -> (i32, i32) {
    %c0_i32 = arith.constant 0 : i32
    %c0_i32_0 = arith.constant 0 : i32
    %c0_i32_1 = arith.constant 0 : i32
    return %c0_i32, %c0_i32_0 : i32, i32
  }
  func.func @transform_2(%arg0: i32) -> (i32, i32) {
    %c0_i32 = arith.constant 0 : i32
    %c0_i32_0 = arith.constant 0 : i32
    %c0_i32_1 = arith.constant 0 : i32
    return %c0_i32, %c0_i32_0 : i32, i32
  }
  func.func @transform_3(%arg0: i32) -> (i32, i32) {
    %c0_i32 = arith.constant 0 : i32
    %c0_i32_0 = arith.constant 0 : i32
    %c0_i32_1 = arith.constant 0 : i32
    return %c0_i32, %c0_i32_0 : i32, i32
  }
  func.func @transform_4(%arg0: i32) -> (i32, i32) {
    %c0_i32 = arith.constant 0 : i32
    %c0_i32_0 = arith.constant 0 : i32
    %c0_i32_1 = arith.constant 0 : i32
    return %c0_i32, %c0_i32_0 : i32, i32
  }
  func.func @transform_5(%arg0: i32) -> (i32, i32, i32) {
    %c0_i32 = arith.constant 0 : i32
    %c0_i32_0 = arith.constant 0 : i32
    %c0_i32_1 = arith.constant 0 : i32
    %c0_i32_2 = arith.constant 0 : i32
    return %c0_i32, %c0_i32_0, %c0_i32_1 : i32, i32, i32
  }
  func.func @transform_6(%arg0: i32) -> (i32, i32) {
    %c0_i32 = arith.constant 0 : i32
    %c0_i32_0 = arith.constant 0 : i32
    %c0_i32_1 = arith.constant 0 : i32
    return %c0_i32, %c0_i32_0 : i32, i32
  }
  func.func @transform_7(%arg0: i32) -> (i32, i32) {
    %c0_i32 = arith.constant 0 : i32
    %c0_i32_0 = arith.constant 0 : i32
    %c0_i32_1 = arith.constant 0 : i32
    return %c0_i32, %c0_i32_0 : i32, i32
  }
}

</mosaic_0001>

<llo_original>
// kernel: tpu_custom_call.1
$region0: #{tpu_custom_call.1}
  #allocation0 [shape = 'u32[]', space=smem, size = 0x4, offset = 0x4, fixed_abs, tag = 'smem constant byte address 0x4 - core index']
  #allocation1 [shape = 'u32[72,128]{1,0:T(1,128)}', space=vmem, size = 0x9000, scoped, tag = 'internal scratch']
  #allocation2 [shape = 'f32[2,10,10,64]{3,2,1,0:T(8,128)}', space=vmem, size = 0x28000, scoped, tag = 'scratch operand']
  #allocation3 [shape = 'f32[2,6,6,64]{3,2,1,0:T(8,128)}', space=vmem, size = 0xc000, scoped, tag = 'scratch operand']
  #allocation4 [shape = 'f32[2,6,6,64]{3,2,1,0:T(8,128)}', space=vmem, size = 0xc000, scoped, tag = 'scratch operand']
  #allocation5 [shape = 'f32[2,6,6,64]{3,2,1,0:T(8,128)}', space=vmem, size = 0xc000, scoped, tag = 'scratch operand']
  #allocation6 [shape = 'f32[2,4,4,576]{3,2,1,0:T(4,128)}', space=vmem, size = 0x14000, scoped, tag = 'scratch operand']
  %s0 = inlined_call_operand.vmem [shape: f32[128,256], index: 0, kind: input, shape index: {}]
  %s1 = inlined_call_operand.vmem [shape: f32[256,64], index: 1, kind: input, shape index: {}]
  %s2 = inlined_call_operand.vmem [shape: f32[576,64], index: 2, kind: input, shape index: {}]
  %s3 = inlined_call_operand.vmem [shape: f32[1,64], index: 3, kind: input, shape index: {}]
  %s4 = inlined_call_operand.vmem [shape: f32[1,64], index: 4, kind: input, shape index: {}]
  %s5 = inlined_call_operand.vmem [shape: f32[4,64,128], index: 5, kind: input, shape index: {}]
  %s6 = inlined_call_operand.vmem [shape: f32[1,128], index: 6, kind: input, shape index: {}]
  %s7 = inlined_call_operand.hbm [shape: f32[2,128], index: 7, kind: output, shape index: {}]
  %s8 = sld [smem:[#allocation0]]
  $region38: #{tpu_custom_call.1} parent=0
    _
  %s10 = ssub.s32 1, %s8
  %s11 = scalar_select 0, %s10, %s8
  $region1: #{tpu_custom_call.1} parent=0
    #allocation7 [shape = 'u8[1024]{0}', space=vmem, size = 0x400, scoped, tag = 'output window, operand 0, single buffered']
    #allocation8 [shape = 's32[1]{0}', space=sflag, size = 0x4, scoped, tag = 'scoped memory for tpu_custom_call.1']
    %12 = vsyncpa [#allocation8], 0
    // Predicated region
    $region2: #{tpu_custom_call.1} parent=1 // pred_check
      _
    $region3: #{tpu_custom_call.1} parent=1 // pred_check_branch
      %14 = sbr.rel (0) target = $region5
    $region4: #{tpu_custom_call.1} parent=1 // pred_region
      _
    $region5: #{tpu_custom_call.1} parent=1 // pred_fallthru
      _
    // Predicated region
    $region6: #{tpu_custom_call.1} parent=1 // pred_check
      _
    $region7: #{tpu_custom_call.1} parent=1 // pred_check_branch
      %16 = sbr.rel (0) target = $region9
    $region8: #{tpu_custom_call.1} parent=1 // pred_region
      _
    $region9: #{tpu_custom_call.1} parent=1 // pred_fallthru
      _
    // Predicated region
    $region10: #{tpu_custom_call.1} parent=1 // pred_check
      _
    $region11: #{tpu_custom_call.1} parent=1 // pred_check_branch
      %18 = sbr.rel (0) target = $region13
    $region12: #{tpu_custom_call.1} parent=1 // pred_region
      _
    $region13: #{tpu_custom_call.1} parent=1 // pred_fallthru
      _
    // Predicated region
    $region14: #{tpu_custom_call.1} parent=1 // pred_check
      _
    $region15: #{tpu_custom_call.1} parent=1 // pred_check_branch
      %20 = sbr.rel (0) target = $region17
    $region16: #{tpu_custom_call.1} parent=1 // pred_region
      _
    $region17: #{tpu_custom_call.1} parent=1 // pred_fallthru
      _
    // Predicated region
    $region18: #{tpu_custom_call.1} parent=1 // pred_check
      _
    $region19: #{tpu_custom_call.1} parent=1 // pred_check_branch
      %22 = sbr.rel (0) target = $region21
    $region20: #{tpu_custom_call.1} parent=1 // pred_region
      _
    $region21: #{tpu_custom_call.1} parent=1 // pred_fallthru
      _
    // Predicated region
    $region22: #{tpu_custom_call.1} parent=1 // pred_check
      _
    $region23: #{tpu_custom_call.1} parent=1 // pred_check_branch
      %24 = sbr.rel (0) target = $region25
    $region24: #{tpu_custom_call.1} parent=1 // pred_region
      _
    $region25: #{tpu_custom_call.1} parent=1 // pred_fallthru
      _
    // Predicated region
    $region26: #{tpu_custom_call.1} parent=1 // pred_check
      _
    $region27: #{tpu_custom_call.1} parent=1 // pred_check_branch
      %26 = sbr.rel (0) target = $region29
    $region28: #{tpu_custom_call.1} parent=1 // pred_region
      _
    $region29: #{tpu_custom_call.1} parent=1 // pred_fallthru
      _
    %v27 = vld [vmem:[%s3] sm:$0x1]
    %v28 = vld [vmem:[%s4] sm:$0x1]
    %v29 = vld [vmem:[%s0] sm:$0xff]
    %v30 = vld [vmem:[%s0 + $0x8] sm:$0xff]
    %v31 = vld [vmem:[%s0 + $0x10] sm:$0xff]
    %v32 = vld [vmem:[%s0 + $0x18] sm:$0xff]
    %v33 = vld [vmem:[%s0 + $0x20] sm:$0xff]
    %v34 = vld [vmem:[%s0 + $0x28] sm:$0xff]
    %v35 = vld [vmem:[%s0 + $0x30] sm:$0xff]
    %v36 = vld [vmem:[%s0 + $0x38] sm:$0xff]
    %v37 = vld [vmem:[%s0 + $0x40] sm:$0xff]
    %v38 = vld [vmem:[%s0 + $0x48] sm:$0xff]
    %v39 = vld [vmem:[%s0 + $0x50] sm:$0xff]
    %v40 = vld [vmem:[%s0 + $0x58] sm:$0xff]
    %v41 = vld [vmem:[%s0 + $0x60] sm:$0xff]
    %v42 = vld [vmem:[%s0 + $0x68] sm:$0xff]
    %v43 = vld [vmem:[%s0 + $0x70] sm:$0xff]
    %v44 = vld [vmem:[%s0 + $0x78] sm:$0xff]
    %v45 = vld [vmem:[%s0 + $0x80] sm:$0xff]
    %v46 = vld [vmem:[%s0 + $0x88] sm:$0xff]
    %v47 = vld [vmem:[%s0 + $0x90] sm:$0xff]
    %v48 = vld [vmem:[%s0 + $0x98] sm:$0xff]
    %v49 = vld [vmem:[%s0 + $0xa0] sm:$0xff]
    %v50 = vld [vmem:[%s0 + $0xa8] sm:$0xff]
    %v51 = vld [vmem:[%s0 + $0xb0] sm:$0xff]
    %v52 = vld [vmem:[%s0 + $0xb8] sm:$0xff]
    %v53 = vld [vmem:[%s0 + $0xc0] sm:$0xff]
    %v54 = vld [vmem:[%s0 + $0xc8] sm:$0xff]
    %v55 = vld [vmem:[%s0 + $0xd0] sm:$0xff]
    %v56 = vld [vmem:[%s0 + $0xd8] sm:$0xff]
    %v57 = vld [vmem:[%s0 + $0xe0] sm:$0xff]
    %v58 = vld [vmem:[%s0 + $0xe8] sm:$0xff]
    %v59 = vld [vmem:[%s0 + $0xf0] sm:$0xff]
    %v60 = vld [vmem:[%s0 + $0xf8] sm:$0xff]
    %v61 = vld [vmem:[%s1] sm:$0xff]
    %v62 = vld [vmem:[%s1 + $0x8] sm:$0xff]
    %v63 = vld [vmem:[%s1 + $0x10] sm:$0xff]
    %v64 = vld [vmem:[%s1 + $0x18] sm:$0xff]
    %v65 = vld [vmem:[%s1 + $0x20] sm:$0xff]
    %v66 = vld [vmem:[%s1 + $0x28] sm:$0xff]
    %v67 = vld [vmem:[%s1 + $0x30] sm:$0xff]
    %v68 = vld [vmem:[%s1 + $0x38] sm:$0xff]
    %v69 = vld [vmem:[%s1 + $0x40] sm:$0xff]
    %v70 = vld [vmem:[%s1 + $0x48] sm:$0xff]
    %v71 = vld [vmem:[%s1 + $0x50] sm:$0xff]
    %v72 = vld [vmem:[%s1 + $0x58] sm:$0xff]
    %v73 = vld [vmem:[%s1 + $0x60] sm:$0xff]
    %v74 = vld [vmem:[%s1 + $0x68] sm:$0xff]
    %v75 = vld [vmem:[%s1 + $0x70] sm:$0xff]
    %v76 = vld [vmem:[%s1 + $0x78] sm:$0xff]
    %v77 = vld [vmem:[%s1 + $0x80] sm:$0xff]
    %v78 = vld [vmem:[%s1 + $0x88] sm:$0xff]
    %v79 = vld [vmem:[%s1 + $0x90] sm:$0xff]
    %v80 = vld [vmem:[%s1 + $0x98] sm:$0xff]
    %v81 = vld [vmem:[%s1 + $0xa0] sm:$0xff]
    %v82 = vld [vmem:[%s1 + $0xa8] sm:$0xff]
    %v83 = vld [vmem:[%s1 + $0xb0] sm:$0xff]
    %v84 = vld [vmem:[%s1 + $0xb8] sm:$0xff]
    %v85 = vld [vmem:[%s1 + $0xc0] sm:$0xff]
    %v86 = vld [vmem:[%s1 + $0xc8] sm:$0xff]
    %v87 = vld [vmem:[%s1 + $0xd0] sm:$0xff]
    %v88 = vld [vmem:[%s1 + $0xd8] sm:$0xff]
    %v89 = vld [vmem:[%s1 + $0xe0] sm:$0xff]
    %v90 = vld [vmem:[%s1 + $0xe8] sm:$0xff]
    %v91 = vld [vmem:[%s1 + $0xf0] sm:$0xff]
    %v92 = vld [vmem:[%s1 + $0xf8] sm:$0xff]
    %93 = vmatpush.msra.mxu0 %v76
    %94 = vmatpush.msra.mxu0 %v75
    %95 = vmatpush.msra.mxu0 %v74
    %96 = vmatpush.msra.mxu0 %v73
    %97 = vmatpush.msra.mxu0 %v72
    %98 = vmatpush.msra.mxu0 %v71
    %99 = vmatpush.msra.mxu0 %v70
    %100 = vmatpush.msra.mxu0 %v69
    %101 = vmatpush.msra.mxu0 %v68
    %102 = vmatpush.msra.mxu0 %v67
    %103 = vmatpush.msra.mxu0 %v66
    %104 = vmatpush.msra.mxu0 %v65
    %105 = vmatpush.msra.mxu0 %v64
    %106 = vmatpush.msra.mxu0 %v63
    %107 = vmatpush.msra.mxu0 %v62
    %108 = vmatpush.msra.mxu0 %v61
    %109 = vmatmul.f32.gmra.mxu0 %v29
    %v110 = vpop.f32.mrf.mxu0
    %v111 = vadd.f32 0.0, %v110
    %112 = vmatmul.f32.gmra.mxu0 %v31
    %v113 = vpop.f32.mrf.mxu0
    %v114 = vadd.f32 0.0, %v113
    %115 = vmatmul.f32.gmra.mxu0 %v33
    %v116 = vpop.f32.mrf.mxu0
    %v117 = vadd.f32 0.0, %v116
    %118 = vmatmul.f32.gmra.mxu0 %v35
    %v119 = vpop.f32.mrf.mxu0
    %v120 = vadd.f32 0.0, %v119
    %121 = vmatmul.f32.gmra.mxu0 %v37
    %v122 = vpop.f32.mrf.mxu0
    %v123 = vadd.f32 0.0, %v122
    %124 = vmatmul.f32.gmra.mxu0 %v39
    %v125 = vpop.f32.mrf.mxu0
    %v126 = vadd.f32 0.0, %v125
    %127 = vmatmul.f32.gmra.mxu0 %v41
    %v128 = vpop.f32.mrf.mxu0
    %v129 = vadd.f32 0.0, %v128
    %130 = vmatmul.f32.gmra.mxu0 %v43
    %v131 = vpop.f32.mrf.mxu0
    %v132 = vadd.f32 0.0, %v131
    %133 = vmatmul.f32.gmra.mxu0 %v45
    %v134 = vpop.f32.mrf.mxu0
    %v135 = vadd.f32 0.0, %v134
    %136 = vmatmul.f32.gmra.mxu0 %v47
    %v137 = vpop.f32.mrf.mxu0
    %v138 = vadd.f32 0.0, %v137
    %139 = vmatmul.f32.gmra.mxu0 %v49
    %v140 = vpop.f32.mrf.mxu0
    %v141 = vadd.f32 0.0, %v140
    %142 = vmatmul.f32.gmra.mxu0 %v51
    %v143 = vpop.f32.mrf.mxu0
    %v144 = vadd.f32 0.0, %v143
    %145 = vmatmul.f32.gmra.mxu0 %v53
    %v146 = vpop.f32.mrf.mxu0
    %v147 = vadd.f32 0.0, %v146
    %148 = vmatmul.f32.gmra.mxu0 %v55
    %v149 = vpop.f32.mrf.mxu0
    %v150 = vadd.f32 0.0, %v149
    %151 = vmatmul.f32.gmra.mxu0 %v57
    %v152 = vpop.f32.mrf.mxu0
    %v153 = vadd.f32 0.0, %v152
    %154 = vmatmul.f32.gmra.mxu0 %v59
    %v155 = vpop.f32.mrf.mxu0
    %v156 = vadd.f32 0.0, %v155
    %157 = vdwg.mxu0
    %158 = vmatpush.msra.mxu0 %v92
    %159 = vmatpush.msra.mxu0 %v91
    %160 = vmatpush.msra.mxu0 %v90
    %161 = vmatpush.msra.mxu0 %v89
    %162 = vmatpush.msra.mxu0 %v88
    %163 = vmatpush.msra.mxu0 %v87
    %164 = vmatpush.msra.mxu0 %v86
    %165 = vmatpush.msra.mxu0 %v85
    %166 = vmatpush.msra.mxu0 %v84
    %167 = vmatpush.msra.mxu0 %v83
    %168 = vmatpush.msra.mxu0 %v82
    %169 = vmatpush.msra.mxu0 %v81
    %170 = vmatpush.msra.mxu0 %v80
    %171 = vmatpush.msra.mxu0 %v79
    %172 = vmatpush.msra.mxu0 %v78
    %173 = vmatpush.msra.mxu0 %v77
    %174 = vmatmul.f32.gmra.mxu0 %v30
    %v175 = vpop.f32.mrf.mxu0
    %v176 = vadd.f32 %v111, %v175
    %177 = vmatmul.f32.gmra.mxu0 %v32
    %v178 = vpop.f32.mrf.mxu0
    %v179 = vadd.f32 %v114, %v178
    %180 = vmatmul.f32.gmra.mxu0 %v34
    %v181 = vpop.f32.mrf.mxu0
    %v182 = vadd.f32 %v117, %v181
    %183 = vmatmul.f32.gmra.mxu0 %v36
    %v184 = vpop.f32.mrf.mxu0
    %v185 = vadd.f32 %v120, %v184
    %186 = vmatmul.f32.gmra.mxu0 %v38
    %v187 = vpop.f32.mrf.mxu0
    %v188 = vadd.f32 %v123, %v187
    %189 = vmatmul.f32.gmra.mxu0 %v40
    %v190 = vpop.f32.mrf.mxu0
    %v191 = vadd.f32 %v126, %v190
    %192 = vmatmul.f32.gmra.mxu0 %v42
    %v193 = vpop.f32.mrf.mxu0
    %v194 = vadd.f32 %v129, %v193
    %195 = vmatmul.f32.gmra.mxu0 %v44
    %v196 = vpop.f32.mrf.mxu0
    %v197 = vadd.f32 %v132, %v196
    %198 = vmatmul.f32.gmra.mxu0 %v46
    %v199 = vpop.f32.mrf.mxu0
    %v200 = vadd.f32 %v135, %v199
    %201 = vmatmul.f32.gmra.mxu0 %v48
    %v202 = vpop.f32.mrf.mxu0
    %v203 = vadd.f32 %v138, %v202
    %204 = vmatmul.f32.gmra.mxu0 %v50
    %v205 = vpop.f32.mrf.mxu0
    %v206 = vadd.f32 %v141, %v205
    %207 = vmatmul.f32.gmra.mxu0 %v52
    %v208 = vpop.f32.mrf.mxu0
    %v209 = vadd.f32 %v144, %v208
    %210 = vmatmul.f32.gmra.mxu0 %v54
    %v211 = vpop.f32.mrf.mxu0
    %v212 = vadd.f32 %v147, %v211
    %213 = vmatmul.f32.gmra.mxu0 %v56
    %v214 = vpop.f32.mrf.mxu0
    %v215 = vadd.f32 %v150, %v214
    %216 = vmatmul.f32.gmra.mxu0 %v58
    %v217 = vpop.f32.mrf.mxu0
    %v218 = vadd.f32 %v153, %v217
    %219 = vmatmul.f32.gmra.mxu0 %v60
    %v220 = vpop.f32.mrf.mxu0
    %v221 = vadd.f32 %v156, %v220
    %222 = vdwg.mxu0
    %v224 = vperm.slane %v27, 0
    %v226 = vmul.f32 %v176, %v224
    %v227 = vmul.f32 %v179, %v224
    %v228 = vmul.f32 %v182, %v224
    %v229 = vmul.f32 %v185, %v224
    %v230 = vmul.f32 %v188, %v224
    %v231 = vmul.f32 %v191, %v224
    %v232 = vmul.f32 %v194, %v224
    %v233 = vmul.f32 %v197, %v224
    %v234 = vmul.f32 %v200, %v224
    %v235 = vmul.f32 %v203, %v224
    %v236 = vmul.f32 %v206, %v224
    %v237 = vmul.f32 %v209, %v224
    %v238 = vmul.f32 %v212, %v224
    %v239 = vmul.f32 %v215, %v224
    %v240 = vmul.f32 %v218, %v224
    %v241 = vmul.f32 %v221, %v224
    %v243 = vperm.slane %v28, 0
    %v245 = vadd.f32 %v226, %v243
    %v246 = vadd.f32 %v227, %v243
    %v247 = vadd.f32 %v228, %v243
    %v248 = vadd.f32 %v229, %v243
    %v249 = vadd.f32 %v230, %v243
    %v250 = vadd.f32 %v231, %v243
    %v251 = vadd.f32 %v232, %v243
    %v252 = vadd.f32 %v233, %v243
    %v253 = vadd.f32 %v234, %v243
    %v254 = vadd.f32 %v235, %v243
    %v255 = vadd.f32 %v236, %v243
    %v256 = vadd.f32 %v237, %v243
    %v257 = vadd.f32 %v238, %v243
    %v258 = vadd.f32 %v239, %v243
    %v259 = vadd.f32 %v240, %v243
    %v260 = vadd.f32 %v241, %v243
    %v261 = vmax.f32 %v245, 0.0
    %v262 = vmax.f32 %v246, 0.0
    %v263 = vmax.f32 %v247, 0.0
    %v264 = vmax.f32 %v248, 0.0
    %v265 = vmax.f32 %v249, 0.0
    %v266 = vmax.f32 %v250, 0.0
    %v267 = vmax.f32 %v251, 0.0
    %v268 = vmax.f32 %v252, 0.0
    %v269 = vmax.f32 %v253, 0.0
    %v270 = vmax.f32 %v254, 0.0
    %v271 = vmax.f32 %v255, 0.0
    %v272 = vmax.f32 %v256, 0.0
    %v273 = vmax.f32 %v257, 0.0
    %v274 = vmax.f32 %v258, 0.0
    %v275 = vmax.f32 %v259, 0.0
    %v276 = vmax.f32 %v260, 0.0
    %vm277 = vcmask 523264
    %278 = vst.msk [vmem:[#allocation2] sm:$0xff] %vm277, 0.0
    %vm279 = vcmask 517120
    %280 = vst.msk [vmem:[#allocation2 + $0x8] sm:$0x3] %vm279, 0.0
    %281 = vst.msk [vmem:[#allocation2 + $0x10] sm:$0xff] %vm277, 0.0
    %282 = vst.msk [vmem:[#allocation2 + $0x18] sm:$0x3] %vm279, 0.0
    %283 = vst.msk [vmem:[#allocation2 + $0x20] sm:$0xff] %vm277, 0.0
    %284 = vst.msk [vmem:[#allocation2 + $0x28] sm:$0x3] %vm279, 0.0
    %285 = vst.msk [vmem:[#allocation2 + $0x30] sm:$0xff] %vm277, 0.0
    %286 = vst.msk [vmem:[#allocation2 + $0x38] sm:$0x3] %vm279, 0.0
    %287 = vst.msk [vmem:[#allocation2 + $0x40] sm:$0xff] %vm277, 0.0
    %288 = vst.msk [vmem:[#allocation2 + $0x48] sm:$0x3] %vm279, 0.0
    %289 = vst.msk [vmem:[#allocation2 + $0x50] sm:$0xff] %vm277, 0.0
    %290 = vst.msk [vmem:[#allocation2 + $0x58] sm:$0x3] %vm279, 0.0
    %291 = vst.msk [vmem:[#allocation2 + $0x60] sm:$0xff] %vm277, 0.0
    %292 = vst.msk [vmem:[#allocation2 + $0x68] sm:$0x3] %vm279, 0.0
    %293 = vst.msk [vmem:[#allocation2 + $0x70] sm:$0xff] %vm277, 0.0
    %294 = vst.msk [vmem:[#allocation2 + $0x78] sm:$0x3] %vm279, 0.0
    %295 = vst.msk [vmem:[#allocation2 + $0x80] sm:$0xff] %vm277, 0.0
    %296 = vst.msk [vmem:[#allocation2 + $0x88] sm:$0x3] %vm279, 0.0
    %297 = vst.msk [vmem:[#allocation2 + $0x90] sm:$0xff] %vm277, 0.0
    %298 = vst.msk [vmem:[#allocation2 + $0x98] sm:$0x3] %vm279, 0.0
    %299 = vst.msk [vmem:[#allocation2 + $0xa0] sm:$0xff] %vm277, 0.0
    %300 = vst.msk [vmem:[#allocation2 + $0xa8] sm:$0x3] %vm279, 0.0
    %301 = vst.msk [vmem:[#allocation2 + $0xb0] sm:$0xff] %vm277, 0.0
    %302 = vst.msk [vmem:[#allocation2 + $0xb8] sm:$0x3] %vm279, 0.0
    %303 = vst.msk [vmem:[#allocation2 + $0xc0] sm:$0xff] %vm277, 0.0
    %304 = vst.msk [vmem:[#allocation2 + $0xc8] sm:$0x3] %vm279, 0.0
    %305 = vst.msk [vmem:[#allocation2 + $0xd0] sm:$0xff] %vm277, 0.0
    %306 = vst.msk [vmem:[#allocation2 + $0xd8] sm:$0x3] %vm279, 0.0
    %307 = vst.msk [vmem:[#allocation2 + $0xe0] sm:$0xff] %vm277, 0.0
    %308 = vst.msk [vmem:[#allocation2 + $0xe8] sm:$0x3] %vm279, 0.0
    %309 = vst.msk [vmem:[#allocation2 + $0xf0] sm:$0xff] %vm277, 0.0
    %310 = vst.msk [vmem:[#allocation2 + $0xf8] sm:$0x3] %vm279, 0.0
    %311 = vst.msk [vmem:[#allocation2 + $0x100] sm:$0xff] %vm277, 0.0
    %312 = vst.msk [vmem:[#allocation2 + $0x108] sm:$0x3] %vm279, 0.0
    %313 = vst.msk [vmem:[#allocation2 + $0x110] sm:$0xff] %vm277, 0.0
    %314 = vst.msk [vmem:[#allocation2 + $0x118] sm:$0x3] %vm279, 0.0
    %315 = vst.msk [vmem:[#allocation2 + $0x120] sm:$0xff] %vm277, 0.0
    %316 = vst.msk [vmem:[#allocation2 + $0x128] sm:$0x3] %vm279, 0.0
    %317 = vst.msk [vmem:[#allocation2 + $0x130] sm:$0xff] %vm277, 0.0
    %318 = vst.msk [vmem:[#allocation2 + $0x138] sm:$0x3] %vm279, 0.0
    %s319 = scalar_lea.vmem [#allocation2], 16
    %320 = vst.msk [vmem:[%s319 + $0x1] sm:$0xff] %vm277, %v261
    %321 = vst.msk [vmem:[%s319 + $0x11] sm:$0xff] %vm277, %v262
    %322 = vst.msk [vmem:[%s319 + $0x21] sm:$0xff] %vm277, %v263
    %323 = vst.msk [vmem:[%s319 + $0x31] sm:$0xff] %vm277, %v264
    %324 = vst.msk [vmem:[%s319 + $0x41] sm:$0xff] %vm277, %v265
    %325 = vst.msk [vmem:[%s319 + $0x51] sm:$0xff] %vm277, %v266
    %326 = vst.msk [vmem:[%s319 + $0x61] sm:$0xff] %vm277, %v267
    %327 = vst.msk [vmem:[%s319 + $0x71] sm:$0xff] %vm277, %v268
    %328 = vst.msk [vmem:[%s319 + $0xa1] sm:$0xff] %vm277, %v269
    %329 = vst.msk [vmem:[%s319 + $0xb1] sm:$0xff] %vm277, %v270
    %330 = vst.msk [vmem:[%s319 + $0xc1] sm:$0xff] %vm277, %v271
    %331 = vst.msk [vmem:[%s319 + $0xd1] sm:$0xff] %vm277, %v272
    %332 = vst.msk [vmem:[%s319 + $0xe1] sm:$0xff] %vm277, %v273
    %333 = vst.msk [vmem:[%s319 + $0xf1] sm:$0xff] %vm277, %v274
    %334 = vst.msk [vmem:[%s319 + $0x101] sm:$0xff] %vm277, %v275
    %335 = vst.msk [vmem:[%s319 + $0x111] sm:$0xff] %vm277, %v276
    %vm336 = vcmask 521216
    %337 = vst.msk [vmem:[#allocation3] sm:$0x3f] %vm336, 0.0
    %338 = vst.msk [vmem:[#allocation3 + $0x8] sm:$0x3f] %vm336, 0.0
    %339 = vst.msk [vmem:[#allocation3 + $0x10] sm:$0x3f] %vm336, 0.0
    %340 = vst.msk [vmem:[#allocation3 + $0x18] sm:$0x3f] %vm336, 0.0
    %341 = vst.msk [vmem:[#allocation3 + $0x20] sm:$0x3f] %vm336, 0.0
    %342 = vst.msk [vmem:[#allocation3 + $0x28] sm:$0x3f] %vm336, 0.0
    %343 = vst.msk [vmem:[#allocation3 + $0x30] sm:$0x3f] %vm336, 0.0
    %344 = vst.msk [vmem:[#allocation3 + $0x38] sm:$0x3f] %vm336, 0.0
    %345 = vst.msk [vmem:[#allocation3 + $0x40] sm:$0x3f] %vm336, 0.0
    %346 = vst.msk [vmem:[#allocation3 + $0x48] sm:$0x3f] %vm336, 0.0
    %347 = vst.msk [vmem:[#allocation3 + $0x50] sm:$0x3f] %vm336, 0.0
    %348 = vst.msk [vmem:[#allocation3 + $0x58] sm:$0x3f] %vm336, 0.0
    %v349 = vld [vmem:[#allocation2] sm:$0xff]
    %v350 = vld [vmem:[#allocation2 + $0x8] sm:$0x3]
    %v351 = vld [vmem:[#allocation2 + $0x10] sm:$0xff]
    %v352 = vld [vmem:[#allocation2 + $0x18] sm:$0x3]
    %v353 = vld [vmem:[#allocation2 + $0x20] sm:$0xff]
    %v354 = vld [vmem:[#allocation2 + $0x28] sm:$0x3]
    %v355 = vld [vmem:[#allocation2 + $0x30] sm:$0xff]
    %v356 = vld [vmem:[#allocation2 + $0x38] sm:$0x3]
    %v357 = vld [vmem:[#allocation2 + $0x40] sm:$0xff]
    %v358 = vld [vmem:[#allocation2 + $0x48] sm:$0x3]
    %v359 = vld [vmem:[#allocation2 + $0x50] sm:$0xff]
    %v360 = vld [vmem:[#allocation2 + $0x58] sm:$0x3]
    %v361 = vld [vmem:[#allocation2 + $0x60] sm:$0xff]
    %v362 = vld [vmem:[#allocation2 + $0x68] sm:$0x3]
    %v363 = vld [vmem:[#allocation2 + $0x70] sm:$0xff]
    %v364 = vld [vmem:[#allocation2 + $0x78] sm:$0x3]
    %v365 = vld [vmem:[#allocation2 + $0x80] sm:$0xff]
    %v366 = vld [vmem:[#allocation2 + $0x88] sm:$0x3]
    %v367 = vld [vmem:[#allocation2 + $0xa0] sm:$0xff]
    %v368 = vld [vmem:[#allocation2 + $0xa8] sm:$0x3]
    %v369 = vld [vmem:[#allocation2 + $0xb0] sm:$0xff]
    %v370 = vld [vmem:[#allocation2 + $0xb8] sm:$0x3]
    %v371 = vld [vmem:[#allocation2 + $0xc0] sm:$0xff]
    %v372 = vld [vmem:[#allocation2 + $0xc8] sm:$0x3]
    %v373 = vld [vmem:[#allocation2 + $0xd0] sm:$0xff]
    %v374 = vld [vmem:[#allocation2 + $0xd8] sm:$0x3]
    %v375 = vld [vmem:[#allocation2 + $0xe0] sm:$0xff]
    %v376 = vld [vmem:[#allocation2 + $0xe8] sm:$0x3]
    %v377 = vld [vmem:[#allocation2 + $0xf0] sm:$0xff]
    %v378 = vld [vmem:[#allocation2 + $0xf8] sm:$0x3]
    %v379 = vld [vmem:[#allocation2 + $0x100] sm:$0xff]
    %v380 = vld [vmem:[#allocation2 + $0x108] sm:$0x3]
    %v381 = vld [vmem:[#allocation2 + $0x110] sm:$0xff]
    %v382 = vld [vmem:[#allocation2 + $0x118] sm:$0x3]
    %v383 = vld [vmem:[#allocation2 + $0x120] sm:$0xff]
    %v384 = vld [vmem:[#allocation2 + $0x128] sm:$0x3]
    %v385 = vmax.f32 %v349, %v351
    %v386 = vmax.f32 %v350, %v352
    %v387 = vmax.f32 %v367, %v369
    %v388 = vmax.f32 %v368, %v370
    %v389 = vmax.f32 %v385, %v353
    %v390 = vmax.f32 %v386, %v354
    %v391 = vmax.f32 %v387, %v371
    %v392 = vmax.f32 %v388, %v372
    %v395 = vrot.slane %v389, 1
    %v396 = vrot.slane %v391, 1
    %v399 = vmax.f32 %v389, %v395
    %v400 = vmax.f32 %v391, %v396
    %v401 = vrot.slane %v389, 2
    %v402 = vrot.slane %v391, 2
    %v405 = vmax.f32 %v399, %v401
    %v406 = vmax.f32 %v400, %v402
    %s407 = scalar_lea.vmem [#allocation3], 8
    %vm408 = vcmask 516096
    %409 = vst.msk [vmem:[%s407 + $0x1] sm:$0x1] %vm408, %v405
    %410 = vst.msk [vmem:[%s407 + $0x31] sm:$0x1] %vm408, %v406
    %vm411 = vcmask 518146
    %412 = vst.msk [vmem:[%s407] sm:$0x4] %vm411, %v405
    %413 = vst.msk [vmem:[%s407 + $0x30] sm:$0x4] %vm411, %v406
    %vm414 = vcmask 520196
    %415 = vst.msk [vmem:[%s407 - $0x1] sm:$0x10] %vm414, %v405
    %416 = vst.msk [vmem:[%s407 + $0x2f] sm:$0x10] %vm414, %v406
    %v419 = vrot.slane %v390, 2
    %v420 = vrot.slane %v392, 2
    %v423 = vmax.f32 %v399, %v419
    %v424 = vmax.f32 %v400, %v420
    %vm425 = vcmask 522246
    %426 = vst.msk [vmem:[%s407 - $0x2] sm:$0x40] %vm425, %v423
    %427 = vst.msk [vmem:[%s407 + $0x2e] sm:$0x40] %vm425, %v424
    %v428 = vmax.f32 %v353, %v355
    %v429 = vmax.f32 %v354, %v356
    %v430 = vmax.f32 %v371, %v373
    %v431 = vmax.f32 %v372, %v374
    %v432 = vmax.f32 %v428, %v357
    %v433 = vmax.f32 %v429, %v358
    %v434 = vmax.f32 %v430, %v375
    %v435 = vmax.f32 %v431, %v376
    %v438 = vrot.slane %v432, 1
    %v439 = vrot.slane %v434, 1
    %v442 = vmax.f32 %v432, %v438
    %v443 = vmax.f32 %v434, %v439
    %v444 = vrot.slane %v432, 2
    %v445 = vrot.slane %v434, 2
    %v448 = vmax.f32 %v442, %v444
    %v449 = vmax.f32 %v443, %v445
    %s450 = scalar_lea.vmem [#allocation3], 16
    %451 = vst.msk [vmem:[%s450 + $0x1] sm:$0x1] %vm408, %v448
    %452 = vst.msk [vmem:[%s450 + $0x31] sm:$0x1] %vm408, %v449
    %453 = vst.msk [vmem:[%s450] sm:$0x4] %vm411, %v448
    %454 = vst.msk [vmem:[%s450 + $0x30] sm:$0x4] %vm411, %v449
    %455 = vst.msk [vmem:[%s450 - $0x1] sm:$0x10] %vm414, %v448
    %456 = vst.msk [vmem:[%s450 + $0x2f] sm:$0x10] %vm414, %v449
    %v459 = vrot.slane %v433, 2
    %v460 = vrot.slane %v435, 2
    %v463 = vmax.f32 %v442, %v459
    %v464 = vmax.f32 %v443, %v460
    %465 = vst.msk [vmem:[%s450 - $0x2] sm:$0x40] %vm425, %v463
    %466 = vst.msk [vmem:[%s450 + $0x2e] sm:$0x40] %vm425, %v464
    %v467 = vmax.f32 %v357, %v359
    %v468 = vmax.f32 %v358, %v360
    %v469 = vmax.f32 %v375, %v377
    %v470 = vmax.f32 %v376, %v378
    %v471 = vmax.f32 %v467, %v361
    %v472 = vmax.f32 %v468, %v362
    %v473 = vmax.f32 %v469, %v379
    %v474 = vmax.f32 %v470, %v380
    %v477 = vrot.slane %v471, 1
    %v478 = vrot.slane %v473, 1
    %v481 = vmax.f32 %v471, %v477
    %v482 = vmax.f32 %v473, %v478
    %v483 = vrot.slane %v471, 2
    %v484 = vrot.slane %v473, 2
    %v487 = vmax.f32 %v481, %v483
    %v488 = vmax.f32 %v482, %v484
    %s489 = scalar_lea.vmem [#allocation3], 24
    %490 = vst.msk [vmem:[%s489 + $0x1] sm:$0x1] %vm408, %v487
    %491 = vst.msk [vmem:[%s489 + $0x31] sm:$0x1] %vm408, %v488
    %492 = vst.msk [vmem:[%s489] sm:$0x4] %vm411, %v487
    %493 = vst.msk [vmem:[%s489 + $0x30] sm:$0x4] %vm411, %v488
    %494 = vst.msk [vmem:[%s489 - $0x1] sm:$0x10] %vm414, %v487
    %495 = vst.msk [vmem:[%s489 + $0x2f] sm:$0x10] %vm414, %v488
    %v498 = vrot.slane %v472, 2
    %v499 = vrot.slane %v474, 2
    %v502 = vmax.f32 %v481, %v498
    %v503 = vmax.f32 %v482, %v499
    %504 = vst.msk [vmem:[%s489 - $0x2] sm:$0x40] %vm425, %v502
    %505 = vst.msk [vmem:[%s489 + $0x2e] sm:$0x40] %vm425, %v503
    %v506 = vmax.f32 %v361, %v363
    %v507 = vmax.f32 %v362, %v364
    %v508 = vmax.f32 %v379, %v381
    %v509 = vmax.f32 %v380, %v382
    %v510 = vmax.f32 %v506, %v365
    %v511 = vmax.f32 %v507, %v366
    %v512 = vmax.f32 %v508, %v383
    %v513 = vmax.f32 %v509, %v384
    %v516 = vrot.slane %v510, 1
    %v517 = vrot.slane %v512, 1
    %v520 = vmax.f32 %v510, %v516
    %v521 = vmax.f32 %v512, %v517
    %v522 = vrot.slane %v510, 2
    %v523 = vrot.slane %v512, 2
    %v526 = vmax.f32 %v520, %v522
    %v527 = vmax.f32 %v521, %v523
    %s528 = scalar_lea.vmem [#allocation3], 32
    %529 = vst.msk [vmem:[%s528 + $0x1] sm:$0x1] %vm408, %v526
    %530 = vst.msk [vmem:[%s528 + $0x31] sm:$0x1] %vm408, %v527
    %531 = vst.msk [vmem:[%s528] sm:$0x4] %vm411, %v526
    %532 = vst.msk [vmem:[%s528 + $0x30] sm:$0x4] %vm411, %v527
    %533 = vst.msk [vmem:[%s528 - $0x1] sm:$0x10] %vm414, %v526
    %534 = vst.msk [vmem:[%s528 + $0x2f] sm:$0x10] %vm414, %v527
    %v537 = vrot.slane %v511, 2
    %v538 = vrot.slane %v513, 2
    %v541 = vmax.f32 %v520, %v537
    %v542 = vmax.f32 %v521, %v538
    %543 = vst.msk [vmem:[%s528 - $0x2] sm:$0x40] %vm425, %v541
    %544 = vst.msk [vmem:[%s528 + $0x2e] sm:$0x40] %vm425, %v542
    %v545 = vld [vmem:[%s2] sm:$0xff]
    %v546 = vld [vmem:[%s2 + $0x8] sm:$0xff]
    %v547 = vld [vmem:[%s2 + $0x10] sm:$0xff]
    %v548 = vld [vmem:[%s2 + $0x18] sm:$0xff]
    %v549 = vld [vmem:[%s2 + $0x20] sm:$0xff]
    %v550 = vld [vmem:[%s2 + $0x28] sm:$0xff]
    %v551 = vld [vmem:[%s2 + $0x30] sm:$0xff]
    %v552 = vld [vmem:[%s2 + $0x38] sm:$0xff]
    %v553 = vld [vmem:[%s2 + $0x40] sm:$0xff]
    %v554 = vld [vmem:[%s2 + $0x48] sm:$0xff]
    %v555 = vld [vmem:[%s2 + $0x50] sm:$0xff]
    %v556 = vld [vmem:[%s2 + $0x58] sm:$0xff]
    %v557 = vld [vmem:[%s2 + $0x60] sm:$0xff]
    %v558 = vld [vmem:[%s2 + $0x68] sm:$0xff]
    %v559 = vld [vmem:[%s2 + $0x70] sm:$0xff]
    %v560 = vld [vmem:[%s2 + $0x78] sm:$0xff]
    %v561 = vld [vmem:[%s2 + $0x80] sm:$0xff]
    %v562 = vld [vmem:[%s2 + $0x88] sm:$0xff]
    %v563 = vld [vmem:[%s2 + $0x90] sm:$0xff]
    %v564 = vld [vmem:[%s2 + $0x98] sm:$0xff]
    %v565 = vld [vmem:[%s2 + $0xa0] sm:$0xff]
    %v566 = vld [vmem:[%s2 + $0xa8] sm:$0xff]
    %v567 = vld [vmem:[%s2 + $0xb0] sm:$0xff]
    %v568 = vld [vmem:[%s2 + $0xb8] sm:$0xff]
    %v569 = vld [vmem:[%s2 + $0xc0] sm:$0xff]
    %v570 = vld [vmem:[%s2 + $0xc8] sm:$0xff]
    %v571 = vld [vmem:[%s2 + $0xd0] sm:$0xff]
    %v572 = vld [vmem:[%s2 + $0xd8] sm:$0xff]
    %v573 = vld [vmem:[%s2 + $0xe0] sm:$0xff]
    %v574 = vld [vmem:[%s2 + $0xe8] sm:$0xff]
    %v575 = vld [vmem:[%s2 + $0xf0] sm:$0xff]
    %v576 = vld [vmem:[%s2 + $0xf8] sm:$0xff]
    %v577 = vld [vmem:[%s2 + $0x100] sm:$0xff]
    %v578 = vld [vmem:[%s2 + $0x108] sm:$0xff]
    %v579 = vld [vmem:[%s2 + $0x110] sm:$0xff]
    %v580 = vld [vmem:[%s2 + $0x118] sm:$0xff]
    %v581 = vld [vmem:[%s2 + $0x120] sm:$0xff]
    %v582 = vld [vmem:[%s2 + $0x128] sm:$0xff]
    %v583 = vld [vmem:[%s2 + $0x130] sm:$0xff]
    %v584 = vld [vmem:[%s2 + $0x138] sm:$0xff]
    %v585 = vld [vmem:[%s2 + $0x140] sm:$0xff]
    %v586 = vld [vmem:[%s2 + $0x148] sm:$0xff]
    %v587 = vld [vmem:[%s2 + $0x150] sm:$0xff]
    %v588 = vld [vmem:[%s2 + $0x158] sm:$0xff]
    %v589 = vld [vmem:[%s2 + $0x160] sm:$0xff]
    %v590 = vld [vmem:[%s2 + $0x168] sm:$0xff]
    %v591 = vld [vmem:[%s2 + $0x170] sm:$0xff]
    %v592 = vld [vmem:[%s2 + $0x178] sm:$0xff]
    %v593 = vld [vmem:[%s2 + $0x180] sm:$0xff]
    %v594 = vld [vmem:[%s2 + $0x188] sm:$0xff]
    %v595 = vld [vmem:[%s2 + $0x190] sm:$0xff]
    %v596 = vld [vmem:[%s2 + $0x198] sm:$0xff]
    %v597 = vld [vmem:[%s2 + $0x1a0] sm:$0xff]
    %v598 = vld [vmem:[%s2 + $0x1a8] sm:$0xff]
    %v599 = vld [vmem:[%s2 + $0x1b0] sm:$0xff]
    %v600 = vld [vmem:[%s2 + $0x1b8] sm:$0xff]
    %v601 = vld [vmem:[%s2 + $0x1c0] sm:$0xff]
    %v602 = vld [vmem:[%s2 + $0x1c8] sm:$0xff]
    %v603 = vld [vmem:[%s2 + $0x1d0] sm:$0xff]
    %v604 = vld [vmem:[%s2 + $0x1d8] sm:$0xff]
    %v605 = vld [vmem:[%s2 + $0x1e0] sm:$0xff]
    %v606 = vld [vmem:[%s2 + $0x1e8] sm:$0xff]
    %v607 = vld [vmem:[%s2 + $0x1f0] sm:$0xff]
    %v608 = vld [vmem:[%s2 + $0x1f8] sm:$0xff]
    %v609 = vld [vmem:[%s2 + $0x200] sm:$0xff]
    %v610 = vld [vmem:[%s2 + $0x208] sm:$0xff]
    %v611 = vld [vmem:[%s2 + $0x210] sm:$0xff]
    %v612 = vld [vmem:[%s2 + $0x218] sm:$0xff]
    %v613 = vld [vmem:[%s2 + $0x220] sm:$0xff]
    %v614 = vld [vmem:[%s2 + $0x228] sm:$0xff]
    %v615 = vld [vmem:[%s2 + $0x230] sm:$0xff]
    %v616 = vld [vmem:[%s2 + $0x238] sm:$0xff]
    %v617 = vld [vmem:[#allocation3] sm:$0x3f]
    %v618 = vld [vmem:[#allocation3 + $0x8] sm:$0x3f]
    %v619 = vld [vmem:[#allocation3 + $0x10] sm:$0x3f]
    %v620 = vld [vmem:[#allocation3 + $0x18] sm:$0x3f]
    %v621 = vld [vmem:[#allocation3 + $0x20] sm:$0x3f]
    %v622 = vld [vmem:[#allocation3 + $0x28] sm:$0x3f]
    %v623 = vld [vmem:[#allocation3 + $0x30] sm:$0x3f]
    %v624 = vld [vmem:[#allocation3 + $0x38] sm:$0x3f]
    %v625 = vld [vmem:[#allocation3 + $0x40] sm:$0x3f]
    %v626 = vld [vmem:[#allocation3 + $0x48] sm:$0x3f]
    %v627 = vld [vmem:[#allocation3 + $0x50] sm:$0x3f]
    %v628 = vld [vmem:[#allocation3 + $0x58] sm:$0x3f]
    %vm629 = vcmask 519168
    %630 = vst.msk [vmem:[#allocation6] sm:$0xf] %vm629, %v617
    %631 = vst.msk [vmem:[#allocation6 + $0x14] sm:$0xf] %vm629, %v618
    %632 = vst.msk [vmem:[#allocation6 + $0x28] sm:$0xf] %vm629, %v619
    %633 = vst.msk [vmem:[#allocation6 + $0x3c] sm:$0xf] %vm629, %v620
    %634 = vst.msk [vmem:[#allocation6 + $0x50] sm:$0xf] %vm629, %v623
    %635 = vst.msk [vmem:[#allocation6 + $0x64] sm:$0xf] %vm629, %v624
    %636 = vst.msk [vmem:[#allocation6 + $0x78] sm:$0xf] %vm629, %v625
    %637 = vst.msk [vmem:[#allocation6 + $0x8c] sm:$0xf] %vm629, %v626
    %v646 = vrot.slane %v617, 4
    %v647 = vrot.slane %v618, 4
    %v648 = vrot.slane %v619, 4
    %v649 = vrot.slane %v620, 4
    %v650 = vrot.slane %v623, 4
    %v651 = vrot.slane %v624, 4
    %v652 = vrot.slane %v625, 4
    %v653 = vrot.slane %v626, 4
    %vm654 = vcmask 1042432
    %vm655 = vcmask 1046532
    %vm656 = vmor %vm654, %vm655
    %v657 = vrot.slane %v617, 5
    %v658 = vrot.slane %v657, 4
    %v659 = vrot.slane %v646, 5
    %v660 = vsel %vm656, %v658, %v659
    %v661 = vrot.slane %v618, 5
    %v662 = vrot.slane %v661, 4
    %v663 = vrot.slane %v647, 5
    %v664 = vsel %vm656, %v662, %v663
    %v665 = vrot.slane %v619, 5
    %v666 = vrot.slane %v665, 4
    %v667 = vrot.slane %v648, 5
    %v668 = vsel %vm656, %v666, %v667
    %v669 = vrot.slane %v620, 5
    %v670 = vrot.slane %v669, 4
    %v671 = vrot.slane %v649, 5
    %v672 = vsel %vm656, %v670, %v671
    %v673 = vrot.slane %v623, 5
    %v674 = vrot.slane %v673, 4
    %v675 = vrot.slane %v650, 5
    %v676 = vsel %vm656, %v674, %v675
    %v677 = vrot.slane %v624, 5
    %v678 = vrot.slane %v677, 4
    %v679 = vrot.slane %v651, 5
    %v680 = vsel %vm656, %v678, %v679
    %v681 = vrot.slane %v625, 5
    %v682 = vrot.slane %v681, 4
    %v683 = vrot.slane %v652, 5
    %v684 = vsel %vm656, %v682, %v683
    %v685 = vrot.slane %v626, 5
    %v686 = vrot.slane %v685, 4
    %v687 = vrot.slane %v653, 5
    %v688 = vsel %vm656, %v686, %v687
    %689 = vrot.lane.b32.xlu0 %v660, 64
    %v690 = vpop.permute.xlu0 %689
    %691 = vrot.lane.b32.xlu0 %v664, 64
    %v692 = vpop.permute.xlu0 %691
    %693 = vrot.lane.b32.xlu0 %v668, 64
    %v694 = vpop.permute.xlu0 %693
    %695 = vrot.lane.b32.xlu0 %v672, 64
    %v696 = vpop.permute.xlu0 %695
    %697 = vrot.lane.b32.xlu0 %v676, 64
    %v698 = vpop.permute.xlu0 %697
    %699 = vrot.lane.b32.xlu0 %v680, 64
    %v700 = vpop.permute.xlu0 %699
    %701 = vrot.lane.b32.xlu0 %v684, 64
    %v702 = vpop.permute.xlu0 %701
    %703 = vrot.lane.b32.xlu0 %v688, 64
    %v704 = vpop.permute.xlu0 %703
    %vm713 = vcmask 1043968
    %714 = vst.msk [vmem:[#allocation6] sm:$0xf] %vm713, %v690
    %715 = vst.msk [vmem:[#allocation6 + $0x14] sm:$0xf] %vm713, %v692
    %716 = vst.msk [vmem:[#allocation6 + $0x28] sm:$0xf] %vm713, %v694
    %717 = vst.msk [vmem:[#allocation6 + $0x3c] sm:$0xf] %vm713, %v696
    %718 = vst.msk [vmem:[#allocation6 + $0x50] sm:$0xf] %vm713, %v698
    %719 = vst.msk [vmem:[#allocation6 + $0x64] sm:$0xf] %vm713, %v700
    %720 = vst.msk [vmem:[#allocation6 + $0x78] sm:$0xf] %vm713, %v702
    %721 = vst.msk [vmem:[#allocation6 + $0x8c] sm:$0xf] %vm713, %v704
    %vm722 = vcmask 1041408
    %vm723 = vcmask 1045508
    %vm724 = vmor %vm722, %vm723
    %v725 = vrot.slane %v617, 6
    %v726 = vrot.slane %v725, 4
    %v727 = vrot.slane %v646, 6
    %v728 = vsel %vm724, %v726, %v727
    %v729 = vrot.slane %v618, 6
    %v730 = vrot.slane %v729, 4
    %v731 = vrot.slane %v647, 6
    %v732 = vsel %vm724, %v730, %v731
    %v733 = vrot.slane %v619, 6
    %v734 = vrot.slane %v733, 4
    %v735 = vrot.slane %v648, 6
    %v736 = vsel %vm724, %v734, %v735
    %v737 = vrot.slane %v620, 6
    %v738 = vrot.slane %v737, 4
    %v739 = vrot.slane %v649, 6
    %v740 = vsel %vm724, %v738, %v739
    %v741 = vrot.slane %v623, 6
    %v742 = vrot.slane %v741, 4
    %v743 = vrot.slane %v650, 6
    %v744 = vsel %vm724, %v742, %v743
    %v745 = vrot.slane %v624, 6
    %v746 = vrot.slane %v745, 4
    %v747 = vrot.slane %v651, 6
    %v748 = vsel %vm724, %v746, %v747
    %v749 = vrot.slane %v625, 6
    %v750 = vrot.slane %v749, 4
    %v751 = vrot.slane %v652, 6
    %v752 = vsel %vm724, %v750, %v751
    %v753 = vrot.slane %v626, 6
    %v754 = vrot.slane %v753, 4
    %v755 = vrot.slane %v653, 6
    %v756 = vsel %vm724, %v754, %v755
    %765 = vst.msk [vmem:[#allocation6 + $0x4] sm:$0xf] %vm629, %v728
    %766 = vst.msk [vmem:[#allocation6 + $0x18] sm:$0xf] %vm629, %v732
    %767 = vst.msk [vmem:[#allocation6 + $0x2c] sm:$0xf] %vm629, %v736
    %768 = vst.msk [vmem:[#allocation6 + $0x40] sm:$0xf] %vm629, %v740
    %769 = vst.msk [vmem:[#allocation6 + $0x54] sm:$0xf] %vm629, %v744
    %770 = vst.msk [vmem:[#allocation6 + $0x68] sm:$0xf] %vm629, %v748
    %771 = vst.msk [vmem:[#allocation6 + $0x7c] sm:$0xf] %vm629, %v752
    %772 = vst.msk [vmem:[#allocation6 + $0x90] sm:$0xf] %vm629, %v756
    %775 = vrot.lane.b32.xlu0 %v618, 64
    %v776 = vpop.permute.xlu0 %775
    %777 = vrot.lane.b32.xlu0 %v619, 64
    %v778 = vpop.permute.xlu0 %777
    %779 = vrot.lane.b32.xlu0 %v620, 64
    %v780 = vpop.permute.xlu0 %779
    %781 = vrot.lane.b32.xlu0 %v621, 64
    %v782 = vpop.permute.xlu0 %781
    %783 = vrot.lane.b32.xlu0 %v624, 64
    %v784 = vpop.permute.xlu0 %783
    %785 = vrot.lane.b32.xlu0 %v625, 64
    %v786 = vpop.permute.xlu0 %785
    %787 = vrot.lane.b32.xlu0 %v626, 64
    %v788 = vpop.permute.xlu0 %787
    %789 = vrot.lane.b32.xlu0 %v627, 64
    %v790 = vpop.permute.xlu0 %789
    %799 = vst.msk [vmem:[#allocation6 + $0x4] sm:$0xf] %vm713, %v776
    %800 = vst.msk [vmem:[#allocation6 + $0x18] sm:$0xf] %vm713, %v778
    %801 = vst.msk [vmem:[#allocation6 + $0x2c] sm:$0xf] %vm713, %v780
    %802 = vst.msk [vmem:[#allocation6 + $0x40] sm:$0xf] %vm713, %v782
    %803 = vst.msk [vmem:[#allocation6 + $0x54] sm:$0xf] %vm713, %v784
    %804 = vst.msk [vmem:[#allocation6 + $0x68] sm:$0xf] %vm713, %v786
    %805 = vst.msk [vmem:[#allocation6 + $0x7c] sm:$0xf] %vm713, %v788
    %806 = vst.msk [vmem:[#allocation6 + $0x90] sm:$0xf] %vm713, %v790
    %v807 = vrot.slane %v621, 4
    %v808 = vrot.slane %v627, 4
    %v809 = vrot.slane %v621, 5
    %v810 = vrot.slane %v809, 4
    %v811 = vrot.slane %v807, 5
    %v812 = vsel %vm656, %v810, %v811
    %v813 = vrot.slane %v627, 5
    %v814 = vrot.slane %v813, 4
    %v815 = vrot.slane %v808, 5
    %v816 = vsel %vm656, %v814, %v815
    %825 = vst.msk [vmem:[#allocation6 + $0x8] sm:$0xf] %vm629, %v664
    %826 = vst.msk [vmem:[#allocation6 + $0x1c] sm:$0xf] %vm629, %v668
    %827 = vst.msk [vmem:[#allocation6 + $0x30] sm:$0xf] %vm629, %v672
    %828 = vst.msk [vmem:[#allocation6 + $0x44] sm:$0xf] %vm629, %v812
    %829 = vst.msk [vmem:[#allocation6 + $0x58] sm:$0xf] %vm629, %v680
    %830 = vst.msk [vmem:[#allocation6 + $0x6c] sm:$0xf] %vm629, %v684
    %831 = vst.msk [vmem:[#allocation6 + $0x80] sm:$0xf] %vm629, %v688
    %832 = vst.msk [vmem:[#allocation6 + $0x94] sm:$0xf] %vm629, %v816
    %v833 = vrot.slane %v621, 6
    %v834 = vrot.slane %v833, 4
    %v835 = vrot.slane %v807, 6
    %v836 = vsel %vm724, %v834, %v835
    %v837 = vrot.slane %v627, 6
    %v838 = vrot.slane %v837, 4
    %v839 = vrot.slane %v808, 6
    %v840 = vsel %vm724, %v838, %v839
    %841 = vrot.lane.b32.xlu0 %v732, 64
    %v842 = vpop.permute.xlu0 %841
    %843 = vrot.lane.b32.xlu0 %v736, 64
    %v844 = vpop.permute.xlu0 %843
    %845 = vrot.lane.b32.xlu0 %v740, 64
    %v846 = vpop.permute.xlu0 %845
    %847 = vrot.lane.b32.xlu0 %v836, 64
    %v848 = vpop.permute.xlu0 %847
    %849 = vrot.lane.b32.xlu0 %v748, 64
    %v850 = vpop.permute.xlu0 %849
    %851 = vrot.lane.b32.xlu0 %v752, 64
    %v852 = vpop.permute.xlu0 %851
    %853 = vrot.lane.b32.xlu0 %v756, 64
    %v854 = vpop.permute.xlu0 %853
    %855 = vrot.lane.b32.xlu0 %v840, 64
    %v856 = vpop.permute.xlu0 %855
    %865 = vst.msk [vmem:[#allocation6 + $0x8] sm:$0xf] %vm713, %v842
    %866 = vst.msk [vmem:[#allocation6 + $0x1c] sm:$0xf] %vm713, %v844
    %867 = vst.msk [vmem:[#allocation6 + $0x30] sm:$0xf] %vm713, %v846
    %868 = vst.msk [vmem:[#allocation6 + $0x44] sm:$0xf] %vm713, %v848
    %869 = vst.msk [vmem:[#allocation6 + $0x58] sm:$0xf] %vm713, %v850
    %870 = vst.msk [vmem:[#allocation6 + $0x6c] sm:$0xf] %vm713, %v852
    %871 = vst.msk [vmem:[#allocation6 + $0x80] sm:$0xf] %vm713, %v854
    %872 = vst.msk [vmem:[#allocation6 + $0x94] sm:$0xf] %vm713, %v856
    %873 = vst.msk [vmem:[#allocation6 + $0xc] sm:$0xf] %vm629, %v619
    %874 = vst.msk [vmem:[#allocation6 + $0x20] sm:$0xf] %vm629, %v620
    %875 = vst.msk [vmem:[#allocation6 + $0x34] sm:$0xf] %vm629, %v621
    %876 = vst.msk [vmem:[#allocation6 + $0x48] sm:$0xf] %vm629, %v622
    %877 = vst.msk [vmem:[#allocation6 + $0x5c] sm:$0xf] %vm629, %v625
    %878 = vst.msk [vmem:[#allocation6 + $0x70] sm:$0xf] %vm629, %v626
    %879 = vst.msk [vmem:[#allocation6 + $0x84] sm:$0xf] %vm629, %v627
    %880 = vst.msk [vmem:[#allocation6 + $0x98] sm:$0xf] %vm629, %v628
    %v883 = vrot.slane %v622, 4
    %v884 = vrot.slane %v628, 4
    %v885 = vrot.slane %v622, 5
    %v886 = vrot.slane %v885, 4
    %v887 = vrot.slane %v883, 5
    %v888 = vsel %vm656, %v886, %v887
    %v889 = vrot.slane %v628, 5
    %v890 = vrot.slane %v889, 4
    %v891 = vrot.slane %v884, 5
    %v892 = vsel %vm656, %v890, %v891
    %893 = vrot.lane.b32.xlu0 %v812, 64
    %v894 = vpop.permute.xlu0 %893
    %895 = vrot.lane.b32.xlu0 %v888, 64
    %v896 = vpop.permute.xlu0 %895
    %897 = vrot.lane.b32.xlu0 %v816, 64
    %v898 = vpop.permute.xlu0 %897
    %899 = vrot.lane.b32.xlu0 %v892, 64
    %v900 = vpop.permute.xlu0 %899
    %905 = vst.msk [vmem:[#allocation6 + $0xc] sm:$0xf] %vm713, %v694
    %906 = vst.msk [vmem:[#allocation6 + $0x20] sm:$0xf] %vm713, %v696
    %907 = vst.msk [vmem:[#allocation6 + $0x34] sm:$0xf] %vm713, %v894
    %908 = vst.msk [vmem:[#allocation6 + $0x48] sm:$0xf] %vm713, %v896
    %909 = vst.msk [vmem:[#allocation6 + $0x5c] sm:$0xf] %vm713, %v702
    %910 = vst.msk [vmem:[#allocation6 + $0x70] sm:$0xf] %vm713, %v704
    %911 = vst.msk [vmem:[#allocation6 + $0x84] sm:$0xf] %vm713, %v898
    %912 = vst.msk [vmem:[#allocation6 + $0x98] sm:$0xf] %vm713, %v900
    %v913 = vrot.slane %v622, 6
    %v914 = vrot.slane %v913, 4
    %v915 = vrot.slane %v883, 6
    %v916 = vsel %vm724, %v914, %v915
    %v917 = vrot.slane %v628, 6
    %v918 = vrot.slane %v917, 4
    %v919 = vrot.slane %v884, 6
    %v920 = vsel %vm724, %v918, %v919
    %925 = vst.msk [vmem:[#allocation6 + $0x10] sm:$0xf] %vm629, %v736
    %926 = vst.msk [vmem:[#allocation6 + $0x24] sm:$0xf] %vm629, %v740
    %927 = vst.msk [vmem:[#allocation6 + $0x38] sm:$0xf] %vm629, %v836
    %928 = vst.msk [vmem:[#allocation6 + $0x4c] sm:$0xf] %vm629, %v916
    %929 = vst.msk [vmem:[#allocation6 + $0x60] sm:$0xf] %vm629, %v752
    %930 = vst.msk [vmem:[#allocation6 + $0x74] sm:$0xf] %vm629, %v756
    %931 = vst.msk [vmem:[#allocation6 + $0x88] sm:$0xf] %vm629, %v840
    %932 = vst.msk [vmem:[#allocation6 + $0x9c] sm:$0xf] %vm629, %v920
    %v933 = vld [vmem:[#allocation6] sm:$0xff]
    %v934 = vld [vmem:[#allocation6 + $0x8] sm:$0xff]
    %v935 = vld [vmem:[#allocation6 + $0x10] sm:$0xf]
    %v936 = vld [vmem:[#allocation6 + $0x14] sm:$0xff]
    %v937 = vld [vmem:[#allocation6 + $0x1c] sm:$0xff]
    %v938 = vld [vmem:[#allocation6 + $0x24] sm:$0xf]
    %v939 = vld [vmem:[#allocation6 + $0x28] sm:$0xff]
    %v940 = vld [vmem:[#allocation6 + $0x30] sm:$0xff]
    %v941 = vld [vmem:[#allocation6 + $0x38] sm:$0xf]
    %v942 = vld [vmem:[#allocation6 + $0x3c] sm:$0xff]
    %v943 = vld [vmem:[#allocation6 + $0x44] sm:$0xff]
    %v944 = vld [vmem:[#allocation6 + $0x4c] sm:$0xf]
    %v945 = vld [vmem:[#allocation6 + $0x50] sm:$0xff]
    %v946 = vld [vmem:[#allocation6 + $0x58] sm:$0xff]
    %v947 = vld [vmem:[#allocation6 + $0x60] sm:$0xf]
    %v948 = vld [vmem:[#allocation6 + $0x64] sm:$0xff]
    %v949 = vld [vmem:[#allocation6 + $0x6c] sm:$0xff]
    %v950 = vld [vmem:[#allocation6 + $0x74] sm:$0xf]
    %v951 = vld [vmem:[#allocation6 + $0x78] sm:$0xff]
    %v952 = vld [vmem:[#allocation6 + $0x80] sm:$0xff]
    %v953 = vld [vmem:[#allocation6 + $0x88] sm:$0xf]
    %v954 = vld [vmem:[#allocation6 + $0x8c] sm:$0xff]
    %v955 = vld [vmem:[#allocation6 + $0x94] sm:$0xff]
    %v956 = vld [vmem:[#allocation6 + $0x9c] sm:$0xf]
    %981 = vst [vmem:[#allocation1] ss:$2 sm:$0xff] %v933
    %s982 = scalar_lea.vmem [#allocation1], 1
    %983 = vst [vmem:[%s982] ss:$2 sm:$0xff] %v936
    %s984 = scalar_lea.vmem [#allocation1], 16
    %985 = vst [vmem:[%s984] ss:$2 sm:$0xff] %v934
    %s986 = scalar_lea.vmem [#allocation1], 17
    %987 = vst [vmem:[%s986] ss:$2 sm:$0xff] %v937
    %s988 = scalar_lea.vmem [#allocation1], 32
    %989 = vst [vmem:[%s988] ss:$2 sm:$0xff] %v935
    %s990 = scalar_lea.vmem [#allocation1], 33
    %991 = vst [vmem:[%s990] ss:$2 sm:$0xff] %v938
    %s992 = scalar_lea.vmem [#allocation1], 48
    %993 = vst [vmem:[%s992] ss:$2 sm:$0xff] %v939
    %s994 = scalar_lea.vmem [#allocation1], 49
    %995 = vst [vmem:[%s994] ss:$2 sm:$0xff] %v942
    %v996 = vld.sshfl [vmem:[#allocation1] sm:$0xff pattern:$0x75316420]
    %v997 = vld.sshfl [vmem:[#allocation1 + $0x8] sm:$0xff pattern:$0x75316420]
    %v998 = vld.sshfl [vmem:[#allocation1 + $0x10] sm:$0xff pattern:$0x75316420]
    %v999 = vld.sshfl [vmem:[#allocation1 + $0x18] sm:$0xff pattern:$0x75316420]
    %v1000 = vld.sshfl [vmem:[#allocation1 + $0x20] sm:$0xff pattern:$0x75316420]
    %v1001 = vld.sshfl [vmem:[#allocation1 + $0x30] sm:$0xff pattern:$0x75316420]
    %v1002 = vld.sshfl [vmem:[#allocation1 + $0x38] sm:$0xff pattern:$0x75316420]
    %1003 = vst [vmem:[#allocation1] ss:$2 sm:$0xff] %v940
    %1004 = vst [vmem:[%s982] ss:$2 sm:$0xff] %v943
    %1005 = vst [vmem:[%s984] ss:$2 sm:$0xff] %v941
    %1006 = vst [vmem:[%s986] ss:$2 sm:$0xff] %v944
    %1007 = vst [vmem:[%s988] ss:$2 sm:$0xff] %v945
    %1008 = vst [vmem:[%s990] ss:$2 sm:$0xff] %v948
    %1009 = vst [vmem:[%s992] ss:$2 sm:$0xff] %v946
    %1010 = vst [vmem:[%s994] ss:$2 sm:$0xff] %v949
    %v1011 = vld.sshfl [vmem:[#allocation1] sm:$0xff pattern:$0x75316420]
    %v1012 = vld.sshfl [vmem:[#allocation1 + $0x8] sm:$0xff pattern:$0x75316420]
    %v1013 = vld.sshfl [vmem:[#allocation1 + $0x10] sm:$0xff pattern:$0x75316420]
    %v1014 = vld.sshfl [vmem:[#allocation1 + $0x20] sm:$0xff pattern:$0x75316420]
    %v1015 = vld.sshfl [vmem:[#allocation1 + $0x28] sm:$0xff pattern:$0x75316420]
    %v1016 = vld.sshfl [vmem:[#allocation1 + $0x30] sm:$0xff pattern:$0x75316420]
    %v1017 = vld.sshfl [vmem:[#allocation1 + $0x38] sm:$0xff pattern:$0x75316420]
    %1018 = vst [vmem:[#allocation1] ss:$2 sm:$0xff] %v947
    %1019 = vst [vmem:[%s982] ss:$2 sm:$0xff] %v950
    %1020 = vst [vmem:[%s984] ss:$2 sm:$0xff] %v951
    %1021 = vst [vmem:[%s986] ss:$2 sm:$0xff] %v954
    %1022 = vst [vmem:[%s988] ss:$2 sm:$0xff] %v952
    %1023 = vst [vmem:[%s990] ss:$2 sm:$0xff] %v955
    %1024 = vst [vmem:[%s992] ss:$2 sm:$0xff] %v953
    %1025 = vst [vmem:[%s994] ss:$2 sm:$0xff] %v956
    %v1026 = vld.sshfl [vmem:[#allocation1] sm:$0xff pattern:$0x75316420]
    %v1027 = vld.sshfl [vmem:[#allocation1 + $0x10] sm:$0xff pattern:$0x75316420]
    %v1028 = vld.sshfl [vmem:[#allocation1 + $0x18] sm:$0xff pattern:$0x75316420]
    %v1029 = vld.sshfl [vmem:[#allocation1 + $0x20] sm:$0xff pattern:$0x75316420]
    %v1030 = vld.sshfl [vmem:[#allocation1 + $0x28] sm:$0xff pattern:$0x75316420]
    %v1031 = vld.sshfl [vmem:[#allocation1 + $0x30] sm:$0xff pattern:$0x75316420]
    %v1048 = vsel %vm277, %v1000, 0
    %v1050 = vsel %vm277, %v1013, 0
    %v1052 = vsel %vm277, %v1026, 0
    %v1054 = vsel %vm277, %v1031, 0
    %1056 = vmatpush.msra.mxu0 %v560
    %1057 = vmatpush.msra.mxu0 %v559
    %1058 = vmatpush.msra.mxu0 %v558
    %1059 = vmatpush.msra.mxu0 %v557
    %1060 = vmatpush.msra.mxu0 %v556
    %1061 = vmatpush.msra.mxu0 %v555
    %1062 = vmatpush.msra.mxu0 %v554
    %1063 = vmatpush.msra.mxu0 %v553
    %1064 = vmatpush.msra.mxu0 %v552
    %1065 = vmatpush.msra.mxu0 %v551
    %1066 = vmatpush.msra.mxu0 %v550
    %1067 = vmatpush.msra.mxu0 %v549
    %1068 = vmatpush.msra.mxu0 %v548
    %1069 = vmatpush.msra.mxu0 %v547
    %1070 = vmatpush.msra.mxu0 %v546
    %1071 = vmatpush.msra.mxu0 %v545
    %1072 = vmatmul.f32.gmra.mxu0 %v996
    %v1073 = vpop.f32.mrf.mxu0
    %v1074 = vadd.f32 0.0, %v1073
    %1075 = vmatmul.f32.gmra.mxu0 %v1001
    %v1076 = vpop.f32.mrf.mxu0
    %v1077 = vadd.f32 0.0, %v1076
    %1078 = vmatmul.f32.gmra.mxu0 %v1014
    %v1079 = vpop.f32.mrf.mxu0
    %v1080 = vadd.f32 0.0, %v1079
    %1081 = vmatmul.f32.gmra.mxu0 %v1027
    %v1082 = vpop.f32.mrf.mxu0
    %v1083 = vadd.f32 0.0, %v1082
    %1084 = vdwg.mxu0
    %1085 = vmatpush.msra.mxu0 %v576
    %1086 = vmatpush.msra.mxu0 %v575
    %1087 = vmatpush.msra.mxu0 %v574
    %1088 = vmatpush.msra.mxu0 %v573
    %1089 = vmatpush.msra.mxu0 %v572
    %1090 = vmatpush.msra.mxu0 %v571
    %1091 = vmatpush.msra.mxu0 %v570
    %1092 = vmatpush.msra.mxu0 %v569
    %1093 = vmatpush.msra.mxu0 %v568
    %1094 = vmatpush.msra.mxu0 %v567
    %1095 = vmatpush.msra.mxu0 %v566
    %1096 = vmatpush.msra.mxu0 %v565
    %1097 = vmatpush.msra.mxu0 %v564
    %1098 = vmatpush.msra.mxu0 %v563
    %1099 = vmatpush.msra.mxu0 %v562
    %1100 = vmatpush.msra.mxu0 %v561
    %1101 = vmatmul.f32.gmra.mxu0 %v997
    %v1102 = vpop.f32.mrf.mxu0
    %v1103 = vadd.f32 %v1074, %v1102
    %1104 = vmatmul.f32.gmra.mxu0 %v1002
    %v1105 = vpop.f32.mrf.mxu0
    %v1106 = vadd.f32 %v1077, %v1105
    %1107 = vmatmul.f32.gmra.mxu0 %v1015
    %v1108 = vpop.f32.mrf.mxu0
    %v1109 = vadd.f32 %v1080, %v1108
    %1110 = vmatmul.f32.gmra.mxu0 %v1028
    %v1111 = vpop.f32.mrf.mxu0
    %v1112 = vadd.f32 %v1083, %v1111
    %1113 = vdwg.mxu0
    %1114 = vmatpush.msra.mxu0 %v592
    %1115 = vmatpush.msra.mxu0 %v591
    %1116 = vmatpush.msra.mxu0 %v590
    %1117 = vmatpush.msra.mxu0 %v589
    %1118 = vmatpush.msra.mxu0 %v588
    %1119 = vmatpush.msra.mxu0 %v587
    %1120 = vmatpush.msra.mxu0 %v586
    %1121 = vmatpush.msra.mxu0 %v585
    %1122 = vmatpush.msra.mxu0 %v584
    %1123 = vmatpush.msra.mxu0 %v583
    %1124 = vmatpush.msra.mxu0 %v582
    %1125 = vmatpush.msra.mxu0 %v581
    %1126 = vmatpush.msra.mxu0 %v580
    %1127 = vmatpush.msra.mxu0 %v579
    %1128 = vmatpush.msra.mxu0 %v578
    %1129 = vmatpush.msra.mxu0 %v577
    %1130 = vmatmul.f32.gmra.mxu0 %v998
    %v1131 = vpop.f32.mrf.mxu0
    %v1132 = vadd.f32 %v1103, %v1131
    %1133 = vmatmul.f32.gmra.mxu0 %v1011
    %v1134 = vpop.f32.mrf.mxu0
    %v1135 = vadd.f32 %v1106, %v1134
    %1136 = vmatmul.f32.gmra.mxu0 %v1016
    %v1137 = vpop.f32.mrf.mxu0
    %v1138 = vadd.f32 %v1109, %v1137
    %1139 = vmatmul.f32.gmra.mxu0 %v1029
    %v1140 = vpop.f32.mrf.mxu0
    %v1141 = vadd.f32 %v1112, %v1140
    %1142 = vdwg.mxu0
    %1143 = vmatpush.msra.mxu0 %v608
    %1144 = vmatpush.msra.mxu0 %v607
    %1145 = vmatpush.msra.mxu0 %v606
    %1146 = vmatpush.msra.mxu0 %v605
    %1147 = vmatpush.msra.mxu0 %v604
    %1148 = vmatpush.msra.mxu0 %v603
    %1149 = vmatpush.msra.mxu0 %v602
    %1150 = vmatpush.msra.mxu0 %v601
    %1151 = vmatpush.msra.mxu0 %v600
    %1152 = vmatpush.msra.mxu0 %v599
    %1153 = vmatpush.msra.mxu0 %v598
    %1154 = vmatpush.msra.mxu0 %v597
    %1155 = vmatpush.msra.mxu0 %v596
    %1156 = vmatpush.msra.mxu0 %v595
    %1157 = vmatpush.msra.mxu0 %v594
    %1158 = vmatpush.msra.mxu0 %v593
    %1159 = vmatmul.f32.gmra.mxu0 %v999
    %v1160 = vpop.f32.mrf.mxu0
    %v1161 = vadd.f32 %v1132, %v1160
    %1162 = vmatmul.f32.gmra.mxu0 %v1012
    %v1163 = vpop.f32.mrf.mxu0
    %v1164 = vadd.f32 %v1135, %v1163
    %1165 = vmatmul.f32.gmra.mxu0 %v1017
    %v1166 = vpop.f32.mrf.mxu0
    %v1167 = vadd.f32 %v1138, %v1166
    %1168 = vmatmul.f32.gmra.mxu0 %v1030
    %v1169 = vpop.f32.mrf.mxu0
    %v1170 = vadd.f32 %v1141, %v1169
    %1171 = vdwg.mxu0
    %1172 = vmatpush.msra.mxu0 0.0
    %1173 = vmatpush.msra.mxu0 0.0
    %1174 = vmatpush.msra.mxu0 0.0
    %1175 = vmatpush.msra.mxu0 0.0
    %1176 = vmatpush.msra.mxu0 0.0
    %1177 = vmatpush.msra.mxu0 0.0
    %1178 = vmatpush.msra.mxu0 0.0
    %1179 = vmatpush.msra.mxu0 0.0
    %1180 = vmatpush.msra.mxu0 %v616
    %1181 = vmatpush.msra.mxu0 %v615
    %1182 = vmatpush.msra.mxu0 %v614
    %1183 = vmatpush.msra.mxu0 %v613
    %1184 = vmatpush.msra.mxu0 %v612
    %1185 = vmatpush.msra.mxu0 %v611
    %1186 = vmatpush.msra.mxu0 %v610
    %1187 = vmatpush.msra.mxu0 %v609
    %1188 = vmatmul.f32.gmra.mxu0 %v1048
    %v1189 = vpop.f32.mrf.mxu0
    %v1190 = vadd.f32 %v1161, %v1189
    %1191 = vmatmul.f32.gmra.mxu0 %v1050
    %v1192 = vpop.f32.mrf.mxu0
    %v1193 = vadd.f32 %v1164, %v1192
    %1194 = vmatmul.f32.gmra.mxu0 %v1052
    %v1195 = vpop.f32.mrf.mxu0
    %v1196 = vadd.f32 %v1167, %v1195
    %1197 = vmatmul.f32.gmra.mxu0 %v1054
    %v1198 = vpop.f32.mrf.mxu0
    %v1199 = vadd.f32 %v1170, %v1198
    %1200 = vdwg.mxu0
    %v1201 = vmul.f32 %v1190, %v224
    %v1202 = vmul.f32 %v1193, %v224
    %v1203 = vmul.f32 %v1196, %v224
    %v1204 = vmul.f32 %v1199, %v224
    %v1205 = vadd.f32 %v1201, %v243
    %v1206 = vadd.f32 %v1202, %v243
    %v1207 = vadd.f32 %v1203, %v243
    %v1208 = vadd.f32 %v1204, %v243
    %v1209 = vmax.f32 %v1205, 0.0
    %v1210 = vmax.f32 %v1206, 0.0
    %v1211 = vmax.f32 %v1207, 0.0
    %v1212 = vmax.f32 %v1208, 0.0
    %1213 = vst.msk [vmem:[#allocation4] sm:$0x3f] %vm336, 0.0
    %1214 = vst.msk [vmem:[#allocation4 + $0x8] sm:$0x3f] %vm336, 0.0
    %1215 = vst.msk [vmem:[#allocation4 + $0x10] sm:$0x3f] %vm336, 0.0
    %1216 = vst.msk [vmem:[#allocation4 + $0x18] sm:$0x3f] %vm336, 0.0
    %1217 = vst.msk [vmem:[#allocation4 + $0x20] sm:$0x3f] %vm336, 0.0
    %1218 = vst.msk [vmem:[#allocation4 + $0x28] sm:$0x3f] %vm336, 0.0
    %1219 = vst.msk [vmem:[#allocation4 + $0x30] sm:$0x3f] %vm336, 0.0
    %1220 = vst.msk [vmem:[#allocation4 + $0x38] sm:$0x3f] %vm336, 0.0
    %1221 = vst.msk [vmem:[#allocation4 + $0x40] sm:$0x3f] %vm336, 0.0
    %1222 = vst.msk [vmem:[#allocation4 + $0x48] sm:$0x3f] %vm336, 0.0
    %1223 = vst.msk [vmem:[#allocation4 + $0x50] sm:$0x3f] %vm336, 0.0
    %1224 = vst.msk [vmem:[#allocation4 + $0x58] sm:$0x3f] %vm336, 0.0
    %v1229 = vrot.slane %v1209, 4
    %v1230 = vrot.slane %v1210, 4
    %v1231 = vrot.slane %v1211, 4
    %v1232 = vrot.slane %v1212, 4
    %s1237 = scalar_lea.vmem [#allocation4], 8
    %1238 = vst.msk [vmem:[%s1237 + $0x1] sm:$0xf] %vm629, %v1209
    %1239 = vst.msk [vmem:[%s1237 + $0x9] sm:$0xf] %vm629, %v1229
    %1240 = vst.msk [vmem:[%s1237 + $0x11] sm:$0xf] %vm629, %v1210
    %1241 = vst.msk [vmem:[%s1237 + $0x19] sm:$0xf] %vm629, %v1230
    %1242 = vst.msk [vmem:[%s1237 + $0x31] sm:$0xf] %vm629, %v1211
    %1243 = vst.msk [vmem:[%s1237 + $0x39] sm:$0xf] %vm629, %v1231
    %1244 = vst.msk [vmem:[%s1237 + $0x41] sm:$0xf] %vm629, %v1212
    %1245 = vst.msk [vmem:[%s1237 + $0x49] sm:$0xf] %vm629, %v1232
    %v1246 = vld [vmem:[#allocation4] sm:$0x3f]
    %v1247 = vld [vmem:[#allocation4 + $0x8] sm:$0x3f]
    %v1248 = vld [vmem:[#allocation4 + $0x10] sm:$0x3f]
    %v1249 = vld [vmem:[#allocation4 + $0x18] sm:$0x3f]
    %v1250 = vld [vmem:[#allocation4 + $0x20] sm:$0x3f]
    %v1251 = vld [vmem:[#allocation4 + $0x28] sm:$0x3f]
    %v1252 = vld [vmem:[#allocation4 + $0x30] sm:$0x3f]
    %v1253 = vld [vmem:[#allocation4 + $0x38] sm:$0x3f]
    %v1254 = vld [vmem:[#allocation4 + $0x40] sm:$0x3f]
    %v1255 = vld [vmem:[#allocation4 + $0x48] sm:$0x3f]
    %v1256 = vld [vmem:[#allocation4 + $0x50] sm:$0x3f]
    %v1257 = vld [vmem:[#allocation4 + $0x58] sm:$0x3f]
    %1258 = vst.msk [vmem:[#allocation6] sm:$0xf] %vm629, %v1246
    %1259 = vst.msk [vmem:[#allocation6 + $0x14] sm:$0xf] %vm629, %v1247
    %1260 = vst.msk [vmem:[#allocation6 + $0x28] sm:$0xf] %vm629, %v1248
    %1261 = vst.msk [vmem:[#allocation6 + $0x3c] sm:$0xf] %vm629, %v1249
    %1262 = vst.msk [vmem:[#allocation6 + $0x50] sm:$0xf] %vm629, %v1252
    %1263 = vst.msk [vmem:[#allocation6 + $0x64] sm:$0xf] %vm629, %v1253
    %1264 = vst.msk [vmem:[#allocation6 + $0x78] sm:$0xf] %vm629, %v1254
    %1265 = vst.msk [vmem:[#allocation6 + $0x8c] sm:$0xf] %vm629, %v1255
    %v1274 = vrot.slane %v1246, 4
    %v1275 = vrot.slane %v1247, 4
    %v1276 = vrot.slane %v1248, 4
    %v1277 = vrot.slane %v1249, 4
    %v1278 = vrot.slane %v1252, 4
    %v1279 = vrot.slane %v1253, 4
    %v1280 = vrot.slane %v1254, 4
    %v1281 = vrot.slane %v1255, 4
    %v1282 = vrot.slane %v1246, 5
    %v1283 = vrot.slane %v1282, 4
    %v1284 = vrot.slane %v1274, 5
    %v1285 = vsel %vm656, %v1283, %v1284
    %v1286 = vrot.slane %v1247, 5
    %v1287 = vrot.slane %v1286, 4
    %v1288 = vrot.slane %v1275, 5
    %v1289 = vsel %vm656, %v1287, %v1288
    %v1290 = vrot.slane %v1248, 5
    %v1291 = vrot.slane %v1290, 4
    %v1292 = vrot.slane %v1276, 5
    %v1293 = vsel %vm656, %v1291, %v1292
    %v1294 = vrot.slane %v1249, 5
    %v1295 = vrot.slane %v1294, 4
    %v1296 = vrot.slane %v1277, 5
    %v1297 = vsel %vm656, %v1295, %v1296
    %v1298 = vrot.slane %v1252, 5
    %v1299 = vrot.slane %v1298, 4
    %v1300 = vrot.slane %v1278, 5
    %v1301 = vsel %vm656, %v1299, %v1300
    %v1302 = vrot.slane %v1253, 5
    %v1303 = vrot.slane %v1302, 4
    %v1304 = vrot.slane %v1279, 5
    %v1305 = vsel %vm656, %v1303, %v1304
    %v1306 = vrot.slane %v1254, 5
    %v1307 = vrot.slane %v1306, 4
    %v1308 = vrot.slane %v1280, 5
    %v1309 = vsel %vm656, %v1307, %v1308
    %v1310 = vrot.slane %v1255, 5
    %v1311 = vrot.slane %v1310, 4
    %v1312 = vrot.slane %v1281, 5
    %v1313 = vsel %vm656, %v1311, %v1312
    %1314 = vrot.lane.b32.xlu0 %v1285, 64
    %v1315 = vpop.permute.xlu0 %1314
    %1316 = vrot.lane.b32.xlu0 %v1289, 64
    %v1317 = vpop.permute.xlu0 %1316
    %1318 = vrot.lane.b32.xlu0 %v1293, 64
    %v1319 = vpop.permute.xlu0 %1318
    %1320 = vrot.lane.b32.xlu0 %v1297, 64
    %v1321 = vpop.permute.xlu0 %1320
    %1322 = vrot.lane.b32.xlu0 %v1301, 64
    %v1323 = vpop.permute.xlu0 %1322
    %1324 = vrot.lane.b32.xlu0 %v1305, 64
    %v1325 = vpop.permute.xlu0 %1324
    %1326 = vrot.lane.b32.xlu0 %v1309, 64
    %v1327 = vpop.permute.xlu0 %1326
    %1328 = vrot.lane.b32.xlu0 %v1313, 64
    %v1329 = vpop.permute.xlu0 %1328
    %1338 = vst.msk [vmem:[#allocation6] sm:$0xf] %vm713, %v1315
    %1339 = vst.msk [vmem:[#allocation6 + $0x14] sm:$0xf] %vm713, %v1317
    %1340 = vst.msk [vmem:[#allocation6 + $0x28] sm:$0xf] %vm713, %v1319
    %1341 = vst.msk [vmem:[#allocation6 + $0x3c] sm:$0xf] %vm713, %v1321
    %1342 = vst.msk [vmem:[#allocation6 + $0x50] sm:$0xf] %vm713, %v1323
    %1343 = vst.msk [vmem:[#allocation6 + $0x64] sm:$0xf] %vm713, %v1325
    %1344 = vst.msk [vmem:[#allocation6 + $0x78] sm:$0xf] %vm713, %v1327
    %1345 = vst.msk [vmem:[#allocation6 + $0x8c] sm:$0xf] %vm713, %v1329
    %v1346 = vrot.slane %v1246, 6
    %v1347 = vrot.slane %v1346, 4
    %v1348 = vrot.slane %v1274, 6
    %v1349 = vsel %vm724, %v1347, %v1348
    %v1350 = vrot.slane %v1247, 6
    %v1351 = vrot.slane %v1350, 4
    %v1352 = vrot.slane %v1275, 6
    %v1353 = vsel %vm724, %v1351, %v1352
    %v1354 = vrot.slane %v1248, 6
    %v1355 = vrot.slane %v1354, 4
    %v1356 = vrot.slane %v1276, 6
    %v1357 = vsel %vm724, %v1355, %v1356
    %v1358 = vrot.slane %v1249, 6
    %v1359 = vrot.slane %v1358, 4
    %v1360 = vrot.slane %v1277, 6
    %v1361 = vsel %vm724, %v1359, %v1360
    %v1362 = vrot.slane %v1252, 6
    %v1363 = vrot.slane %v1362, 4
    %v1364 = vrot.slane %v1278, 6
    %v1365 = vsel %vm724, %v1363, %v1364
    %v1366 = vrot.slane %v1253, 6
    %v1367 = vrot.slane %v1366, 4
    %v1368 = vrot.slane %v1279, 6
    %v1369 = vsel %vm724, %v1367, %v1368
    %v1370 = vrot.slane %v1254, 6
    %v1371 = vrot.slane %v1370, 4
    %v1372 = vrot.slane %v1280, 6
    %v1373 = vsel %vm724, %v1371, %v1372
    %v1374 = vrot.slane %v1255, 6
    %v1375 = vrot.slane %v1374, 4
    %v1376 = vrot.slane %v1281, 6
    %v1377 = vsel %vm724, %v1375, %v1376
    %1386 = vst.msk [vmem:[#allocation6 + $0x4] sm:$0xf] %vm629, %v1349
    %1387 = vst.msk [vmem:[#allocation6 + $0x18] sm:$0xf] %vm629, %v1353
    %1388 = vst.msk [vmem:[#allocation6 + $0x2c] sm:$0xf] %vm629, %v1357
    %1389 = vst.msk [vmem:[#allocation6 + $0x40] sm:$0xf] %vm629, %v1361
    %1390 = vst.msk [vmem:[#allocation6 + $0x54] sm:$0xf] %vm629, %v1365
    %1391 = vst.msk [vmem:[#allocation6 + $0x68] sm:$0xf] %vm629, %v1369
    %1392 = vst.msk [vmem:[#allocation6 + $0x7c] sm:$0xf] %vm629, %v1373
    %1393 = vst.msk [vmem:[#allocation6 + $0x90] sm:$0xf] %vm629, %v1377
    %1396 = vrot.lane.b32.xlu0 %v1247, 64
    %v1397 = vpop.permute.xlu0 %1396
    %1398 = vrot.lane.b32.xlu0 %v1248, 64
    %v1399 = vpop.permute.xlu0 %1398
    %1400 = vrot.lane.b32.xlu0 %v1249, 64
    %v1401 = vpop.permute.xlu0 %1400
    %1402 = vrot.lane.b32.xlu0 %v1250, 64
    %v1403 = vpop.permute.xlu0 %1402
    %1404 = vrot.lane.b32.xlu0 %v1253, 64
    %v1405 = vpop.permute.xlu0 %1404
    %1406 = vrot.lane.b32.xlu0 %v1254, 64
    %v1407 = vpop.permute.xlu0 %1406
    %1408 = vrot.lane.b32.xlu0 %v1255, 64
    %v1409 = vpop.permute.xlu0 %1408
    %1410 = vrot.lane.b32.xlu0 %v1256, 64
    %v1411 = vpop.permute.xlu0 %1410
    %1420 = vst.msk [vmem:[#allocation6 + $0x4] sm:$0xf] %vm713, %v1397
    %1421 = vst.msk [vmem:[#allocation6 + $0x18] sm:$0xf] %vm713, %v1399
    %1422 = vst.msk [vmem:[#allocation6 + $0x2c] sm:$0xf] %vm713, %v1401
    %1423 = vst.msk [vmem:[#allocation6 + $0x40] sm:$0xf] %vm713, %v1403
    %1424 = vst.msk [vmem:[#allocation6 + $0x54] sm:$0xf] %vm713, %v1405
    %1425 = vst.msk [vmem:[#allocation6 + $0x68] sm:$0xf] %vm713, %v1407
    %1426 = vst.msk [vmem:[#allocation6 + $0x7c] sm:$0xf] %vm713, %v1409
    %1427 = vst.msk [vmem:[#allocation6 + $0x90] sm:$0xf] %vm713, %v1411
    %v1428 = vrot.slane %v1250, 4
    %v1429 = vrot.slane %v1256, 4
    %v1430 = vrot.slane %v1250, 5
    %v1431 = vrot.slane %v1430, 4
    %v1432 = vrot.slane %v1428, 5
    %v1433 = vsel %vm656, %v1431, %v1432
    %v1434 = vrot.slane %v1256, 5
    %v1435 = vrot.slane %v1434, 4
    %v1436 = vrot.slane %v1429, 5
    %v1437 = vsel %vm656, %v1435, %v1436
    %1446 = vst.msk [vmem:[#allocation6 + $0x8] sm:$0xf] %vm629, %v1289
    %1447 = vst.msk [vmem:[#allocation6 + $0x1c] sm:$0xf] %vm629, %v1293
    %1448 = vst.msk [vmem:[#allocation6 + $0x30] sm:$0xf] %vm629, %v1297
    %1449 = vst.msk [vmem:[#allocation6 + $0x44] sm:$0xf] %vm629, %v1433
    %1450 = vst.msk [vmem:[#allocation6 + $0x58] sm:$0xf] %vm629, %v1305
    %1451 = vst.msk [vmem:[#allocation6 + $0x6c] sm:$0xf] %vm629, %v1309
    %1452 = vst.msk [vmem:[#allocation6 + $0x80] sm:$0xf] %vm629, %v1313
    %1453 = vst.msk [vmem:[#allocation6 + $0x94] sm:$0xf] %vm629, %v1437
    %v1454 = vrot.slane %v1250, 6
    %v1455 = vrot.slane %v1454, 4
    %v1456 = vrot.slane %v1428, 6
    %v1457 = vsel %vm724, %v1455, %v1456
    %v1458 = vrot.slane %v1256, 6
    %v1459 = vrot.slane %v1458, 4
    %v1460 = vrot.slane %v1429, 6
    %v1461 = vsel %vm724, %v1459, %v1460
    %1462 = vrot.lane.b32.xlu0 %v1353, 64
    %v1463 = vpop.permute.xlu0 %1462
    %1464 = vrot.lane.b32.xlu0 %v1357, 64
    %v1465 = vpop.permute.xlu0 %1464
    %1466 = vrot.lane.b32.xlu0 %v1361, 64
    %v1467 = vpop.permute.xlu0 %1466
    %1468 = vrot.lane.b32.xlu0 %v1457, 64
    %v1469 = vpop.permute.xlu0 %1468
    %1470 = vrot.lane.b32.xlu0 %v1369, 64
    %v1471 = vpop.permute.xlu0 %1470
    %1472 = vrot.lane.b32.xlu0 %v1373, 64
    %v1473 = vpop.permute.xlu0 %1472
    %1474 = vrot.lane.b32.xlu0 %v1377, 64
    %v1475 = vpop.permute.xlu0 %1474
    %1476 = vrot.lane.b32.xlu0 %v1461, 64
    %v1477 = vpop.permute.xlu0 %1476
    %1486 = vst.msk [vmem:[#allocation6 + $0x8] sm:$0xf] %vm713, %v1463
    %1487 = vst.msk [vmem:[#allocation6 + $0x1c] sm:$0xf] %vm713, %v1465
    %1488 = vst.msk [vmem:[#allocation6 + $0x30] sm:$0xf] %vm713, %v1467
    %1489 = vst.msk [vmem:[#allocation6 + $0x44] sm:$0xf] %vm713, %v1469
    %1490 = vst.msk [vmem:[#allocation6 + $0x58] sm:$0xf] %vm713, %v1471
    %1491 = vst.msk [vmem:[#allocation6 + $0x6c] sm:$0xf] %vm713, %v1473
    %1492 = vst.msk [vmem:[#allocation6 + $0x80] sm:$0xf] %vm713, %v1475
    %1493 = vst.msk [vmem:[#allocation6 + $0x94] sm:$0xf] %vm713, %v1477
    %1494 = vst.msk [vmem:[#allocation6 + $0xc] sm:$0xf] %vm629, %v1248
    %1495 = vst.msk [vmem:[#allocation6 + $0x20] sm:$0xf] %vm629, %v1249
    %1496 = vst.msk [vmem:[#allocation6 + $0x34] sm:$0xf] %vm629, %v1250
    %1497 = vst.msk [vmem:[#allocation6 + $0x48] sm:$0xf] %vm629, %v1251
    %1498 = vst.msk [vmem:[#allocation6 + $0x5c] sm:$0xf] %vm629, %v1254
    %1499 = vst.msk [vmem:[#allocation6 + $0x70] sm:$0xf] %vm629, %v1255
    %1500 = vst.msk [vmem:[#allocation6 + $0x84] sm:$0xf] %vm629, %v1256
    %1501 = vst.msk [vmem:[#allocation6 + $0x98] sm:$0xf] %vm629, %v1257
    %v1504 = vrot.slane %v1251, 4
    %v1505 = vrot.slane %v1257, 4
    %v1506 = vrot.slane %v1251, 5
    %v1507 = vrot.slane %v1506, 4
    %v1508 = vrot.slane %v1504, 5
    %v1509 = vsel %vm656, %v1507, %v1508
    %v1510 = vrot.slane %v1257, 5
    %v1511 = vrot.slane %v1510, 4
    %v1512 = vrot.slane %v1505, 5
    %v1513 = vsel %vm656, %v1511, %v1512
    %1514 = vrot.lane.b32.xlu0 %v1433, 64
    %v1515 = vpop.permute.xlu0 %1514
    %1516 = vrot.lane.b32.xlu0 %v1509, 64
    %v1517 = vpop.permute.xlu0 %1516
    %1518 = vrot.lane.b32.xlu0 %v1437, 64
    %v1519 = vpop.permute.xlu0 %1518
    %1520 = vrot.lane.b32.xlu0 %v1513, 64
    %v1521 = vpop.permute.xlu0 %1520
    %1526 = vst.msk [vmem:[#allocation6 + $0xc] sm:$0xf] %vm713, %v1319
    %1527 = vst.msk [vmem:[#allocation6 + $0x20] sm:$0xf] %vm713, %v1321
    %1528 = vst.msk [vmem:[#allocation6 + $0x34] sm:$0xf] %vm713, %v1515
    %1529 = vst.msk [vmem:[#allocation6 + $0x48] sm:$0xf] %vm713, %v1517
    %1530 = vst.msk [vmem:[#allocation6 + $0x5c] sm:$0xf] %vm713, %v1327
    %1531 = vst.msk [vmem:[#allocation6 + $0x70] sm:$0xf] %vm713, %v1329
    %1532 = vst.msk [vmem:[#allocation6 + $0x84] sm:$0xf] %vm713, %v1519
    %1533 = vst.msk [vmem:[#allocation6 + $0x98] sm:$0xf] %vm713, %v1521
    %v1534 = vrot.slane %v1251, 6
    %v1535 = vrot.slane %v1534, 4
    %v1536 = vrot.slane %v1504, 6
    %v1537 = vsel %vm724, %v1535, %v1536
    %v1538 = vrot.slane %v1257, 6
    %v1539 = vrot.slane %v1538, 4
    %v1540 = vrot.slane %v1505, 6
    %v1541 = vsel %vm724, %v1539, %v1540
    %1546 = vst.msk [vmem:[#allocation6 + $0x10] sm:$0xf] %vm629, %v1357
    %1547 = vst.msk [vmem:[#allocation6 + $0x24] sm:$0xf] %vm629, %v1361
    %1548 = vst.msk [vmem:[#allocation6 + $0x38] sm:$0xf] %vm629, %v1457
    %1549 = vst.msk [vmem:[#allocation6 + $0x4c] sm:$0xf] %vm629, %v1537
    %1550 = vst.msk [vmem:[#allocation6 + $0x60] sm:$0xf] %vm629, %v1373
    %1551 = vst.msk [vmem:[#allocation6 + $0x74] sm:$0xf] %vm629, %v1377
    %1552 = vst.msk [vmem:[#allocation6 + $0x88] sm:$0xf] %vm629, %v1461
    %1553 = vst.msk [vmem:[#allocation6 + $0x9c] sm:$0xf] %vm629, %v1541
    %v1554 = vld [vmem:[#allocation6] sm:$0xff]
    %v1555 = vld [vmem:[#allocation6 + $0x8] sm:$0xff]
    %v1556 = vld [vmem:[#allocation6 + $0x10] sm:$0xf]
    %v1557 = vld [vmem:[#allocation6 + $0x14] sm:$0xff]
    %v1558 = vld [vmem:[#allocation6 + $0x1c] sm:$0xff]
    %v1559 = vld [vmem:[#allocation6 + $0x24] sm:$0xf]
    %v1560 = vld [vmem:[#allocation6 + $0x28] sm:$0xff]
    %v1561 = vld [vmem:[#allocation6 + $0x30] sm:$0xff]
    %v1562 = vld [vmem:[#allocation6 + $0x38] sm:$0xf]
    %v1563 = vld [vmem:[#allocation6 + $0x3c] sm:$0xff]
    %v1564 = vld [vmem:[#allocation6 + $0x44] sm:$0xff]
    %v1565 = vld [vmem:[#allocation6 + $0x4c] sm:$0xf]
    %v1566 = vld [vmem:[#allocation6 + $0x50] sm:$0xff]
    %v1567 = vld [vmem:[#allocation6 + $0x58] sm:$0xff]
    %v1568 = vld [vmem:[#allocation6 + $0x60] sm:$0xf]
    %v1569 = vld [vmem:[#allocation6 + $0x64] sm:$0xff]
    %v1570 = vld [vmem:[#allocation6 + $0x6c] sm:$0xff]
    %v1571 = vld [vmem:[#allocation6 + $0x74] sm:$0xf]
    %v1572 = vld [vmem:[#allocation6 + $0x78] sm:$0xff]
    %v1573 = vld [vmem:[#allocation6 + $0x80] sm:$0xff]
    %v1574 = vld [vmem:[#allocation6 + $0x88] sm:$0xf]
    %v1575 = vld [vmem:[#allocation6 + $0x8c] sm:$0xff]
    %v1576 = vld [vmem:[#allocation6 + $0x94] sm:$0xff]
    %v1577 = vld [vmem:[#allocation6 + $0x9c] sm:$0xf]
    %1602 = vst [vmem:[#allocation1] ss:$2 sm:$0xff] %v1554
    %s1603 = scalar_lea.vmem [#allocation1], 1
    %1604 = vst [vmem:[%s1603] ss:$2 sm:$0xff] %v1557
    %s1605 = scalar_lea.vmem [#allocation1], 16
    %1606 = vst [vmem:[%s1605] ss:$2 sm:$0xff] %v1555
    %s1607 = scalar_lea.vmem [#allocation1], 17
    %1608 = vst [vmem:[%s1607] ss:$2 sm:$0xff] %v1558
    %s1609 = scalar_lea.vmem [#allocation1], 32
    %1610 = vst [vmem:[%s1609] ss:$2 sm:$0xff] %v1556
    %s1611 = scalar_lea.vmem [#allocation1], 33
    %1612 = vst [vmem:[%s1611] ss:$2 sm:$0xff] %v1559
    %s1613 = scalar_lea.vmem [#allocation1], 48
    %1614 = vst [vmem:[%s1613] ss:$2 sm:$0xff] %v1560
    %s1615 = scalar_lea.vmem [#allocation1], 49
    %1616 = vst [vmem:[%s1615] ss:$2 sm:$0xff] %v1563
    %v1617 = vld.sshfl [vmem:[#allocation1] sm:$0xff pattern:$0x75316420]
    %v1618 = vld.sshfl [vmem:[#allocation1 + $0x8] sm:$0xff pattern:$0x75316420]
    %v1619 = vld.sshfl [vmem:[#allocation1 + $0x10] sm:$0xff pattern:$0x75316420]
    %v1620 = vld.sshfl [vmem:[#allocation1 + $0x18] sm:$0xff pattern:$0x75316420]
    %v1621 = vld.sshfl [vmem:[#allocation1 + $0x20] sm:$0xff pattern:$0x75316420]
    %v1622 = vld.sshfl [vmem:[#allocation1 + $0x30] sm:$0xff pattern:$0x75316420]
    %v1623 = vld.sshfl [vmem:[#allocation1 + $0x38] sm:$0xff pattern:$0x75316420]
    %1624 = vst [vmem:[#allocation1] ss:$2 sm:$0xff] %v1561
    %1625 = vst [vmem:[%s1603] ss:$2 sm:$0xff] %v1564
    %1626 = vst [vmem:[%s1605] ss:$2 sm:$0xff] %v1562
    %1627 = vst [vmem:[%s1607] ss:$2 sm:$0xff] %v1565
    %1628 = vst [vmem:[%s1609] ss:$2 sm:$0xff] %v1566
    %1629 = vst [vmem:[%s1611] ss:$2 sm:$0xff] %v1569
    %1630 = vst [vmem:[%s1613] ss:$2 sm:$0xff] %v1567
    %1631 = vst [vmem:[%s1615] ss:$2 sm:$0xff] %v1570
    %v1632 = vld.sshfl [vmem:[#allocation1] sm:$0xff pattern:$0x75316420]
    %v1633 = vld.sshfl [vmem:[#allocation1 + $0x8] sm:$0xff pattern:$0x75316420]
    %v1634 = vld.sshfl [vmem:[#allocation1 + $0x10] sm:$0xff pattern:$0x75316420]
    %v1635 = vld.sshfl [vmem:[#allocation1 + $0x20] sm:$0xff pattern:$0x75316420]
    %v1636 = vld.sshfl [vmem:[#allocation1 + $0x28] sm:$0xff pattern:$0x75316420]
    %v1637 = vld.sshfl [vmem:[#allocation1 + $0x30] sm:$0xff pattern:$0x75316420]
    %v1638 = vld.sshfl [vmem:[#allocation1 + $0x38] sm:$0xff pattern:$0x75316420]
    %1639 = vst [vmem:[#allocation1] ss:$2 sm:$0xff] %v1568
    %1640 = vst [vmem:[%s1603] ss:$2 sm:$0xff] %v1571
    %1641 = vst [vmem:[%s1605] ss:$2 sm:$0xff] %v1572
    %1642 = vst [vmem:[%s1607] ss:$2 sm:$0xff] %v1575
    %1643 = vst [vmem:[%s1609] ss:$2 sm:$0xff] %v1573
    %1644 = vst [vmem:[%s1611] ss:$2 sm:$0xff] %v1576
    %1645 = vst [vmem:[%s1613] ss:$2 sm:$0xff] %v1574
    %1646 = vst [vmem:[%s1615] ss:$2 sm:$0xff] %v1577
    %v1647 = vld.sshfl [vmem:[#allocation1] sm:$0xff pattern:$0x75316420]
    %v1648 = vld.sshfl [vmem:[#allocation1 + $0x10] sm:$0xff pattern:$0x75316420]
    %v1649 = vld.sshfl [vmem:[#allocation1 + $0x18] sm:$0xff pattern:$0x75316420]
    %v1650 = vld.sshfl [vmem:[#allocation1 + $0x20] sm:$0xff pattern:$0x75316420]
    %v1651 = vld.sshfl [vmem:[#allocation1 + $0x28] sm:$0xff pattern:$0x75316420]
    %v1652 = vld.sshfl [vmem:[#allocation1 + $0x30] sm:$0xff pattern:$0x75316420]
    %v1669 = vsel %vm277, %v1621, 0
    %v1671 = vsel %vm277, %v1634, 0
    %v1673 = vsel %vm277, %v1647, 0
    %v1675 = vsel %vm277, %v1652, 0
    %1677 = vmatpush.msra.mxu0 %v560
    %1678 = vmatpush.msra.mxu0 %v559
    %1679 = vmatpush.msra.mxu0 %v558
    %1680 = vmatpush.msra.mxu0 %v557
    %1681 = vmatpush.msra.mxu0 %v556
    %1682 = vmatpush.msra.mxu0 %v555
    %1683 = vmatpush.msra.mxu0 %v554
    %1684 = vmatpush.msra.mxu0 %v553
    %1685 = vmatpush.msra.mxu0 %v552
    %1686 = vmatpush.msra.mxu0 %v551
    %1687 = vmatpush.msra.mxu0 %v550
    %1688 = vmatpush.msra.mxu0 %v549
    %1689 = vmatpush.msra.mxu0 %v548
    %1690 = vmatpush.msra.mxu0 %v547
    %1691 = vmatpush.msra.mxu0 %v546
    %1692 = vmatpush.msra.mxu0 %v545
    %1693 = vmatmul.f32.gmra.mxu0 %v1617
    %v1694 = vpop.f32.mrf.mxu0
    %v1695 = vadd.f32 0.0, %v1694
    %1696 = vmatmul.f32.gmra.mxu0 %v1622
    %v1697 = vpop.f32.mrf.mxu0
    %v1698 = vadd.f32 0.0, %v1697
    %1699 = vmatmul.f32.gmra.mxu0 %v1635
    %v1700 = vpop.f32.mrf.mxu0
    %v1701 = vadd.f32 0.0, %v1700
    %1702 = vmatmul.f32.gmra.mxu0 %v1648
    %v1703 = vpop.f32.mrf.mxu0
    %v1704 = vadd.f32 0.0, %v1703
    %1705 = vdwg.mxu0
    %1706 = vmatpush.msra.mxu0 %v576
    %1707 = vmatpush.msra.mxu0 %v575
    %1708 = vmatpush.msra.mxu0 %v574
    %1709 = vmatpush.msra.mxu0 %v573
    %1710 = vmatpush.msra.mxu0 %v572
    %1711 = vmatpush.msra.mxu0 %v571
    %1712 = vmatpush.msra.mxu0 %v570
    %1713 = vmatpush.msra.mxu0 %v569
    %1714 = vmatpush.msra.mxu0 %v568
    %1715 = vmatpush.msra.mxu0 %v567
    %1716 = vmatpush.msra.mxu0 %v566
    %1717 = vmatpush.msra.mxu0 %v565
    %1718 = vmatpush.msra.mxu0 %v564
    %1719 = vmatpush.msra.mxu0 %v563
    %1720 = vmatpush.msra.mxu0 %v562
    %1721 = vmatpush.msra.mxu0 %v561
    %1722 = vmatmul.f32.gmra.mxu0 %v1618
    %v1723 = vpop.f32.mrf.mxu0
    %v1724 = vadd.f32 %v1695, %v1723
    %1725 = vmatmul.f32.gmra.mxu0 %v1623
    %v1726 = vpop.f32.mrf.mxu0
    %v1727 = vadd.f32 %v1698, %v1726
    %1728 = vmatmul.f32.gmra.mxu0 %v1636
    %v1729 = vpop.f32.mrf.mxu0
    %v1730 = vadd.f32 %v1701, %v1729
    %1731 = vmatmul.f32.gmra.mxu0 %v1649
    %v1732 = vpop.f32.mrf.mxu0
    %v1733 = vadd.f32 %v1704, %v1732
    %1734 = vdwg.mxu0
    %1735 = vmatpush.msra.mxu0 %v592
    %1736 = vmatpush.msra.mxu0 %v591
    %1737 = vmatpush.msra.mxu0 %v590
    %1738 = vmatpush.msra.mxu0 %v589
    %1739 = vmatpush.msra.mxu0 %v588
    %1740 = vmatpush.msra.mxu0 %v587
    %1741 = vmatpush.msra.mxu0 %v586
    %1742 = vmatpush.msra.mxu0 %v585
    %1743 = vmatpush.msra.mxu0 %v584
    %1744 = vmatpush.msra.mxu0 %v583
    %1745 = vmatpush.msra.mxu0 %v582
    %1746 = vmatpush.msra.mxu0 %v581
    %1747 = vmatpush.msra.mxu0 %v580
    %1748 = vmatpush.msra.mxu0 %v579
    %1749 = vmatpush.msra.mxu0 %v578
    %1750 = vmatpush.msra.mxu0 %v577
    %1751 = vmatmul.f32.gmra.mxu0 %v1619
    %v1752 = vpop.f32.mrf.mxu0
    %v1753 = vadd.f32 %v1724, %v1752
    %1754 = vmatmul.f32.gmra.mxu0 %v1632
    %v1755 = vpop.f32.mrf.mxu0
    %v1756 = vadd.f32 %v1727, %v1755
    %1757 = vmatmul.f32.gmra.mxu0 %v1637
    %v1758 = vpop.f32.mrf.mxu0
    %v1759 = vadd.f32 %v1730, %v1758
    %1760 = vmatmul.f32.gmra.mxu0 %v1650
    %v1761 = vpop.f32.mrf.mxu0
    %v1762 = vadd.f32 %v1733, %v1761
    %1763 = vdwg.mxu0
    %1764 = vmatpush.msra.mxu0 %v608
    %1765 = vmatpush.msra.mxu0 %v607
    %1766 = vmatpush.msra.mxu0 %v606
    %1767 = vmatpush.msra.mxu0 %v605
    %1768 = vmatpush.msra.mxu0 %v604
    %1769 = vmatpush.msra.mxu0 %v603
    %1770 = vmatpush.msra.mxu0 %v602
    %1771 = vmatpush.msra.mxu0 %v601
    %1772 = vmatpush.msra.mxu0 %v600
    %1773 = vmatpush.msra.mxu0 %v599
    %1774 = vmatpush.msra.mxu0 %v598
    %1775 = vmatpush.msra.mxu0 %v597
    %1776 = vmatpush.msra.mxu0 %v596
    %1777 = vmatpush.msra.mxu0 %v595
    %1778 = vmatpush.msra.mxu0 %v594
    %1779 = vmatpush.msra.mxu0 %v593
    %1780 = vmatmul.f32.gmra.mxu0 %v1620
    %v1781 = vpop.f32.mrf.mxu0
    %v1782 = vadd.f32 %v1753, %v1781
    %1783 = vmatmul.f32.gmra.mxu0 %v1633
    %v1784 = vpop.f32.mrf.mxu0
    %v1785 = vadd.f32 %v1756, %v1784
    %1786 = vmatmul.f32.gmra.mxu0 %v1638
    %v1787 = vpop.f32.mrf.mxu0
    %v1788 = vadd.f32 %v1759, %v1787
    %1789 = vmatmul.f32.gmra.mxu0 %v1651
    %v1790 = vpop.f32.mrf.mxu0
    %v1791 = vadd.f32 %v1762, %v1790
    %1792 = vdwg.mxu0
    %1793 = vmatpush.msra.mxu0 0.0
    %1794 = vmatpush.msra.mxu0 0.0
    %1795 = vmatpush.msra.mxu0 0.0
    %1796 = vmatpush.msra.mxu0 0.0
    %1797 = vmatpush.msra.mxu0 0.0
    %1798 = vmatpush.msra.mxu0 0.0
    %1799 = vmatpush.msra.mxu0 0.0
    %1800 = vmatpush.msra.mxu0 0.0
    %1801 = vmatpush.msra.mxu0 %v616
    %1802 = vmatpush.msra.mxu0 %v615
    %1803 = vmatpush.msra.mxu0 %v614
    %1804 = vmatpush.msra.mxu0 %v613
    %1805 = vmatpush.msra.mxu0 %v612
    %1806 = vmatpush.msra.mxu0 %v611
    %1807 = vmatpush.msra.mxu0 %v610
    %1808 = vmatpush.msra.mxu0 %v609
    %1809 = vmatmul.f32.gmra.mxu0 %v1669
    %v1810 = vpop.f32.mrf.mxu0
    %v1811 = vadd.f32 %v1782, %v1810
    %1812 = vmatmul.f32.gmra.mxu0 %v1671
    %v1813 = vpop.f32.mrf.mxu0
    %v1814 = vadd.f32 %v1785, %v1813
    %1815 = vmatmul.f32.gmra.mxu0 %v1673
    %v1816 = vpop.f32.mrf.mxu0
    %v1817 = vadd.f32 %v1788, %v1816
    %1818 = vmatmul.f32.gmra.mxu0 %v1675
    %v1819 = vpop.f32.mrf.mxu0
    %v1820 = vadd.f32 %v1791, %v1819
    %1821 = vdwg.mxu0
    %v1822 = vmul.f32 %v1811, %v224
    %v1823 = vmul.f32 %v1814, %v224
    %v1824 = vmul.f32 %v1817, %v224
    %v1825 = vmul.f32 %v1820, %v224
    %v1826 = vadd.f32 %v1822, %v243
    %v1827 = vadd.f32 %v1823, %v243
    %v1828 = vadd.f32 %v1824, %v243
    %v1829 = vadd.f32 %v1825, %v243
    %v1830 = vld [vmem:[%s407 + $0x1] sm:$0xf]
    %v1831 = vld [vmem:[%s407 + $0x9] sm:$0xf]
    %v1832 = vld [vmem:[%s407 + $0x11] sm:$0xf]
    %v1833 = vld [vmem:[%s407 + $0x19] sm:$0xf]
    %v1834 = vld [vmem:[%s407 + $0x31] sm:$0xf]
    %v1835 = vld [vmem:[%s407 + $0x39] sm:$0xf]
    %v1836 = vld [vmem:[%s407 + $0x41] sm:$0xf]
    %v1837 = vld [vmem:[%s407 + $0x49] sm:$0xf]
    %1846 = vst [vmem:[#allocation1] ss:$2 sm:$0xff] %v1830
    %s1847 = scalar_lea.vmem [#allocation1], 1
    %1848 = vst [vmem:[%s1847] ss:$2 sm:$0xff] %v1831
    %s1849 = scalar_lea.vmem [#allocation1], 16
    %1850 = vst [vmem:[%s1849] ss:$2 sm:$0xff] %v1832
    %s1851 = scalar_lea.vmem [#allocation1], 17
    %1852 = vst [vmem:[%s1851] ss:$2 sm:$0xff] %v1833
    %s1853 = scalar_lea.vmem [#allocation1], 32
    %1854 = vst [vmem:[%s1853] ss:$2 sm:$0xff] %v1834
    %s1855 = scalar_lea.vmem [#allocation1], 33
    %1856 = vst [vmem:[%s1855] ss:$2 sm:$0xff] %v1835
    %s1857 = scalar_lea.vmem [#allocation1], 48
    %1858 = vst [vmem:[%s1857] ss:$2 sm:$0xff] %v1836
    %s1859 = scalar_lea.vmem [#allocation1], 49
    %1860 = vst [vmem:[%s1859] ss:$2 sm:$0xff] %v1837
    %v1861 = vld.sshfl [vmem:[#allocation1] sm:$0xff pattern:$0x75316420]
    %v1862 = vld.sshfl [vmem:[#allocation1 + $0x10] sm:$0xff pattern:$0x75316420]
    %v1863 = vld.sshfl [vmem:[#allocation1 + $0x20] sm:$0xff pattern:$0x75316420]
    %v1864 = vld.sshfl [vmem:[#allocation1 + $0x30] sm:$0xff pattern:$0x75316420]
    %v1869 = vadd.f32 %v1826, %v1861
    %v1870 = vadd.f32 %v1827, %v1862
    %v1871 = vadd.f32 %v1828, %v1863
    %v1872 = vadd.f32 %v1829, %v1864
    %v1873 = vmax.f32 %v1869, 0.0
    %v1874 = vmax.f32 %v1870, 0.0
    %v1875 = vmax.f32 %v1871, 0.0
    %v1876 = vmax.f32 %v1872, 0.0
    %1877 = vst.msk [vmem:[#allocation5] sm:$0x3f] %vm336, 0.0
    %1878 = vst.msk [vmem:[#allocation5 + $0x8] sm:$0x3f] %vm336, 0.0
    %1879 = vst.msk [vmem:[#allocation5 + $0x10] sm:$0x3f] %vm336, 0.0
    %1880 = vst.msk [vmem:[#allocation5 + $0x18] sm:$0x3f] %vm336, 0.0
    %1881 = vst.msk [vmem:[#allocation5 + $0x20] sm:$0x3f] %vm336, 0.0
    %1882 = vst.msk [vmem:[#allocation5 + $0x28] sm:$0x3f] %vm336, 0.0
    %1883 = vst.msk [vmem:[#allocation5 + $0x30] sm:$0x3f] %vm336, 0.0
    %1884 = vst.msk [vmem:[#allocation5 + $0x38] sm:$0x3f] %vm336, 0.0
    %1885 = vst.msk [vmem:[#allocation5 + $0x40] sm:$0x3f] %vm336, 0.0
    %1886 = vst.msk [vmem:[#allocation5 + $0x48] sm:$0x3f] %vm336, 0.0
    %1887 = vst.msk [vmem:[#allocation5 + $0x50] sm:$0x3f] %vm336, 0.0
    %1888 = vst.msk [vmem:[#allocation5 + $0x58] sm:$0x3f] %vm336, 0.0
    %v1893 = vrot.slane %v1873, 4
    %v1894 = vrot.slane %v1874, 4
    %v1895 = vrot.slane %v1875, 4
    %v1896 = vrot.slane %v1876, 4
    %s1901 = scalar_lea.vmem [#allocation5], 8
    %1902 = vst.msk [vmem:[%s1901 + $0x1] sm:$0xf] %vm629, %v1873
    %1903 = vst.msk [vmem:[%s1901 + $0x9] sm:$0xf] %vm629, %v1893
    %1904 = vst.msk [vmem:[%s1901 + $0x11] sm:$0xf] %vm629, %v1874
    %1905 = vst.msk [vmem:[%s1901 + $0x19] sm:$0xf] %vm629, %v1894
    %1906 = vst.msk [vmem:[%s1901 + $0x31] sm:$0xf] %vm629, %v1875
    %1907 = vst.msk [vmem:[%s1901 + $0x39] sm:$0xf] %vm629, %v1895
    %1908 = vst.msk [vmem:[%s1901 + $0x41] sm:$0xf] %vm629, %v1876
    %1909 = vst.msk [vmem:[%s1901 + $0x49] sm:$0xf] %vm629, %v1896
    %v1910 = vld [vmem:[#allocation5] sm:$0x3f]
    %v1911 = vld [vmem:[#allocation5 + $0x8] sm:$0x3f]
    %v1912 = vld [vmem:[#allocation5 + $0x10] sm:$0x3f]
    %v1913 = vld [vmem:[#allocation5 + $0x18] sm:$0x3f]
    %v1914 = vld [vmem:[#allocation5 + $0x20] sm:$0x3f]
    %v1915 = vld [vmem:[#allocation5 + $0x30] sm:$0x3f]
    %v1916 = vld [vmem:[#allocation5 + $0x38] sm:$0x3f]
    %v1917 = vld [vmem:[#allocation5 + $0x40] sm:$0x3f]
    %v1918 = vld [vmem:[#allocation5 + $0x48] sm:$0x3f]
    %v1919 = vld [vmem:[#allocation5 + $0x50] sm:$0x3f]
    %v1920 = vadd.f32 %v1910, %v1911
    %v1921 = vadd.f32 %v1915, %v1916
    %v1922 = vadd.f32 %v1920, %v1912
    %v1923 = vadd.f32 %v1921, %v1917
    %v1926 = vrot.slane %v1922, 1
    %v1927 = vrot.slane %v1923, 1
    %v1930 = vadd.f32 %v1922, %v1926
    %v1931 = vadd.f32 %v1923, %v1927
    %v1932 = vrot.slane %v1922, 2
    %v1933 = vrot.slane %v1923, 2
    %v1936 = vadd.f32 %v1930, %v1932
    %v1937 = vadd.f32 %v1931, %v1933
    %v1938 = vmul.f32 %v1936, 0.11111111
    %v1939 = vmul.f32 %v1937, 0.11111111
    %v1940 = vld [vmem:[%s5] sm:$0xff]
    %v1941 = vld [vmem:[%s5 + $0x8] sm:$0xff]
    %v1942 = vld [vmem:[%s5 + $0x10] sm:$0xff]
    %v1943 = vld [vmem:[%s5 + $0x18] sm:$0xff]
    %v1944 = vld [vmem:[%s5 + $0x20] sm:$0xff]
    %v1945 = vld [vmem:[%s5 + $0x28] sm:$0xff]
    %v1946 = vld [vmem:[%s5 + $0x30] sm:$0xff]
    %v1947 = vld [vmem:[%s5 + $0x38] sm:$0xff]
    %s1948 = scalar_lea.vmem %s5, 64
    %v1949 = vld [vmem:[%s1948] sm:$0xff]
    %v1950 = vld [vmem:[%s1948 + $0x8] sm:$0xff]
    %v1951 = vld [vmem:[%s1948 + $0x10] sm:$0xff]
    %v1952 = vld [vmem:[%s1948 + $0x18] sm:$0xff]
    %v1953 = vld [vmem:[%s1948 + $0x20] sm:$0xff]
    %v1954 = vld [vmem:[%s1948 + $0x28] sm:$0xff]
    %v1955 = vld [vmem:[%s1948 + $0x30] sm:$0xff]
    %v1956 = vld [vmem:[%s1948 + $0x38] sm:$0xff]
    %v1959 = vrot.slane %v1938, 2
    %v1960 = vrot.slane %v1939, 1
    %vm1961 = vcmask 1041409
    %v1962 = vsel %vm1961, %v1960, %v1959
    %v1963 = vsel %vm277, %v1962, 0
    %1965 = vmatpush.msra.mxu0 0.0
    %1966 = vmatpush.msra.mxu0 0.0
    %1967 = vmatpush.msra.mxu0 0.0
    %1968 = vmatpush.msra.mxu0 0.0
    %1969 = vmatpush.msra.mxu0 0.0
    %1970 = vmatpush.msra.mxu0 0.0
    %1971 = vmatpush.msra.mxu0 0.0
    %1972 = vmatpush.msra.mxu0 0.0
    %1973 = vmatpush.msra.mxu0 %v1956
    %1974 = vmatpush.msra.mxu0 %v1955
    %1975 = vmatpush.msra.mxu0 %v1954
    %1976 = vmatpush.msra.mxu0 %v1953
    %1977 = vmatpush.msra.mxu0 %v1952
    %1978 = vmatpush.msra.mxu0 %v1951
    %1979 = vmatpush.msra.mxu0 %v1950
    %1980 = vmatpush.msra.mxu0 %v1949
    %1981 = vmatmul.f32.gmra.mxu0 %v1963
    %v1982 = vpop.f32.mrf.mxu0
    %v1983 = vadd.f32 0.0, %v1982
    %1984 = vdwg.mxu0
    %v1985 = vrot.slane %v1939, 7
    %v1986 = vsel %vm1961, %v1985, %v1938
    %v1987 = vsel %vm277, %v1986, 0
    %1989 = vmatpush.msra.mxu0 0.0
    %1990 = vmatpush.msra.mxu0 0.0
    %1991 = vmatpush.msra.mxu0 0.0
    %1992 = vmatpush.msra.mxu0 0.0
    %1993 = vmatpush.msra.mxu0 0.0
    %1994 = vmatpush.msra.mxu0 0.0
    %1995 = vmatpush.msra.mxu0 0.0
    %1996 = vmatpush.msra.mxu0 0.0
    %1997 = vmatpush.msra.mxu0 %v1947
    %1998 = vmatpush.msra.mxu0 %v1946
    %1999 = vmatpush.msra.mxu0 %v1945
    %2000 = vmatpush.msra.mxu0 %v1944
    %2001 = vmatpush.msra.mxu0 %v1943
    %2002 = vmatpush.msra.mxu0 %v1942
    %2003 = vmatpush.msra.mxu0 %v1941
    %2004 = vmatpush.msra.mxu0 %v1940
    %2005 = vmatmul.f32.gmra.mxu0 %v1987
    %v2006 = vpop.f32.mrf.mxu0
    %v2007 = vadd.f32 %v1983, %v2006
    %2008 = vdwg.mxu0
    %v2009 = vadd.f32 %v1912, %v1913
    %v2010 = vadd.f32 %v1917, %v1918
    %v2011 = vadd.f32 %v2009, %v1914
    %v2012 = vadd.f32 %v2010, %v1919
    %v2015 = vrot.slane %v2011, 1
    %v2016 = vrot.slane %v2012, 1
    %v2019 = vadd.f32 %v2011, %v2015
    %v2020 = vadd.f32 %v2012, %v2016
    %v2021 = vrot.slane %v2011, 2
    %v2022 = vrot.slane %v2012, 2
    %v2025 = vadd.f32 %v2019, %v2021
    %v2026 = vadd.f32 %v2020, %v2022
    %v2027 = vmul.f32 %v2025, 0.11111111
    %v2028 = vmul.f32 %v2026, 0.11111111
    %s2029 = scalar_lea.vmem %s5, 128
    %v2030 = vld [vmem:[%s2029] sm:$0xff]
    %v2031 = vld [vmem:[%s2029 + $0x8] sm:$0xff]
    %v2032 = vld [vmem:[%s2029 + $0x10] sm:$0xff]
    %v2033 = vld [vmem:[%s2029 + $0x18] sm:$0xff]
    %v2034 = vld [vmem:[%s2029 + $0x20] sm:$0xff]
    %v2035 = vld [vmem:[%s2029 + $0x28] sm:$0xff]
    %v2036 = vld [vmem:[%s2029 + $0x30] sm:$0xff]
    %v2037 = vld [vmem:[%s2029 + $0x38] sm:$0xff]
    %v2040 = vrot.slane %v2028, 7
    %v2041 = vsel %vm1961, %v2040, %v2027
    %v2042 = vsel %vm277, %v2041, 0
    %2044 = vmatpush.msra.mxu0 0.0
    %2045 = vmatpush.msra.mxu0 0.0
    %2046 = vmatpush.msra.mxu0 0.0
    %2047 = vmatpush.msra.mxu0 0.0
    %2048 = vmatpush.msra.mxu0 0.0
    %2049 = vmatpush.msra.mxu0 0.0
    %2050 = vmatpush.msra.mxu0 0.0
    %2051 = vmatpush.msra.mxu0 0.0
    %2052 = vmatpush.msra.mxu0 %v2037
    %2053 = vmatpush.msra.mxu0 %v2036
    %2054 = vmatpush.msra.mxu0 %v2035
    %2055 = vmatpush.msra.mxu0 %v2034
    %2056 = vmatpush.msra.mxu0 %v2033
    %2057 = vmatpush.msra.mxu0 %v2032
    %2058 = vmatpush.msra.mxu0 %v2031
    %2059 = vmatpush.msra.mxu0 %v2030
    %2060 = vmatmul.f32.gmra.mxu0 %v2042
    %v2061 = vpop.f32.mrf.mxu0
    %v2062 = vadd.f32 0.0, %v2061
    %2063 = vdwg.mxu0
    %v2064 = vadd.f32 %v2007, %v2062
    %s2065 = scalar_lea.vmem %s5, 192
    %v2066 = vld [vmem:[%s2065] sm:$0xff]
    %v2067 = vld [vmem:[%s2065 + $0x8] sm:$0xff]
    %v2068 = vld [vmem:[%s2065 + $0x10] sm:$0xff]
    %v2069 = vld [vmem:[%s2065 + $0x18] sm:$0xff]
    %v2070 = vld [vmem:[%s2065 + $0x20] sm:$0xff]
    %v2071 = vld [vmem:[%s2065 + $0x28] sm:$0xff]
    %v2072 = vld [vmem:[%s2065 + $0x30] sm:$0xff]
    %v2073 = vld [vmem:[%s2065 + $0x38] sm:$0xff]
    %v2074 = vrot.slane %v2027, 2
    %v2075 = vrot.slane %v2028, 1
    %v2076 = vsel %vm1961, %v2075, %v2074
    %v2077 = vsel %vm277, %v2076, 0
    %2079 = vmatpush.msra.mxu0 0.0
    %2080 = vmatpush.msra.mxu0 0.0
    %2081 = vmatpush.msra.mxu0 0.0
    %2082 = vmatpush.msra.mxu0 0.0
    %2083 = vmatpush.msra.mxu0 0.0
    %2084 = vmatpush.msra.mxu0 0.0
    %2085 = vmatpush.msra.mxu0 0.0
    %2086 = vmatpush.msra.mxu0 0.0
    %2087 = vmatpush.msra.mxu0 %v2073
    %2088 = vmatpush.msra.mxu0 %v2072
    %2089 = vmatpush.msra.mxu0 %v2071
    %2090 = vmatpush.msra.mxu0 %v2070
    %2091 = vmatpush.msra.mxu0 %v2069
    %2092 = vmatpush.msra.mxu0 %v2068
    %2093 = vmatpush.msra.mxu0 %v2067
    %2094 = vmatpush.msra.mxu0 %v2066
    %2095 = vmatmul.f32.gmra.mxu0 %v2077
    %v2096 = vpop.f32.mrf.mxu0
    %v2097 = vadd.f32 0.0, %v2096
    %2098 = vdwg.mxu0
    %v2099 = vadd.f32 %v2064, %v2097
    %v2100 = vld [vmem:[%s6] sm:$0x1]
    %v2102 = vperm.slane %v2100, 0
    %v2104 = vadd.f32 %v2099, %v2102
    %2105 = vst [vmem:[#allocation7] sm:$0x3] %v2104
    // Predicated region
    $region30: #{tpu_custom_call.1} parent=1 // pred_check
      _
    $region31: #{tpu_custom_call.1} parent=1 // pred_check_branch
      %2107 = sbr.rel (0) target = $region33
    $region32: #{tpu_custom_call.1} parent=1 // pred_region
      %2109 = vsyncadd [#allocation8], 0
      %s2111 = sshll.u32 [#allocation7], 4
      %s2112 = int_to_ptr.vmem [resolvable:$true] %s2111
      %s2113 = sshll.u32 %s7, 4
      %s2114 = int_to_ptr.hbm [resolvable:$true] %s2113
      %2116 = dma.vmem_to_hbm [thread:$0]  %s2112, 32, %s2114, [#allocation8]
    $region33: #{tpu_custom_call.1} parent=1 // pred_fallthru
      _
    // Predicated region
    $region34: #{tpu_custom_call.1} parent=1 // pred_check
      _
    $region35: #{tpu_custom_call.1} parent=1 // pred_check_branch
      %2118 = sbr.rel (0) target = $region37
    $region36: #{tpu_custom_call.1} parent=1 // pred_region
      %2120 = dma.done [#allocation8], 32
    $region37: #{tpu_custom_call.1} parent=1 // pred_fallthru
      _
    %2121 = vsyncpa [#allocation8], 1

</llo_original>
